<compile_context>
chip_gen: v6e
topology: v6e:2x2x1
jax: 0.10.0
libtpu: 0.0.40
codegen_flags: <defaults>
</compile_context>

<pallas_src>
import jax
import jax.numpy as jnp
from jax.experimental import pallas as pl
from jax.experimental.pallas import tpu as pltpu

D = 768          # embed_dim (fixed by proj1 = nn.Linear(768, 768))
RANK = 8         # adapter rank
RANK_PAD = 128   # rank zero-padded to one full lane width (math-equivalent)
OUT_DIM = 101    # Food101 classes
OUT_PAD = 128    # output lanes zero-padded to 128, sliced back in the wrapper
MAX_BLOCK_B = 256  # batch tile cap (keeps activations tiny vs. ~1.6 MB of weights)


def foodwander_kernel(cls_ref, wd_ref, wu_ref, w1_ref, b1_ref, w2_ref, b2_ref,
                      out_ref):
    """CLS-row adapter fusion + classification head.

      cls_ref:  (Bt, D)        bf16  CLS token of the fused [v, t] sequence
      wd_ref:   (D, RANK_PAD)  bf16  adapter down-proj (cols >= RANK are zero)
      wu_ref:   (RANK_PAD, D)  bf16  adapter up-proj   (rows >= RANK are zero)
      w1_ref:   (D, D)         bf16  basemodel.proj1 weight (x @ W layout)
      b1_ref:   (1, D)         f32   basemodel.proj1 bias
      w2_ref:   (D, OUT_PAD)   bf16  basemodel.out_layer weight (cols >= OUT_DIM zero)
      b2_ref:   (1, OUT_PAD)   f32   basemodel.out_layer bias
      out_ref:  (Bt, OUT_PAD)  f32   logits (first OUT_DIM lanes valid)
    """
    cls_bf = cls_ref[...]                                            # (Bt, D) bf16

    # --- Adapter: low-rank residual bottleneck, CLS row only ---
    low = jnp.dot(cls_bf, wd_ref[...],
                  preferred_element_type=jnp.float32)                # (Bt, RANK_PAD)
    low = jnp.maximum(low, 0.0)                                      # ReLU (f32)
    up = jnp.dot(low.astype(jnp.bfloat16), wu_ref[...],
                 preferred_element_type=jnp.float32)                 # (Bt, D)
    fusion_cls = cls_bf.astype(jnp.float32) + up                     # residual, f32

    # --- head: proj1 -> ReLU -> dropout(eval)=identity -> out_layer ---
    z = jnp.dot(fusion_cls.astype(jnp.bfloat16), w1_ref[...],
                preferred_element_type=jnp.float32) + b1_ref[...]    # (Bt, D)
    z = jnp.maximum(z, 0.0)                                          # F.relu
    out_ref[...] = jnp.dot(z.astype(jnp.bfloat16), w2_ref[...],
                           preferred_element_type=jnp.float32) + b2_ref[...]


def init_params(key):
    k_wd, k_wu, k_w1, k_w2 = jax.random.split(key, 4)
    wd = jnp.zeros((D, RANK_PAD), jnp.bfloat16).at[:, :RANK].set(
        (0.02 * jax.random.normal(k_wd, (D, RANK), jnp.float32)).astype(jnp.bfloat16))
    wu = jnp.zeros((RANK_PAD, D), jnp.bfloat16).at[:RANK, :].set(
        (0.02 * jax.random.normal(k_wu, (RANK, D), jnp.float32)).astype(jnp.bfloat16))
    w1 = (0.02 * jax.random.normal(k_w1, (D, D), jnp.float32)).astype(jnp.bfloat16)
    b1 = jnp.zeros((1, D), jnp.float32)
    w2 = jnp.zeros((D, OUT_PAD), jnp.bfloat16).at[:, :OUT_DIM].set(
        (0.02 * jax.random.normal(k_w2, (D, OUT_DIM), jnp.float32)).astype(jnp.bfloat16))
    b2 = jnp.zeros((1, OUT_PAD), jnp.float32)
    return dict(wd=wd, wu=wu, w1=w1, b1=b1, w2=w2, b2=b2)


def _batch_blocking(B):
    """Sublane-aligned batch block and grid size with minimal padding."""
    b_pad8 = -(-B // 8) * 8                       # round up to sublane multiple
    block_b = min(b_pad8, MAX_BLOCK_B)            # cap the tile; weights dominate VMEM
    n_blk = -(-B // block_b)
    return block_b, n_blk, n_blk * block_b


def foodmodel_wander_forward(v_feat, t_feat, params):
    """v_feat: (B, Sv, D), t_feat: (B, St, D) -> logits (B, OUT_DIM)."""
    # Only the first token of the fused [v, t] sequence (== v CLS) feeds the head
    # under the per-token adapter; t_feat and tokens s>0 drop out of the math.
    del t_feat
    cls = v_feat[:, 0, :].astype(jnp.bfloat16)                       # (B, D)
    B = cls.shape[0]

    block_b, n_blk, b_pad = _batch_blocking(B)
    if b_pad != B:
        cls = jnp.pad(cls, ((0, b_pad - B), (0, 0)))

    out_padded = pl.pallas_call(
        foodwander_kernel,
        out_shape=jax.ShapeDtypeStruct((b_pad, OUT_PAD), jnp.float32),
        grid=(n_blk,),
        in_specs=[
            pl.BlockSpec((block_b, D), lambda i: (i, 0)),            # cls block
            pl.BlockSpec((D, RANK_PAD), lambda i: (0, 0)),           # weights stay
            pl.BlockSpec((RANK_PAD, D), lambda i: (0, 0)),           # VMEM-resident
            pl.BlockSpec((D, D), lambda i: (0, 0)),                  # across grid
            pl.BlockSpec((1, D), lambda i: (0, 0)),
            pl.BlockSpec((D, OUT_PAD), lambda i: (0, 0)),
            pl.BlockSpec((1, OUT_PAD), lambda i: (0, 0)),
        ],
        out_specs=pl.BlockSpec((block_b, OUT_PAD), lambda i: (i, 0)),
        compiler_params=pltpu.CompilerParams(
            dimension_semantics=("parallel",)),
    )(cls, params['wd'], params['wu'], params['w1'], params['b1'],
      params['w2'], params['b2'])
    return out_padded[:B, :OUT_DIM]


def _reference(v_feat, t_feat, params):
    """Pure-JAX reference of the same (bf16-weight) math."""
    cls = v_feat[:, 0, :].astype(jnp.bfloat16)
    low = jnp.maximum(jnp.dot(cls, params['wd'],
                              preferred_element_type=jnp.float32), 0.0)
    up = jnp.dot(low.astype(jnp.bfloat16), params['wu'],
                 preferred_element_type=jnp.float32)
    fusion_cls = cls.astype(jnp.float32) + up
    z = jnp.maximum(jnp.dot(fusion_cls.astype(jnp.bfloat16), params['w1'],
                            preferred_element_type=jnp.float32) + params['b1'], 0.0)
    out = jnp.dot(z.astype(jnp.bfloat16), params['w2'],
                  preferred_element_type=jnp.float32) + params['b2']
    return out[:, :OUT_DIM]


if __name__ == "__main__":
    key = jax.random.PRNGKey(0)
    k_v, k_t, k_p = jax.random.split(key, 3)

    B, SV, ST = 2, 8, 8   # small token counts for the (frozen-encoder) features
    v_feat = jax.random.normal(k_v, (B, SV, D), jnp.float32)
    t_feat = jax.random.normal(k_t, (B, ST, D), jnp.float32)
    params = init_params(k_p)

    out = foodmodel_wander_forward(v_feat, t_feat, params)
    out = jax.block_until_ready(out)

    ref = jax.block_until_ready(_reference(v_feat, t_feat, params))
    assert out.shape == (B, OUT_DIM)
    assert bool(jnp.allclose(out, ref, atol=1e-2, rtol=1e-2))

    print("KERNEL_OK")
</pallas_src>

<mosaic_0001>
module attributes {stable_mosaic.version = 11 : i64} {
  func.func @foodwander_kernel(%arg0: i32, %arg1: memref<8x768xbf16, #tpu.memory_space<vmem>>, %arg2: memref<768x128xbf16, #tpu.memory_space<vmem>>, %arg3: memref<128x768xbf16, #tpu.memory_space<vmem>>, %arg4: memref<768x768xbf16, #tpu.memory_space<vmem>>, %arg5: memref<1x768xf32, #tpu.memory_space<vmem>>, %arg6: memref<768x128xbf16, #tpu.memory_space<vmem>>, %arg7: memref<1x128xf32, #tpu.memory_space<vmem>>, %arg8: memref<8x128xf32, #tpu.memory_space<vmem>>) attributes {dimension_semantics = [#tpu.dimension_semantics<parallel>], iteration_bounds = array<i64: 1>, scalar_prefetch = 0 : i64, scratch_operands = 0 : i64, tpu.core_type = #tpu.core_type<tc>, window_params = [{transform_indices = @transform_0, window_bounds = array<i64: 8, 768>}, {pipeline_mode = #tpu.pipeline_mode<synchronous>, transform_indices = @transform_1, window_bounds = array<i64: 768, 128>}, {pipeline_mode = #tpu.pipeline_mode<synchronous>, transform_indices = @transform_2, window_bounds = array<i64: 128, 768>}, {pipeline_mode = #tpu.pipeline_mode<synchronous>, transform_indices = @transform_3, window_bounds = array<i64: 768, 768>}, {pipeline_mode = #tpu.pipeline_mode<synchronous>, transform_indices = @transform_4, window_bounds = array<i64: 1, 768>}, {pipeline_mode = #tpu.pipeline_mode<synchronous>, transform_indices = @transform_5, window_bounds = array<i64: 768, 128>}, {pipeline_mode = #tpu.pipeline_mode<synchronous>, transform_indices = @transform_6, window_bounds = array<i64: 1, 128>}, {transform_indices = @transform_7, window_bounds = array<i64: 8, 128>}]} {
    %c0 = arith.constant 0 : index
    %c0_0 = arith.constant 0 : index
    %0 = vector.load %arg1[%c0, %c0_0] : memref<8x768xbf16, #tpu.memory_space<vmem>>, vector<8x768xbf16>
    %c0_1 = arith.constant 0 : index
    %c0_2 = arith.constant 0 : index
    %1 = vector.load %arg2[%c0_1, %c0_2] : memref<768x128xbf16, #tpu.memory_space<vmem>>, vector<768x128xbf16>
    %cst = arith.constant dense<0.000000e+00> : vector<8x128xf32>
    %2 = tpu.matmul %0, %1, %cst {dimension_numbers = #tpu.dot_dimension_numbers<[1], [0], [0], [1], [0, 0, 1, 1], [], []>} : vector<8x768xbf16>, vector<768x128xbf16>, vector<8x128xf32> -> vector<8x128xf32>
    %cst_3 = arith.constant 0.000000e+00 : f32
    %3 = vector.broadcast %cst_3 : f32 to vector<8x128xf32>
    %4 = arith.maximumf %2, %3 : vector<8x128xf32>
    %5 = arith.truncf %4 : vector<8x128xf32> to vector<8x128xbf16>
    %c0_4 = arith.constant 0 : index
    %c0_5 = arith.constant 0 : index
    %6 = vector.load %arg3[%c0_4, %c0_5] : memref<128x768xbf16, #tpu.memory_space<vmem>>, vector<128x768xbf16>
    %cst_6 = arith.constant dense<0.000000e+00> : vector<8x768xf32>
    %7 = tpu.matmul %5, %6, %cst_6 {dimension_numbers = #tpu.dot_dimension_numbers<[1], [0], [0], [1], [0, 0, 1, 1], [], []>} : vector<8x128xbf16>, vector<128x768xbf16>, vector<8x768xf32> -> vector<8x768xf32>
    %8 = arith.extf %0 : vector<8x768xbf16> to vector<8x768xf32>
    %9 = arith.addf %8, %7 : vector<8x768xf32>
    %10 = arith.truncf %9 : vector<8x768xf32> to vector<8x768xbf16>
    %c0_7 = arith.constant 0 : index
    %c0_8 = arith.constant 0 : index
    %11 = vector.load %arg4[%c0_7, %c0_8] : memref<768x768xbf16, #tpu.memory_space<vmem>>, vector<768x768xbf16>
    %cst_9 = arith.constant dense<0.000000e+00> : vector<8x768xf32>
    %12 = tpu.matmul %10, %11, %cst_9 {dimension_numbers = #tpu.dot_dimension_numbers<[1], [0], [0], [1], [0, 0, 1, 1], [], []>} : vector<8x768xbf16>, vector<768x768xbf16>, vector<8x768xf32> -> vector<8x768xf32>
    %c0_10 = arith.constant 0 : index
    %c0_11 = arith.constant 0 : index
    %13 = vector.load %arg5[%c0_10, %c0_11] : memref<1x768xf32, #tpu.memory_space<vmem>>, vector<1x768xf32>
    %14 = vector.broadcast %13 : vector<1x768xf32> to vector<8x768xf32>
    %15 = arith.addf %12, %14 : vector<8x768xf32>
    %cst_12 = arith.constant 0.000000e+00 : f32
    %16 = vector.broadcast %cst_12 : f32 to vector<8x768xf32>
    %17 = arith.maximumf %15, %16 : vector<8x768xf32>
    %18 = arith.truncf %17 : vector<8x768xf32> to vector<8x768xbf16>
    %c0_13 = arith.constant 0 : index
    %c0_14 = arith.constant 0 : index
    %19 = vector.load %arg6[%c0_13, %c0_14] : memref<768x128xbf16, #tpu.memory_space<vmem>>, vector<768x128xbf16>
    %cst_15 = arith.constant dense<0.000000e+00> : vector<8x128xf32>
    %20 = tpu.matmul %18, %19, %cst_15 {dimension_numbers = #tpu.dot_dimension_numbers<[1], [0], [0], [1], [0, 0, 1, 1], [], []>} : vector<8x768xbf16>, vector<768x128xbf16>, vector<8x128xf32> -> vector<8x128xf32>
    %c0_16 = arith.constant 0 : index
    %c0_17 = arith.constant 0 : index
    %21 = vector.load %arg7[%c0_16, %c0_17] : memref<1x128xf32, #tpu.memory_space<vmem>>, vector<1x128xf32>
    %22 = vector.broadcast %21 : vector<1x128xf32> to vector<8x128xf32>
    %23 = arith.addf %20, %22 : vector<8x128xf32>
    %c0_18 = arith.constant 0 : index
    %c0_19 = arith.constant 0 : index
    %24 = vector.load %arg8[%c0_18, %c0_19] : memref<8x128xf32, #tpu.memory_space<vmem>>, vector<8x128xf32>
    tpu.vector_store %arg8[%c0_18, %c0_19], %23 {strides = array<i32>} : memref<8x128xf32, #tpu.memory_space<vmem>>, vector<8x128xf32>,
    return
  }
  func.func @transform_0(%arg0: i32) -> (i32, i32) {
    %c0_i32 = arith.constant 0 : i32
    %c0_i32_0 = arith.constant 0 : i32
    return %arg0, %c0_i32 : i32, i32
  }
  func.func @transform_1(%arg0: i32) -> (i32, i32) {
    %c0_i32 = arith.constant 0 : i32
    %c0_i32_0 = arith.constant 0 : i32
    %c0_i32_1 = arith.constant 0 : i32
    return %c0_i32, %c0_i32_0 : i32, i32
  }
  func.func @transform_2(%arg0: i32) -> (i32, i32) {
    %c0_i32 = arith.constant 0 : i32
    %c0_i32_0 = arith.constant 0 : i32
    %c0_i32_1 = arith.constant 0 : i32
    return %c0_i32, %c0_i32_0 : i32, i32
  }
  func.func @transform_3(%arg0: i32) -> (i32, i32) {
    %c0_i32 = arith.constant 0 : i32
    %c0_i32_0 = arith.constant 0 : i32
    %c0_i32_1 = arith.constant 0 : i32
    return %c0_i32, %c0_i32_0 : i32, i32
  }
  func.func @transform_4(%arg0: i32) -> (i32, i32) {
    %c0_i32 = arith.constant 0 : i32
    %c0_i32_0 = arith.constant 0 : i32
    %c0_i32_1 = arith.constant 0 : i32
    return %c0_i32, %c0_i32_0 : i32, i32
  }
  func.func @transform_5(%arg0: i32) -> (i32, i32) {
    %c0_i32 = arith.constant 0 : i32
    %c0_i32_0 = arith.constant 0 : i32
    %c0_i32_1 = arith.constant 0 : i32
    return %c0_i32, %c0_i32_0 : i32, i32
  }
  func.func @transform_6(%arg0: i32) -> (i32, i32) {
    %c0_i32 = arith.constant 0 : i32
    %c0_i32_0 = arith.constant 0 : i32
    %c0_i32_1 = arith.constant 0 : i32
    return %c0_i32, %c0_i32_0 : i32, i32
  }
  func.func @transform_7(%arg0: i32) -> (i32, i32) {
    %c0_i32 = arith.constant 0 : i32
    %c0_i32_0 = arith.constant 0 : i32
    return %arg0, %c0_i32 : i32, i32
  }
}

</mosaic_0001>

<llo_original>
// kernel: tpu_custom_call.1
$region0: #{tpu_custom_call.1}
  #allocation0 [shape = 'u32[]', space=smem, size = 0x4, offset = 0x4, fixed_abs, tag = 'smem constant byte address 0x4 - core index']
  #allocation1 [shape = 'u32[144,128]{1,0:T(1,128)}', space=vmem, size = 0x12000, scoped, tag = 'internal scratch']
  %s0 = inlined_call_operand.hbm [shape: bf16[8,768], index: 0, kind: input, shape index: {}]
  %s1 = inlined_call_operand.hbm [shape: bf16[768,128], index: 1, kind: input, shape index: {}]
  %s2 = inlined_call_operand.hbm [shape: bf16[128,768], index: 2, kind: input, shape index: {}]
  %s3 = inlined_call_operand.hbm [shape: bf16[768,768], index: 3, kind: input, shape index: {}]
  %s4 = inlined_call_operand.hbm [shape: f32[1,768], index: 4, kind: input, shape index: {}]
  %s5 = inlined_call_operand.hbm [shape: bf16[768,128], index: 5, kind: input, shape index: {}]
  %s6 = inlined_call_operand.hbm [shape: f32[1,128], index: 6, kind: input, shape index: {}]
  %s7 = inlined_call_operand.hbm [shape: f32[8,128], index: 7, kind: output, shape index: {}]
  %s8 = sld [smem:[#allocation0]]
  $region66: #{tpu_custom_call.1} parent=0
    _
  %s10 = ssub.s32 1, %s8
  %s11 = scalar_select 0, %s10, %s8
  $region1: #{tpu_custom_call.1} parent=0
    #allocation2 [shape = 'u8[12288]{0}', space=vmem, size = 0x3000, scoped, tag = 'input window, operand 0, single buffered']
    #allocation3 [shape = 's32[1]{0}', space=sflag, size = 0x4, scoped, tag = 'scoped memory for tpu_custom_call.1']
    #allocation4 [shape = 's32[1]{0}', space=sflag, size = 0x4, scoped, tag = 'scoped memory for tpu_custom_call.1']
    #allocation5 [shape = 'u8[196608]{0}', space=vmem, size = 0x30000, scoped, tag = 'input window, operand 1, single buffered']
    #allocation6 [shape = 's32[1]{0}', space=sflag, size = 0x4, scoped, tag = 'scoped memory for tpu_custom_call.1']
    #allocation7 [shape = 'u8[196608]{0}', space=vmem, size = 0x30000, scoped, tag = 'input window, operand 2, single buffered']
    #allocation8 [shape = 'u8[1179648]{0}', space=vmem, size = 0x120000, scoped, tag = 'input window, operand 3, single buffered']
    #allocation9 [shape = 's32[1]{0}', space=sflag, size = 0x4, scoped, tag = 'scoped memory for tpu_custom_call.1']
    #allocation10 [shape = 'u8[3072]{0}', space=vmem, size = 0xc00, scoped, tag = 'input window, operand 4, single buffered']
    #allocation11 [shape = 'u8[196608]{0}', space=vmem, size = 0x30000, scoped, tag = 'input window, operand 5, single buffered']
    #allocation12 [shape = 's32[1]{0}', space=sflag, size = 0x4, scoped, tag = 'scoped memory for tpu_custom_call.1']
    #allocation13 [shape = 'u8[512]{0}', space=vmem, size = 0x400, scoped, tag = 'input window, operand 6, single buffered']
    #allocation14 [shape = 'u8[4096]{0}', space=vmem, size = 0x1000, scoped, tag = 'output window, operand 0, single buffered']
    %12 = vsyncpa [#allocation3], 0
    %13 = vsyncpa [#allocation6], 0
    %14 = vsyncpa [#allocation9], 0
    %15 = vsyncpa [#allocation12], 0
    %16 = vsyncpa [#allocation4], 0
    // Predicated region
    $region2: #{tpu_custom_call.1} parent=1 // pred_check
      _
    $region3: #{tpu_custom_call.1} parent=1 // pred_check_branch
      %18 = sbr.rel (0) target = $region5
    $region4: #{tpu_custom_call.1} parent=1 // pred_region
      %s20 = ssub.s32 384, 384
      %21 = vsyncadd [#allocation3], %s20
      %s23 = sshll.u32 [#allocation2], 4
      %s24 = int_to_ptr.vmem [resolvable:$true] %s23
      %26 = dma.hbm_to_vmem [thread:$0]  %s0, 384, %s24, [#allocation3]
    $region5: #{tpu_custom_call.1} parent=1 // pred_fallthru
      _
    // Predicated region
    $region6: #{tpu_custom_call.1} parent=1 // pred_check
      _
    $region7: #{tpu_custom_call.1} parent=1 // pred_check_branch
      %28 = sbr.rel (0) target = $region9
    $region8: #{tpu_custom_call.1} parent=1 // pred_region
      %s30 = ssub.s32 6144, 6144
      %31 = vsyncadd [#allocation6], %s30
      %s32 = sshll.u32 [#allocation5], 4
      %s33 = int_to_ptr.vmem [resolvable:$true] %s32
      %38 = dma.hbm_to_vmem [thread:$0]  %s1, 6144, %s33, [#allocation6], 64, 64, 4
    $region9: #{tpu_custom_call.1} parent=1 // pred_fallthru
      _
    // Predicated region
    $region10: #{tpu_custom_call.1} parent=1 // pred_check
      _
    $region11: #{tpu_custom_call.1} parent=1 // pred_check_branch
      %40 = sbr.rel (0) target = $region13
    $region12: #{tpu_custom_call.1} parent=1 // pred_region
      %s42 = ssub.s32 6144, 6144
      %43 = vsyncadd [#allocation6], %s42
      %s44 = sshll.u32 [#allocation7], 4
      %s45 = int_to_ptr.vmem [resolvable:$true] %s44
      %50 = dma.hbm_to_vmem [thread:$0]  %s2, 6144, %s45, [#allocation6], 384, 384, 24
    $region13: #{tpu_custom_call.1} parent=1 // pred_fallthru
      _
    // Predicated region
    $region14: #{tpu_custom_call.1} parent=1 // pred_check
      _
    $region15: #{tpu_custom_call.1} parent=1 // pred_check_branch
      %52 = sbr.rel (0) target = $region17
    $region16: #{tpu_custom_call.1} parent=1 // pred_region
      %s54 = ssub.s32 36864, 36864
      %55 = vsyncadd [#allocation9], %s54
      %s56 = sshll.u32 [#allocation8], 4
      %s57 = int_to_ptr.vmem [resolvable:$true] %s56
      %62 = dma.hbm_to_vmem [thread:$0]  %s3, 36864, %s57, [#allocation9], 384, 384, 24
    $region17: #{tpu_custom_call.1} parent=1 // pred_fallthru
      _
    // Predicated region
    $region18: #{tpu_custom_call.1} parent=1 // pred_check
      _
    $region19: #{tpu_custom_call.1} parent=1 // pred_check_branch
      %64 = sbr.rel (0) target = $region21
    $region20: #{tpu_custom_call.1} parent=1 // pred_region
      %s66 = ssub.s32 96, 96
      %67 = vsyncadd [#allocation9], %s66
      %s69 = sshll.u32 [#allocation10], 4
      %s70 = int_to_ptr.vmem [resolvable:$true] %s69
      %72 = dma.hbm_to_vmem [thread:$0]  %s4, 96, %s70, [#allocation9]
    $region21: #{tpu_custom_call.1} parent=1 // pred_fallthru
      _
    // Predicated region
    $region22: #{tpu_custom_call.1} parent=1 // pred_check
      _
    $region23: #{tpu_custom_call.1} parent=1 // pred_check_branch
      %74 = sbr.rel (0) target = $region25
    $region24: #{tpu_custom_call.1} parent=1 // pred_region
      %s76 = ssub.s32 6144, 6144
      %77 = vsyncadd [#allocation12], %s76
      %s78 = sshll.u32 [#allocation11], 4
      %s79 = int_to_ptr.vmem [resolvable:$true] %s78
      %84 = dma.hbm_to_vmem [thread:$0]  %s5, 6144, %s79, [#allocation12], 64, 64, 4
    $region25: #{tpu_custom_call.1} parent=1 // pred_fallthru
      _
    // Predicated region
    $region26: #{tpu_custom_call.1} parent=1 // pred_check
      _
    $region27: #{tpu_custom_call.1} parent=1 // pred_check_branch
      %86 = sbr.rel (0) target = $region29
    $region28: #{tpu_custom_call.1} parent=1 // pred_region
      %s88 = ssub.s32 16, 16
      %89 = vsyncadd [#allocation12], %s88
      %s91 = sshll.u32 [#allocation13], 4
      %s92 = int_to_ptr.vmem [resolvable:$true] %s91
      %94 = dma.hbm_to_vmem [thread:$0]  %s6, 16, %s92, [#allocation12]
    $region29: #{tpu_custom_call.1} parent=1 // pred_fallthru
      _
    // Predicated region
    $region30: #{tpu_custom_call.1} parent=1 // pred_check
      _
    $region31: #{tpu_custom_call.1} parent=1 // pred_check_branch
      %96 = sbr.rel (0) target = $region33
    $region32: #{tpu_custom_call.1} parent=1 // pred_region
      %97 = dma.done [#allocation3], 384
    $region33: #{tpu_custom_call.1} parent=1 // pred_fallthru
      _
    // Predicated region
    $region34: #{tpu_custom_call.1} parent=1 // pred_check
      _
    $region35: #{tpu_custom_call.1} parent=1 // pred_check_branch
      %99 = sbr.rel (0) target = $region37
    $region36: #{tpu_custom_call.1} parent=1 // pred_region
      %100 = dma.done [#allocation6], 6144
    $region37: #{tpu_custom_call.1} parent=1 // pred_fallthru
      _
    // Predicated region
    $region38: #{tpu_custom_call.1} parent=1 // pred_check
      _
    $region39: #{tpu_custom_call.1} parent=1 // pred_check_branch
      %102 = sbr.rel (0) target = $region41
    $region40: #{tpu_custom_call.1} parent=1 // pred_region
      %103 = dma.done [#allocation6], 6144
    $region41: #{tpu_custom_call.1} parent=1 // pred_fallthru
      _
    // Predicated region
    $region42: #{tpu_custom_call.1} parent=1 // pred_check
      _
    $region43: #{tpu_custom_call.1} parent=1 // pred_check_branch
      %105 = sbr.rel (0) target = $region45
    $region44: #{tpu_custom_call.1} parent=1 // pred_region
      %106 = dma.done [#allocation9], 36864
    $region45: #{tpu_custom_call.1} parent=1 // pred_fallthru
      _
    // Predicated region
    $region46: #{tpu_custom_call.1} parent=1 // pred_check
      _
    $region47: #{tpu_custom_call.1} parent=1 // pred_check_branch
      %108 = sbr.rel (0) target = $region49
    $region48: #{tpu_custom_call.1} parent=1 // pred_region
      %109 = dma.done [#allocation9], 96
    $region49: #{tpu_custom_call.1} parent=1 // pred_fallthru
      _
    // Predicated region
    $region50: #{tpu_custom_call.1} parent=1 // pred_check
      _
    $region51: #{tpu_custom_call.1} parent=1 // pred_check_branch
      %111 = sbr.rel (0) target = $region53
    $region52: #{tpu_custom_call.1} parent=1 // pred_region
      %112 = dma.done [#allocation12], 6144
    $region53: #{tpu_custom_call.1} parent=1 // pred_fallthru
      _
    // Predicated region
    $region54: #{tpu_custom_call.1} parent=1 // pred_check
      _
    $region55: #{tpu_custom_call.1} parent=1 // pred_check_branch
      %114 = sbr.rel (0) target = $region57
    $region56: #{tpu_custom_call.1} parent=1 // pred_region
      %115 = dma.done [#allocation12], 16
    $region57: #{tpu_custom_call.1} parent=1 // pred_fallthru
      _
    %v117 = vld [vmem:[#allocation2] sm:$0xff]
    %v118 = vld [vmem:[#allocation2 + $0x8] sm:$0xff]
    %v119 = vld [vmem:[#allocation2 + $0x10] sm:$0xff]
    %v120 = vld [vmem:[#allocation5] sm:$0xf]
    %v121 = vld [vmem:[#allocation5 + $0x4] sm:$0xf]
    %v122 = vld [vmem:[#allocation5 + $0x8] sm:$0xf]
    %v123 = vld [vmem:[#allocation5 + $0xc] sm:$0xf]
    %v124 = vld [vmem:[#allocation5 + $0x10] sm:$0xf]
    %v125 = vld [vmem:[#allocation5 + $0x14] sm:$0xf]
    %v126 = vld [vmem:[#allocation5 + $0x18] sm:$0xf]
    %v127 = vld [vmem:[#allocation5 + $0x1c] sm:$0xf]
    %v128 = vld [vmem:[#allocation5 + $0x20] sm:$0xf]
    %v129 = vld [vmem:[#allocation5 + $0x24] sm:$0xf]
    %v130 = vld [vmem:[#allocation5 + $0x28] sm:$0xf]
    %v131 = vld [vmem:[#allocation5 + $0x2c] sm:$0xf]
    %v132 = vld [vmem:[#allocation5 + $0x30] sm:$0xf]
    %v133 = vld [vmem:[#allocation5 + $0x34] sm:$0xf]
    %v134 = vld [vmem:[#allocation5 + $0x38] sm:$0xf]
    %v135 = vld [vmem:[#allocation5 + $0x3c] sm:$0xf]
    %v136 = vld [vmem:[#allocation5 + $0x40] sm:$0xf]
    %v137 = vld [vmem:[#allocation5 + $0x44] sm:$0xf]
    %v138 = vld [vmem:[#allocation5 + $0x48] sm:$0xf]
    %v139 = vld [vmem:[#allocation5 + $0x4c] sm:$0xf]
    %v140 = vld [vmem:[#allocation5 + $0x50] sm:$0xf]
    %v141 = vld [vmem:[#allocation5 + $0x54] sm:$0xf]
    %v142 = vld [vmem:[#allocation5 + $0x58] sm:$0xf]
    %v143 = vld [vmem:[#allocation5 + $0x5c] sm:$0xf]
    %v144 = vld [vmem:[#allocation5 + $0x60] sm:$0xf]
    %v145 = vld [vmem:[#allocation5 + $0x64] sm:$0xf]
    %v146 = vld [vmem:[#allocation5 + $0x68] sm:$0xf]
    %v147 = vld [vmem:[#allocation5 + $0x6c] sm:$0xf]
    %v148 = vld [vmem:[#allocation5 + $0x70] sm:$0xf]
    %v149 = vld [vmem:[#allocation5 + $0x74] sm:$0xf]
    %v150 = vld [vmem:[#allocation5 + $0x78] sm:$0xf]
    %v151 = vld [vmem:[#allocation5 + $0x7c] sm:$0xf]
    %v152 = vld [vmem:[#allocation5 + $0x80] sm:$0xf]
    %v153 = vld [vmem:[#allocation5 + $0x84] sm:$0xf]
    %v154 = vld [vmem:[#allocation5 + $0x88] sm:$0xf]
    %v155 = vld [vmem:[#allocation5 + $0x8c] sm:$0xf]
    %v156 = vld [vmem:[#allocation5 + $0x90] sm:$0xf]
    %v157 = vld [vmem:[#allocation5 + $0x94] sm:$0xf]
    %v158 = vld [vmem:[#allocation5 + $0x98] sm:$0xf]
    %v159 = vld [vmem:[#allocation5 + $0x9c] sm:$0xf]
    %v160 = vld [vmem:[#allocation5 + $0xa0] sm:$0xf]
    %v161 = vld [vmem:[#allocation5 + $0xa4] sm:$0xf]
    %v162 = vld [vmem:[#allocation5 + $0xa8] sm:$0xf]
    %v163 = vld [vmem:[#allocation5 + $0xac] sm:$0xf]
    %v164 = vld [vmem:[#allocation5 + $0xb0] sm:$0xf]
    %v165 = vld [vmem:[#allocation5 + $0xb4] sm:$0xf]
    %v166 = vld [vmem:[#allocation5 + $0xb8] sm:$0xf]
    %v167 = vld [vmem:[#allocation5 + $0xbc] sm:$0xf]
    %v168 = vld [vmem:[#allocation5 + $0xc0] sm:$0xf]
    %v169 = vld [vmem:[#allocation5 + $0xc4] sm:$0xf]
    %v170 = vld [vmem:[#allocation5 + $0xc8] sm:$0xf]
    %v171 = vld [vmem:[#allocation5 + $0xcc] sm:$0xf]
    %v172 = vld [vmem:[#allocation5 + $0xd0] sm:$0xf]
    %v173 = vld [vmem:[#allocation5 + $0xd4] sm:$0xf]
    %v174 = vld [vmem:[#allocation5 + $0xd8] sm:$0xf]
    %v175 = vld [vmem:[#allocation5 + $0xdc] sm:$0xf]
    %v176 = vld [vmem:[#allocation5 + $0xe0] sm:$0xf]
    %v177 = vld [vmem:[#allocation5 + $0xe4] sm:$0xf]
    %v178 = vld [vmem:[#allocation5 + $0xe8] sm:$0xf]
    %v179 = vld [vmem:[#allocation5 + $0xec] sm:$0xf]
    %v180 = vld [vmem:[#allocation5 + $0xf0] sm:$0xf]
    %v181 = vld [vmem:[#allocation5 + $0xf4] sm:$0xf]
    %v182 = vld [vmem:[#allocation5 + $0xf8] sm:$0xf]
    %v183 = vld [vmem:[#allocation5 + $0xfc] sm:$0xf]
    %v184 = vld [vmem:[#allocation5 + $0x100] sm:$0xf]
    %v185 = vld [vmem:[#allocation5 + $0x104] sm:$0xf]
    %v186 = vld [vmem:[#allocation5 + $0x108] sm:$0xf]
    %v187 = vld [vmem:[#allocation5 + $0x10c] sm:$0xf]
    %v188 = vld [vmem:[#allocation5 + $0x110] sm:$0xf]
    %v189 = vld [vmem:[#allocation5 + $0x114] sm:$0xf]
    %v190 = vld [vmem:[#allocation5 + $0x118] sm:$0xf]
    %v191 = vld [vmem:[#allocation5 + $0x11c] sm:$0xf]
    %v192 = vld [vmem:[#allocation5 + $0x120] sm:$0xf]
    %v193 = vld [vmem:[#allocation5 + $0x124] sm:$0xf]
    %v194 = vld [vmem:[#allocation5 + $0x128] sm:$0xf]
    %v195 = vld [vmem:[#allocation5 + $0x12c] sm:$0xf]
    %v196 = vld [vmem:[#allocation5 + $0x130] sm:$0xf]
    %v197 = vld [vmem:[#allocation5 + $0x134] sm:$0xf]
    %v198 = vld [vmem:[#allocation5 + $0x138] sm:$0xf]
    %v199 = vld [vmem:[#allocation5 + $0x13c] sm:$0xf]
    %v200 = vld [vmem:[#allocation5 + $0x140] sm:$0xf]
    %v201 = vld [vmem:[#allocation5 + $0x144] sm:$0xf]
    %v202 = vld [vmem:[#allocation5 + $0x148] sm:$0xf]
    %v203 = vld [vmem:[#allocation5 + $0x14c] sm:$0xf]
    %v204 = vld [vmem:[#allocation5 + $0x150] sm:$0xf]
    %v205 = vld [vmem:[#allocation5 + $0x154] sm:$0xf]
    %v206 = vld [vmem:[#allocation5 + $0x158] sm:$0xf]
    %v207 = vld [vmem:[#allocation5 + $0x15c] sm:$0xf]
    %v208 = vld [vmem:[#allocation5 + $0x160] sm:$0xf]
    %v209 = vld [vmem:[#allocation5 + $0x164] sm:$0xf]
    %v210 = vld [vmem:[#allocation5 + $0x168] sm:$0xf]
    %v211 = vld [vmem:[#allocation5 + $0x16c] sm:$0xf]
    %v212 = vld [vmem:[#allocation5 + $0x170] sm:$0xf]
    %v213 = vld [vmem:[#allocation5 + $0x174] sm:$0xf]
    %v214 = vld [vmem:[#allocation5 + $0x178] sm:$0xf]
    %v215 = vld [vmem:[#allocation5 + $0x17c] sm:$0xf]
    %v219 = vunpack.c.l.b16 %v117
    %v220 = vunpack.c.h.b16 %v117
    %v221 = vunpack.c.l.b16 %v118
    %v222 = vunpack.c.h.b16 %v118
    %v223 = vunpack.c.l.b16 %v119
    %v224 = vunpack.c.h.b16 %v119
    %v225 = vpack.c.b16 %v219, %v219
    %v226 = vpack.c.b16 %v220, %v220
    %v227 = vpack.c.b16 %v221, %v221
    %v228 = vpack.c.b16 %v222, %v222
    %v229 = vpack.c.b16 %v223, %v223
    %v230 = vpack.c.b16 %v224, %v224
    %v333 = vunpack.c.l.b16 %v120
    %v334 = vunpack.c.l.b16 %v121
    %v335 = vunpack.c.l.b16 %v122
    %v336 = vunpack.c.l.b16 %v123
    %v337 = vunpack.c.l.b16 %v124
    %v338 = vunpack.c.l.b16 %v125
    %v339 = vunpack.c.l.b16 %v126
    %v340 = vunpack.c.l.b16 %v127
    %v341 = vunpack.c.l.b16 %v128
    %v342 = vunpack.c.l.b16 %v129
    %v343 = vunpack.c.l.b16 %v130
    %v344 = vunpack.c.l.b16 %v131
    %v345 = vunpack.c.l.b16 %v132
    %v346 = vunpack.c.l.b16 %v133
    %v347 = vunpack.c.l.b16 %v134
    %v348 = vunpack.c.l.b16 %v135
    %v349 = vunpack.c.l.b16 %v136
    %v350 = vunpack.c.l.b16 %v137
    %v351 = vunpack.c.l.b16 %v138
    %v352 = vunpack.c.l.b16 %v139
    %v353 = vunpack.c.l.b16 %v140
    %v354 = vunpack.c.l.b16 %v141
    %v355 = vunpack.c.l.b16 %v142
    %v356 = vunpack.c.l.b16 %v143
    %v357 = vunpack.c.l.b16 %v144
    %v358 = vunpack.c.l.b16 %v145
    %v359 = vunpack.c.l.b16 %v146
    %v360 = vunpack.c.l.b16 %v147
    %v361 = vunpack.c.l.b16 %v148
    %v362 = vunpack.c.l.b16 %v149
    %v363 = vunpack.c.l.b16 %v150
    %v364 = vunpack.c.l.b16 %v151
    %v365 = vunpack.c.l.b16 %v152
    %v366 = vunpack.c.l.b16 %v153
    %v367 = vunpack.c.l.b16 %v154
    %v368 = vunpack.c.l.b16 %v155
    %v369 = vunpack.c.l.b16 %v156
    %v370 = vunpack.c.l.b16 %v157
    %v371 = vunpack.c.l.b16 %v158
    %v372 = vunpack.c.l.b16 %v159
    %v373 = vunpack.c.l.b16 %v160
    %v374 = vunpack.c.l.b16 %v161
    %v375 = vunpack.c.l.b16 %v162
    %v376 = vunpack.c.l.b16 %v163
    %v377 = vunpack.c.l.b16 %v164
    %v378 = vunpack.c.l.b16 %v165
    %v379 = vunpack.c.l.b16 %v166
    %v380 = vunpack.c.l.b16 %v167
    %v381 = vunpack.c.l.b16 %v168
    %v382 = vunpack.c.l.b16 %v169
    %v383 = vunpack.c.l.b16 %v170
    %v384 = vunpack.c.l.b16 %v171
    %v385 = vunpack.c.l.b16 %v172
    %v386 = vunpack.c.l.b16 %v173
    %v387 = vunpack.c.l.b16 %v174
    %v388 = vunpack.c.l.b16 %v175
    %v389 = vunpack.c.l.b16 %v176
    %v390 = vunpack.c.l.b16 %v177
    %v391 = vunpack.c.l.b16 %v178
    %v392 = vunpack.c.l.b16 %v179
    %v393 = vunpack.c.l.b16 %v180
    %v394 = vunpack.c.l.b16 %v181
    %v395 = vunpack.c.l.b16 %v182
    %v396 = vunpack.c.l.b16 %v183
    %v397 = vunpack.c.l.b16 %v184
    %v398 = vunpack.c.l.b16 %v185
    %v399 = vunpack.c.l.b16 %v186
    %v400 = vunpack.c.l.b16 %v187
    %v401 = vunpack.c.l.b16 %v188
    %v402 = vunpack.c.l.b16 %v189
    %v403 = vunpack.c.l.b16 %v190
    %v404 = vunpack.c.l.b16 %v191
    %v405 = vunpack.c.l.b16 %v192
    %v406 = vunpack.c.l.b16 %v193
    %v407 = vunpack.c.l.b16 %v194
    %v408 = vunpack.c.l.b16 %v195
    %v409 = vunpack.c.l.b16 %v196
    %v410 = vunpack.c.l.b16 %v197
    %v411 = vunpack.c.l.b16 %v198
    %v412 = vunpack.c.l.b16 %v199
    %v413 = vunpack.c.l.b16 %v200
    %v414 = vunpack.c.l.b16 %v201
    %v415 = vunpack.c.l.b16 %v202
    %v416 = vunpack.c.l.b16 %v203
    %v417 = vunpack.c.l.b16 %v204
    %v418 = vunpack.c.l.b16 %v205
    %v419 = vunpack.c.l.b16 %v206
    %v420 = vunpack.c.l.b16 %v207
    %v421 = vunpack.c.l.b16 %v208
    %v422 = vunpack.c.l.b16 %v209
    %v423 = vunpack.c.l.b16 %v210
    %v424 = vunpack.c.l.b16 %v211
    %v425 = vunpack.c.l.b16 %v212
    %v426 = vunpack.c.l.b16 %v213
    %v427 = vunpack.c.l.b16 %v214
    %v428 = vunpack.c.l.b16 %v215
    %v429 = vpack.c.b16 %v334, %v333
    %v430 = vpack.c.b16 %v336, %v335
    %v431 = vpack.c.b16 %v338, %v337
    %v432 = vpack.c.b16 %v340, %v339
    %v433 = vpack.c.b16 %v342, %v341
    %v434 = vpack.c.b16 %v344, %v343
    %v435 = vpack.c.b16 %v346, %v345
    %v436 = vpack.c.b16 %v348, %v347
    %v437 = vpack.c.b16 %v350, %v349
    %v438 = vpack.c.b16 %v352, %v351
    %v439 = vpack.c.b16 %v354, %v353
    %v440 = vpack.c.b16 %v356, %v355
    %v441 = vpack.c.b16 %v358, %v357
    %v442 = vpack.c.b16 %v360, %v359
    %v443 = vpack.c.b16 %v362, %v361
    %v444 = vpack.c.b16 %v364, %v363
    %v445 = vpack.c.b16 %v366, %v365
    %v446 = vpack.c.b16 %v368, %v367
    %v447 = vpack.c.b16 %v370, %v369
    %v448 = vpack.c.b16 %v372, %v371
    %v449 = vpack.c.b16 %v374, %v373
    %v450 = vpack.c.b16 %v376, %v375
    %v451 = vpack.c.b16 %v378, %v377
    %v452 = vpack.c.b16 %v380, %v379
    %v453 = vpack.c.b16 %v382, %v381
    %v454 = vpack.c.b16 %v384, %v383
    %v455 = vpack.c.b16 %v386, %v385
    %v456 = vpack.c.b16 %v388, %v387
    %v457 = vpack.c.b16 %v390, %v389
    %v458 = vpack.c.b16 %v392, %v391
    %v459 = vpack.c.b16 %v394, %v393
    %v460 = vpack.c.b16 %v396, %v395
    %v461 = vpack.c.b16 %v398, %v397
    %v462 = vpack.c.b16 %v400, %v399
    %v463 = vpack.c.b16 %v402, %v401
    %v464 = vpack.c.b16 %v404, %v403
    %v465 = vpack.c.b16 %v406, %v405
    %v466 = vpack.c.b16 %v408, %v407
    %v467 = vpack.c.b16 %v410, %v409
    %v468 = vpack.c.b16 %v412, %v411
    %v469 = vpack.c.b16 %v414, %v413
    %v470 = vpack.c.b16 %v416, %v415
    %v471 = vpack.c.b16 %v418, %v417
    %v472 = vpack.c.b16 %v420, %v419
    %v473 = vpack.c.b16 %v422, %v421
    %v474 = vpack.c.b16 %v424, %v423
    %v475 = vpack.c.b16 %v426, %v425
    %v476 = vpack.c.b16 %v428, %v427
    %525 = vmatprep.subr.bf16.mxu0 0
    %526 = vmatpush1.bf16.msra.mxu0 %v436
    %527 = vmatprep.subr.bf16.mxu0 0
    %528 = vmatpush1.bf16.msra.mxu0 %v435
    %529 = vmatprep.subr.bf16.mxu0 0
    %530 = vmatpush1.bf16.msra.mxu0 %v434
    %531 = vmatprep.subr.bf16.mxu0 0
    %532 = vmatpush1.bf16.msra.mxu0 %v433
    %533 = vmatprep.subr.bf16.mxu0 0
    %534 = vmatpush1.bf16.msra.mxu0 %v432
    %535 = vmatprep.subr.bf16.mxu0 0
    %536 = vmatpush1.bf16.msra.mxu0 %v431
    %537 = vmatprep.subr.bf16.mxu0 0
    %538 = vmatpush1.bf16.msra.mxu0 %v430
    %539 = vmatprep.subr.bf16.mxu0 0
    %540 = vmatpush1.bf16.msra.mxu0 %v429
    %541 = vmatprep.subr.bf16.mxu0 0
    %542 = vmatpush2.bf16.msra.mxu0 %v444
    %543 = vmatprep.subr.bf16.mxu0 0
    %544 = vmatpush2.bf16.msra.mxu0 %v443
    %545 = vmatprep.subr.bf16.mxu0 0
    %546 = vmatpush2.bf16.msra.mxu0 %v442
    %547 = vmatprep.subr.bf16.mxu0 0
    %548 = vmatpush2.bf16.msra.mxu0 %v441
    %549 = vmatprep.subr.bf16.mxu0 0
    %550 = vmatpush2.bf16.msra.mxu0 %v440
    %551 = vmatprep.subr.bf16.mxu0 0
    %552 = vmatpush2.bf16.msra.mxu0 %v439
    %553 = vmatprep.subr.bf16.mxu0 0
    %554 = vmatpush2.bf16.msra.mxu0 %v438
    %555 = vmatprep.subr.bf16.mxu0 0
    %556 = vmatpush2.bf16.msra.mxu0 %v437
    %557 = vmatprep.mubr.bf16.mxu0 %v226
    %558 = vmatmul.mubr.bf16.gmra.mxu0 %v225
    %v559 = vpop.f32.mrf.mxu0
    %v560 = vadd.f32 0.0, %v559
    %v561 = vpop.f32.mrf.mxu0
    %v562 = vpop.f32.mrf.mxu0
    %v563 = vpop.f32.mrf.mxu0
    %564 = vdwg.mxu0
    %565 = vmatprep.subr.bf16.mxu0 0
    %566 = vmatpush1.bf16.msra.mxu0 %v452
    %567 = vmatprep.subr.bf16.mxu0 0
    %568 = vmatpush1.bf16.msra.mxu0 %v451
    %569 = vmatprep.subr.bf16.mxu0 0
    %570 = vmatpush1.bf16.msra.mxu0 %v450
    %571 = vmatprep.subr.bf16.mxu0 0
    %572 = vmatpush1.bf16.msra.mxu0 %v449
    %573 = vmatprep.subr.bf16.mxu0 0
    %574 = vmatpush1.bf16.msra.mxu0 %v448
    %575 = vmatprep.subr.bf16.mxu0 0
    %576 = vmatpush1.bf16.msra.mxu0 %v447
    %577 = vmatprep.subr.bf16.mxu0 0
    %578 = vmatpush1.bf16.msra.mxu0 %v446
    %579 = vmatprep.subr.bf16.mxu0 0
    %580 = vmatpush1.bf16.msra.mxu0 %v445
    %581 = vmatprep.subr.bf16.mxu0 0
    %582 = vmatpush2.bf16.msra.mxu0 %v460
    %583 = vmatprep.subr.bf16.mxu0 0
    %584 = vmatpush2.bf16.msra.mxu0 %v459
    %585 = vmatprep.subr.bf16.mxu0 0
    %586 = vmatpush2.bf16.msra.mxu0 %v458
    %587 = vmatprep.subr.bf16.mxu0 0
    %588 = vmatpush2.bf16.msra.mxu0 %v457
    %589 = vmatprep.subr.bf16.mxu0 0
    %590 = vmatpush2.bf16.msra.mxu0 %v456
    %591 = vmatprep.subr.bf16.mxu0 0
    %592 = vmatpush2.bf16.msra.mxu0 %v455
    %593 = vmatprep.subr.bf16.mxu0 0
    %594 = vmatpush2.bf16.msra.mxu0 %v454
    %595 = vmatprep.subr.bf16.mxu0 0
    %596 = vmatpush2.bf16.msra.mxu0 %v453
    %597 = vmatprep.mubr.bf16.mxu0 %v228
    %598 = vmatmul.mubr.bf16.gmra.mxu0 %v227
    %v599 = vpop.f32.mrf.mxu0
    %v600 = vadd.f32 %v560, %v599
    %v601 = vpop.f32.mrf.mxu0
    %v602 = vpop.f32.mrf.mxu0
    %v603 = vpop.f32.mrf.mxu0
    %604 = vdwg.mxu0
    %605 = vmatprep.subr.bf16.mxu0 0
    %606 = vmatpush1.bf16.msra.mxu0 %v468
    %607 = vmatprep.subr.bf16.mxu0 0
    %608 = vmatpush1.bf16.msra.mxu0 %v467
    %609 = vmatprep.subr.bf16.mxu0 0
    %610 = vmatpush1.bf16.msra.mxu0 %v466
    %611 = vmatprep.subr.bf16.mxu0 0
    %612 = vmatpush1.bf16.msra.mxu0 %v465
    %613 = vmatprep.subr.bf16.mxu0 0
    %614 = vmatpush1.bf16.msra.mxu0 %v464
    %615 = vmatprep.subr.bf16.mxu0 0
    %616 = vmatpush1.bf16.msra.mxu0 %v463
    %617 = vmatprep.subr.bf16.mxu0 0
    %618 = vmatpush1.bf16.msra.mxu0 %v462
    %619 = vmatprep.subr.bf16.mxu0 0
    %620 = vmatpush1.bf16.msra.mxu0 %v461
    %621 = vmatprep.subr.bf16.mxu0 0
    %622 = vmatpush2.bf16.msra.mxu0 %v476
    %623 = vmatprep.subr.bf16.mxu0 0
    %624 = vmatpush2.bf16.msra.mxu0 %v475
    %625 = vmatprep.subr.bf16.mxu0 0
    %626 = vmatpush2.bf16.msra.mxu0 %v474
    %627 = vmatprep.subr.bf16.mxu0 0
    %628 = vmatpush2.bf16.msra.mxu0 %v473
    %629 = vmatprep.subr.bf16.mxu0 0
    %630 = vmatpush2.bf16.msra.mxu0 %v472
    %631 = vmatprep.subr.bf16.mxu0 0
    %632 = vmatpush2.bf16.msra.mxu0 %v471
    %633 = vmatprep.subr.bf16.mxu0 0
    %634 = vmatpush2.bf16.msra.mxu0 %v470
    %635 = vmatprep.subr.bf16.mxu0 0
    %636 = vmatpush2.bf16.msra.mxu0 %v469
    %637 = vmatprep.mubr.bf16.mxu0 %v230
    %638 = vmatmul.mubr.bf16.gmra.mxu0 %v229
    %v639 = vpop.f32.mrf.mxu0
    %v640 = vadd.f32 %v600, %v639
    %v641 = vpop.f32.mrf.mxu0
    %v642 = vpop.f32.mrf.mxu0
    %v643 = vpop.f32.mrf.mxu0
    %644 = vdwg.mxu0
    %v645 = vmax.f32 %v640, 0.0
    %v646 = vpack.c.bf16 %v645, %v645
    %v647 = vld [vmem:[#allocation7] sm:$0xff]
    %v648 = vld [vmem:[#allocation7 + $0x8] sm:$0xff]
    %v649 = vld [vmem:[#allocation7 + $0x10] sm:$0xff]
    %v650 = vld [vmem:[#allocation7 + $0x18] sm:$0xff]
    %v651 = vld [vmem:[#allocation7 + $0x20] sm:$0xff]
    %v652 = vld [vmem:[#allocation7 + $0x28] sm:$0xff]
    %v653 = vld [vmem:[#allocation7 + $0x30] sm:$0xff]
    %v654 = vld [vmem:[#allocation7 + $0x38] sm:$0xff]
    %v655 = vld [vmem:[#allocation7 + $0x40] sm:$0xff]
    %v656 = vld [vmem:[#allocation7 + $0x48] sm:$0xff]
    %v657 = vld [vmem:[#allocation7 + $0x50] sm:$0xff]
    %v658 = vld [vmem:[#allocation7 + $0x58] sm:$0xff]
    %v659 = vld [vmem:[#allocation7 + $0x60] sm:$0xff]
    %v660 = vld [vmem:[#allocation7 + $0x68] sm:$0xff]
    %v661 = vld [vmem:[#allocation7 + $0x70] sm:$0xff]
    %v662 = vld [vmem:[#allocation7 + $0x78] sm:$0xff]
    %v663 = vld [vmem:[#allocation7 + $0x80] sm:$0xff]
    %v664 = vld [vmem:[#allocation7 + $0x88] sm:$0xff]
    %v665 = vld [vmem:[#allocation7 + $0x90] sm:$0xff]
    %v666 = vld [vmem:[#allocation7 + $0x98] sm:$0xff]
    %v667 = vld [vmem:[#allocation7 + $0xa0] sm:$0xff]
    %v668 = vld [vmem:[#allocation7 + $0xa8] sm:$0xff]
    %v669 = vld [vmem:[#allocation7 + $0xb0] sm:$0xff]
    %v670 = vld [vmem:[#allocation7 + $0xb8] sm:$0xff]
    %v671 = vld [vmem:[#allocation7 + $0xc0] sm:$0xff]
    %v672 = vld [vmem:[#allocation7 + $0xc8] sm:$0xff]
    %v673 = vld [vmem:[#allocation7 + $0xd0] sm:$0xff]
    %v674 = vld [vmem:[#allocation7 + $0xd8] sm:$0xff]
    %v675 = vld [vmem:[#allocation7 + $0xe0] sm:$0xff]
    %v676 = vld [vmem:[#allocation7 + $0xe8] sm:$0xff]
    %v677 = vld [vmem:[#allocation7 + $0xf0] sm:$0xff]
    %v678 = vld [vmem:[#allocation7 + $0xf8] sm:$0xff]
    %v679 = vld [vmem:[#allocation7 + $0x100] sm:$0xff]
    %v680 = vld [vmem:[#allocation7 + $0x108] sm:$0xff]
    %v681 = vld [vmem:[#allocation7 + $0x110] sm:$0xff]
    %v682 = vld [vmem:[#allocation7 + $0x118] sm:$0xff]
    %v683 = vld [vmem:[#allocation7 + $0x120] sm:$0xff]
    %v684 = vld [vmem:[#allocation7 + $0x128] sm:$0xff]
    %v685 = vld [vmem:[#allocation7 + $0x130] sm:$0xff]
    %v686 = vld [vmem:[#allocation7 + $0x138] sm:$0xff]
    %v687 = vld [vmem:[#allocation7 + $0x140] sm:$0xff]
    %v688 = vld [vmem:[#allocation7 + $0x148] sm:$0xff]
    %v689 = vld [vmem:[#allocation7 + $0x150] sm:$0xff]
    %v690 = vld [vmem:[#allocation7 + $0x158] sm:$0xff]
    %v691 = vld [vmem:[#allocation7 + $0x160] sm:$0xff]
    %v692 = vld [vmem:[#allocation7 + $0x168] sm:$0xff]
    %v693 = vld [vmem:[#allocation7 + $0x170] sm:$0xff]
    %v694 = vld [vmem:[#allocation7 + $0x178] sm:$0xff]
    %v743 = vunpack.c.l.b16 %v647
    %v744 = vunpack.c.h.b16 %v647
    %v745 = vunpack.c.l.b16 %v648
    %v746 = vunpack.c.h.b16 %v648
    %v747 = vunpack.c.l.b16 %v649
    %v748 = vunpack.c.h.b16 %v649
    %v749 = vunpack.c.l.b16 %v650
    %v750 = vunpack.c.h.b16 %v650
    %v751 = vunpack.c.l.b16 %v651
    %v752 = vunpack.c.h.b16 %v651
    %v753 = vunpack.c.l.b16 %v652
    %v754 = vunpack.c.h.b16 %v652
    %v755 = vunpack.c.l.b16 %v653
    %v756 = vunpack.c.h.b16 %v653
    %v757 = vunpack.c.l.b16 %v654
    %v758 = vunpack.c.h.b16 %v654
    %v759 = vunpack.c.l.b16 %v655
    %v760 = vunpack.c.h.b16 %v655
    %v761 = vunpack.c.l.b16 %v656
    %v762 = vunpack.c.h.b16 %v656
    %v763 = vunpack.c.l.b16 %v657
    %v764 = vunpack.c.h.b16 %v657
    %v765 = vunpack.c.l.b16 %v658
    %v766 = vunpack.c.h.b16 %v658
    %v767 = vunpack.c.l.b16 %v659
    %v768 = vunpack.c.h.b16 %v659
    %v769 = vunpack.c.l.b16 %v660
    %v770 = vunpack.c.h.b16 %v660
    %v771 = vunpack.c.l.b16 %v661
    %v772 = vunpack.c.h.b16 %v661
    %v773 = vunpack.c.l.b16 %v662
    %v774 = vunpack.c.h.b16 %v662
    %v775 = vunpack.c.l.b16 %v663
    %v776 = vunpack.c.h.b16 %v663
    %v777 = vunpack.c.l.b16 %v664
    %v778 = vunpack.c.h.b16 %v664
    %v779 = vunpack.c.l.b16 %v665
    %v780 = vunpack.c.h.b16 %v665
    %v781 = vunpack.c.l.b16 %v666
    %v782 = vunpack.c.h.b16 %v666
    %v783 = vunpack.c.l.b16 %v667
    %v784 = vunpack.c.h.b16 %v667
    %v785 = vunpack.c.l.b16 %v668
    %v786 = vunpack.c.h.b16 %v668
    %v787 = vunpack.c.l.b16 %v669
    %v788 = vunpack.c.h.b16 %v669
    %v789 = vunpack.c.l.b16 %v670
    %v790 = vunpack.c.h.b16 %v670
    %v791 = vunpack.c.l.b16 %v671
    %v792 = vunpack.c.h.b16 %v671
    %v793 = vunpack.c.l.b16 %v672
    %v794 = vunpack.c.h.b16 %v672
    %v795 = vunpack.c.l.b16 %v673
    %v796 = vunpack.c.h.b16 %v673
    %v797 = vunpack.c.l.b16 %v674
    %v798 = vunpack.c.h.b16 %v674
    %v799 = vunpack.c.l.b16 %v675
    %v800 = vunpack.c.h.b16 %v675
    %v801 = vunpack.c.l.b16 %v676
    %v802 = vunpack.c.h.b16 %v676
    %v803 = vunpack.c.l.b16 %v677
    %v804 = vunpack.c.h.b16 %v677
    %v805 = vunpack.c.l.b16 %v678
    %v806 = vunpack.c.h.b16 %v678
    %v807 = vunpack.c.l.b16 %v679
    %v808 = vunpack.c.h.b16 %v679
    %v809 = vunpack.c.l.b16 %v680
    %v810 = vunpack.c.h.b16 %v680
    %v811 = vunpack.c.l.b16 %v681
    %v812 = vunpack.c.h.b16 %v681
    %v813 = vunpack.c.l.b16 %v682
    %v814 = vunpack.c.h.b16 %v682
    %v815 = vunpack.c.l.b16 %v683
    %v816 = vunpack.c.h.b16 %v683
    %v817 = vunpack.c.l.b16 %v684
    %v818 = vunpack.c.h.b16 %v684
    %v819 = vunpack.c.l.b16 %v685
    %v820 = vunpack.c.h.b16 %v685
    %v821 = vunpack.c.l.b16 %v686
    %v822 = vunpack.c.h.b16 %v686
    %v823 = vunpack.c.l.b16 %v687
    %v824 = vunpack.c.h.b16 %v687
    %v825 = vunpack.c.l.b16 %v688
    %v826 = vunpack.c.h.b16 %v688
    %v827 = vunpack.c.l.b16 %v689
    %v828 = vunpack.c.h.b16 %v689
    %v829 = vunpack.c.l.b16 %v690
    %v830 = vunpack.c.h.b16 %v690
    %v831 = vunpack.c.l.b16 %v691
    %v832 = vunpack.c.h.b16 %v691
    %v833 = vunpack.c.l.b16 %v692
    %v834 = vunpack.c.h.b16 %v692
    %v835 = vunpack.c.l.b16 %v693
    %v836 = vunpack.c.h.b16 %v693
    %v837 = vunpack.c.l.b16 %v694
    %v838 = vunpack.c.h.b16 %v694
    %v839 = vpack.c.b16 %v749, %v743
    %v840 = vpack.c.b16 %v750, %v744
    %v841 = vpack.c.b16 %v751, %v745
    %v842 = vpack.c.b16 %v752, %v746
    %v843 = vpack.c.b16 %v753, %v747
    %v844 = vpack.c.b16 %v754, %v748
    %v845 = vpack.c.b16 %v761, %v755
    %v846 = vpack.c.b16 %v762, %v756
    %v847 = vpack.c.b16 %v763, %v757
    %v848 = vpack.c.b16 %v764, %v758
    %v849 = vpack.c.b16 %v765, %v759
    %v850 = vpack.c.b16 %v766, %v760
    %v851 = vpack.c.b16 %v773, %v767
    %v852 = vpack.c.b16 %v774, %v768
    %v853 = vpack.c.b16 %v775, %v769
    %v854 = vpack.c.b16 %v776, %v770
    %v855 = vpack.c.b16 %v777, %v771
    %v856 = vpack.c.b16 %v778, %v772
    %v857 = vpack.c.b16 %v785, %v779
    %v858 = vpack.c.b16 %v786, %v780
    %v859 = vpack.c.b16 %v787, %v781
    %v860 = vpack.c.b16 %v788, %v782
    %v861 = vpack.c.b16 %v789, %v783
    %v862 = vpack.c.b16 %v790, %v784
    %v863 = vpack.c.b16 %v797, %v791
    %v864 = vpack.c.b16 %v798, %v792
    %v865 = vpack.c.b16 %v799, %v793
    %v866 = vpack.c.b16 %v800, %v794
    %v867 = vpack.c.b16 %v801, %v795
    %v868 = vpack.c.b16 %v802, %v796
    %v869 = vpack.c.b16 %v809, %v803
    %v870 = vpack.c.b16 %v810, %v804
    %v871 = vpack.c.b16 %v811, %v805
    %v872 = vpack.c.b16 %v812, %v806
    %v873 = vpack.c.b16 %v813, %v807
    %v874 = vpack.c.b16 %v814, %v808
    %v875 = vpack.c.b16 %v821, %v815
    %v876 = vpack.c.b16 %v822, %v816
    %v877 = vpack.c.b16 %v823, %v817
    %v878 = vpack.c.b16 %v824, %v818
    %v879 = vpack.c.b16 %v825, %v819
    %v880 = vpack.c.b16 %v826, %v820
    %v881 = vpack.c.b16 %v833, %v827
    %v882 = vpack.c.b16 %v834, %v828
    %v883 = vpack.c.b16 %v835, %v829
    %v884 = vpack.c.b16 %v836, %v830
    %v885 = vpack.c.b16 %v837, %v831
    %v886 = vpack.c.b16 %v838, %v832
    %935 = vmatprep.subr.bf16.mxu0 %v882
    %936 = vmatpush1.bf16.msra.mxu0 %v881
    %937 = vmatprep.subr.bf16.mxu0 %v876
    %938 = vmatpush1.bf16.msra.mxu0 %v875
    %939 = vmatprep.subr.bf16.mxu0 %v870
    %940 = vmatpush1.bf16.msra.mxu0 %v869
    %941 = vmatprep.subr.bf16.mxu0 %v864
    %942 = vmatpush1.bf16.msra.mxu0 %v863
    %943 = vmatprep.subr.bf16.mxu0 %v858
    %944 = vmatpush1.bf16.msra.mxu0 %v857
    %945 = vmatprep.subr.bf16.mxu0 %v852
    %946 = vmatpush1.bf16.msra.mxu0 %v851
    %947 = vmatprep.subr.bf16.mxu0 %v846
    %948 = vmatpush1.bf16.msra.mxu0 %v845
    %949 = vmatprep.subr.bf16.mxu0 %v840
    %950 = vmatpush1.bf16.msra.mxu0 %v839
    %951 = vmatprep.subr.bf16.mxu0 0
    %952 = vmatpush2.bf16.msra.mxu0 0
    %953 = vmatprep.subr.bf16.mxu0 0
    %954 = vmatpush2.bf16.msra.mxu0 0
    %955 = vmatprep.subr.bf16.mxu0 0
    %956 = vmatpush2.bf16.msra.mxu0 0
    %957 = vmatprep.subr.bf16.mxu0 0
    %958 = vmatpush2.bf16.msra.mxu0 0
    %959 = vmatprep.subr.bf16.mxu0 0
    %960 = vmatpush2.bf16.msra.mxu0 0
    %961 = vmatprep.subr.bf16.mxu0 0
    %962 = vmatpush2.bf16.msra.mxu0 0
    %963 = vmatprep.subr.bf16.mxu0 0
    %964 = vmatpush2.bf16.msra.mxu0 0
    %965 = vmatprep.subr.bf16.mxu0 0
    %966 = vmatpush2.bf16.msra.mxu0 0
    %967 = vmatprep.mubr.bf16.mxu0 0
    %968 = vmatmul.mubr.bf16.gmra.mxu0 %v646
    %v969 = vpop.f32.mrf.mxu0
    %v970 = vadd.f32 0.0, %v969
    %v971 = vpop.f32.mrf.mxu0
    %v972 = vadd.f32 0.0, %v971
    %v973 = vpop.f32.mrf.mxu0
    %v974 = vpop.f32.mrf.mxu0
    %975 = vdwg.mxu0
    %976 = vmatprep.subr.bf16.mxu0 %v884
    %977 = vmatpush1.bf16.msra.mxu0 %v883
    %978 = vmatprep.subr.bf16.mxu0 %v878
    %979 = vmatpush1.bf16.msra.mxu0 %v877
    %980 = vmatprep.subr.bf16.mxu0 %v872
    %981 = vmatpush1.bf16.msra.mxu0 %v871
    %982 = vmatprep.subr.bf16.mxu0 %v866
    %983 = vmatpush1.bf16.msra.mxu0 %v865
    %984 = vmatprep.subr.bf16.mxu0 %v860
    %985 = vmatpush1.bf16.msra.mxu0 %v859
    %986 = vmatprep.subr.bf16.mxu0 %v854
    %987 = vmatpush1.bf16.msra.mxu0 %v853
    %988 = vmatprep.subr.bf16.mxu0 %v848
    %989 = vmatpush1.bf16.msra.mxu0 %v847
    %990 = vmatprep.subr.bf16.mxu0 %v842
    %991 = vmatpush1.bf16.msra.mxu0 %v841
    %992 = vmatprep.subr.bf16.mxu0 0
    %993 = vmatpush2.bf16.msra.mxu0 0
    %994 = vmatprep.subr.bf16.mxu0 0
    %995 = vmatpush2.bf16.msra.mxu0 0
    %996 = vmatprep.subr.bf16.mxu0 0
    %997 = vmatpush2.bf16.msra.mxu0 0
    %998 = vmatprep.subr.bf16.mxu0 0
    %999 = vmatpush2.bf16.msra.mxu0 0
    %1000 = vmatprep.subr.bf16.mxu0 0
    %1001 = vmatpush2.bf16.msra.mxu0 0
    %1002 = vmatprep.subr.bf16.mxu0 0
    %1003 = vmatpush2.bf16.msra.mxu0 0
    %1004 = vmatprep.subr.bf16.mxu0 0
    %1005 = vmatpush2.bf16.msra.mxu0 0
    %1006 = vmatprep.subr.bf16.mxu0 0
    %1007 = vmatpush2.bf16.msra.mxu0 0
    %1008 = vmatprep.mubr.bf16.mxu0 0
    %1009 = vmatmul.mubr.bf16.gmra.mxu0 %v646
    %v1010 = vpop.f32.mrf.mxu0
    %v1011 = vadd.f32 0.0, %v1010
    %v1012 = vpop.f32.mrf.mxu0
    %v1013 = vadd.f32 0.0, %v1012
    %v1014 = vpop.f32.mrf.mxu0
    %v1015 = vpop.f32.mrf.mxu0
    %1016 = vdwg.mxu0
    %1017 = vmatprep.subr.bf16.mxu0 %v886
    %1018 = vmatpush1.bf16.msra.mxu0 %v885
    %1019 = vmatprep.subr.bf16.mxu0 %v880
    %1020 = vmatpush1.bf16.msra.mxu0 %v879
    %1021 = vmatprep.subr.bf16.mxu0 %v874
    %1022 = vmatpush1.bf16.msra.mxu0 %v873
    %1023 = vmatprep.subr.bf16.mxu0 %v868
    %1024 = vmatpush1.bf16.msra.mxu0 %v867
    %1025 = vmatprep.subr.bf16.mxu0 %v862
    %1026 = vmatpush1.bf16.msra.mxu0 %v861
    %1027 = vmatprep.subr.bf16.mxu0 %v856
    %1028 = vmatpush1.bf16.msra.mxu0 %v855
    %1029 = vmatprep.subr.bf16.mxu0 %v850
    %1030 = vmatpush1.bf16.msra.mxu0 %v849
    %1031 = vmatprep.subr.bf16.mxu0 %v844
    %1032 = vmatpush1.bf16.msra.mxu0 %v843
    %1033 = vmatprep.subr.bf16.mxu0 0
    %1034 = vmatpush2.bf16.msra.mxu0 0
    %1035 = vmatprep.subr.bf16.mxu0 0
    %1036 = vmatpush2.bf16.msra.mxu0 0
    %1037 = vmatprep.subr.bf16.mxu0 0
    %1038 = vmatpush2.bf16.msra.mxu0 0
    %1039 = vmatprep.subr.bf16.mxu0 0
    %1040 = vmatpush2.bf16.msra.mxu0 0
    %1041 = vmatprep.subr.bf16.mxu0 0
    %1042 = vmatpush2.bf16.msra.mxu0 0
    %1043 = vmatprep.subr.bf16.mxu0 0
    %1044 = vmatpush2.bf16.msra.mxu0 0
    %1045 = vmatprep.subr.bf16.mxu0 0
    %1046 = vmatpush2.bf16.msra.mxu0 0
    %1047 = vmatprep.subr.bf16.mxu0 0
    %1048 = vmatpush2.bf16.msra.mxu0 0
    %1049 = vmatprep.mubr.bf16.mxu0 0
    %1050 = vmatmul.mubr.bf16.gmra.mxu0 %v646
    %v1051 = vpop.f32.mrf.mxu0
    %v1052 = vadd.f32 0.0, %v1051
    %v1053 = vpop.f32.mrf.mxu0
    %v1054 = vadd.f32 0.0, %v1053
    %v1055 = vpop.f32.mrf.mxu0
    %v1056 = vpop.f32.mrf.mxu0
    %1057 = vdwg.mxu0
    %v1058 = vunpack.c.l.bf16 %v117
    %v1059 = vunpack.c.h.bf16 %v117
    %v1060 = vunpack.c.l.bf16 %v118
    %v1061 = vunpack.c.h.bf16 %v118
    %v1062 = vunpack.c.l.bf16 %v119
    %v1063 = vunpack.c.h.bf16 %v119
    %v1064 = vadd.f32 %v1058, %v970
    %v1065 = vadd.f32 %v1059, %v972
    %v1066 = vadd.f32 %v1060, %v1011
    %v1067 = vadd.f32 %v1061, %v1013
    %v1068 = vadd.f32 %v1062, %v1052
    %v1069 = vadd.f32 %v1063, %v1054
    %v1070 = vpack.c.bf16 %v1064, %v1064
    %v1071 = vpack.c.bf16 %v1065, %v1065
    %v1072 = vpack.c.bf16 %v1066, %v1066
    %v1073 = vpack.c.bf16 %v1067, %v1067
    %v1074 = vpack.c.bf16 %v1068, %v1068
    %v1075 = vpack.c.bf16 %v1069, %v1069
    %v1076 = vld [vmem:[#allocation8] sm:$0xff]
    %v1077 = vld [vmem:[#allocation8 + $0x8] sm:$0xff]
    %v1078 = vld [vmem:[#allocation8 + $0x10] sm:$0xff]
    %v1079 = vld [vmem:[#allocation8 + $0x18] sm:$0xff]
    %v1080 = vld [vmem:[#allocation8 + $0x20] sm:$0xff]
    %v1081 = vld [vmem:[#allocation8 + $0x28] sm:$0xff]
    %v1082 = vld [vmem:[#allocation8 + $0x30] sm:$0xff]
    %v1083 = vld [vmem:[#allocation8 + $0x38] sm:$0xff]
    %v1084 = vld [vmem:[#allocation8 + $0x40] sm:$0xff]
    %v1085 = vld [vmem:[#allocation8 + $0x48] sm:$0xff]
    %v1086 = vld [vmem:[#allocation8 + $0x50] sm:$0xff]
    %v1087 = vld [vmem:[#allocation8 + $0x58] sm:$0xff]
    %v1088 = vld [vmem:[#allocation8 + $0x60] sm:$0xff]
    %v1089 = vld [vmem:[#allocation8 + $0x68] sm:$0xff]
    %v1090 = vld [vmem:[#allocation8 + $0x70] sm:$0xff]
    %v1091 = vld [vmem:[#allocation8 + $0x78] sm:$0xff]
    %v1092 = vld [vmem:[#allocation8 + $0x80] sm:$0xff]
    %v1093 = vld [vmem:[#allocation8 + $0x88] sm:$0xff]
    %v1094 = vld [vmem:[#allocation8 + $0x90] sm:$0xff]
    %v1095 = vld [vmem:[#allocation8 + $0x98] sm:$0xff]
    %v1096 = vld [vmem:[#allocation8 + $0xa0] sm:$0xff]
    %v1097 = vld [vmem:[#allocation8 + $0xa8] sm:$0xff]
    %v1098 = vld [vmem:[#allocation8 + $0xb0] sm:$0xff]
    %v1099 = vld [vmem:[#allocation8 + $0xb8] sm:$0xff]
    %v1100 = vld [vmem:[#allocation8 + $0xc0] sm:$0xff]
    %v1101 = vld [vmem:[#allocation8 + $0xc8] sm:$0xff]
    %v1102 = vld [vmem:[#allocation8 + $0xd0] sm:$0xff]
    %v1103 = vld [vmem:[#allocation8 + $0xd8] sm:$0xff]
    %v1104 = vld [vmem:[#allocation8 + $0xe0] sm:$0xff]
    %v1105 = vld [vmem:[#allocation8 + $0xe8] sm:$0xff]
    %v1106 = vld [vmem:[#allocation8 + $0xf0] sm:$0xff]
    %v1107 = vld [vmem:[#allocation8 + $0xf8] sm:$0xff]
    %v1108 = vld [vmem:[#allocation8 + $0x100] sm:$0xff]
    %v1109 = vld [vmem:[#allocation8 + $0x108] sm:$0xff]
    %v1110 = vld [vmem:[#allocation8 + $0x110] sm:$0xff]
    %v1111 = vld [vmem:[#allocation8 + $0x118] sm:$0xff]
    %v1112 = vld [vmem:[#allocation8 + $0x120] sm:$0xff]
    %v1113 = vld [vmem:[#allocation8 + $0x128] sm:$0xff]
    %v1114 = vld [vmem:[#allocation8 + $0x130] sm:$0xff]
    %v1115 = vld [vmem:[#allocation8 + $0x138] sm:$0xff]
    %v1116 = vld [vmem:[#allocation8 + $0x140] sm:$0xff]
    %v1117 = vld [vmem:[#allocation8 + $0x148] sm:$0xff]
    %v1118 = vld [vmem:[#allocation8 + $0x150] sm:$0xff]
    %v1119 = vld [vmem:[#allocation8 + $0x158] sm:$0xff]
    %v1120 = vld [vmem:[#allocation8 + $0x160] sm:$0xff]
    %v1121 = vld [vmem:[#allocation8 + $0x168] sm:$0xff]
    %v1122 = vld [vmem:[#allocation8 + $0x170] sm:$0xff]
    %v1123 = vld [vmem:[#allocation8 + $0x178] sm:$0xff]
    %v1124 = vld [vmem:[#allocation8 + $0x180] sm:$0xff]
    %v1125 = vld [vmem:[#allocation8 + $0x188] sm:$0xff]
    %v1126 = vld [vmem:[#allocation8 + $0x190] sm:$0xff]
    %v1127 = vld [vmem:[#allocation8 + $0x198] sm:$0xff]
    %v1128 = vld [vmem:[#allocation8 + $0x1a0] sm:$0xff]
    %v1129 = vld [vmem:[#allocation8 + $0x1a8] sm:$0xff]
    %v1130 = vld [vmem:[#allocation8 + $0x1b0] sm:$0xff]
    %v1131 = vld [vmem:[#allocation8 + $0x1b8] sm:$0xff]
    %v1132 = vld [vmem:[#allocation8 + $0x1c0] sm:$0xff]
    %v1133 = vld [vmem:[#allocation8 + $0x1c8] sm:$0xff]
    %v1134 = vld [vmem:[#allocation8 + $0x1d0] sm:$0xff]
    %v1135 = vld [vmem:[#allocation8 + $0x1d8] sm:$0xff]
    %v1136 = vld [vmem:[#allocation8 + $0x1e0] sm:$0xff]
    %v1137 = vld [vmem:[#allocation8 + $0x1e8] sm:$0xff]
    %v1138 = vld [vmem:[#allocation8 + $0x1f0] sm:$0xff]
    %v1139 = vld [vmem:[#allocation8 + $0x1f8] sm:$0xff]
    %v1140 = vld [vmem:[#allocation8 + $0x200] sm:$0xff]
    %v1141 = vld [vmem:[#allocation8 + $0x208] sm:$0xff]
    %v1142 = vld [vmem:[#allocation8 + $0x210] sm:$0xff]
    %v1143 = vld [vmem:[#allocation8 + $0x218] sm:$0xff]
    %v1144 = vld [vmem:[#allocation8 + $0x220] sm:$0xff]
    %v1145 = vld [vmem:[#allocation8 + $0x228] sm:$0xff]
    %v1146 = vld [vmem:[#allocation8 + $0x230] sm:$0xff]
    %v1147 = vld [vmem:[#allocation8 + $0x238] sm:$0xff]
    %v1148 = vld [vmem:[#allocation8 + $0x240] sm:$0xff]
    %v1149 = vld [vmem:[#allocation8 + $0x248] sm:$0xff]
    %v1150 = vld [vmem:[#allocation8 + $0x250] sm:$0xff]
    %v1151 = vld [vmem:[#allocation8 + $0x258] sm:$0xff]
    %v1152 = vld [vmem:[#allocation8 + $0x260] sm:$0xff]
    %v1153 = vld [vmem:[#allocation8 + $0x268] sm:$0xff]
    %v1154 = vld [vmem:[#allocation8 + $0x270] sm:$0xff]
    %v1155 = vld [vmem:[#allocation8 + $0x278] sm:$0xff]
    %v1156 = vld [vmem:[#allocation8 + $0x280] sm:$0xff]
    %v1157 = vld [vmem:[#allocation8 + $0x288] sm:$0xff]
    %v1158 = vld [vmem:[#allocation8 + $0x290] sm:$0xff]
    %v1159 = vld [vmem:[#allocation8 + $0x298] sm:$0xff]
    %v1160 = vld [vmem:[#allocation8 + $0x2a0] sm:$0xff]
    %v1161 = vld [vmem:[#allocation8 + $0x2a8] sm:$0xff]
    %v1162 = vld [vmem:[#allocation8 + $0x2b0] sm:$0xff]
    %v1163 = vld [vmem:[#allocation8 + $0x2b8] sm:$0xff]
    %v1164 = vld [vmem:[#allocation8 + $0x2c0] sm:$0xff]
    %v1165 = vld [vmem:[#allocation8 + $0x2c8] sm:$0xff]
    %v1166 = vld [vmem:[#allocation8 + $0x2d0] sm:$0xff]
    %v1167 = vld [vmem:[#allocation8 + $0x2d8] sm:$0xff]
    %v1168 = vld [vmem:[#allocation8 + $0x2e0] sm:$0xff]
    %v1169 = vld [vmem:[#allocation8 + $0x2e8] sm:$0xff]
    %v1170 = vld [vmem:[#allocation8 + $0x2f0] sm:$0xff]
    %v1171 = vld [vmem:[#allocation8 + $0x2f8] sm:$0xff]
    %v1172 = vld [vmem:[#allocation8 + $0x300] sm:$0xff]
    %v1173 = vld [vmem:[#allocation8 + $0x308] sm:$0xff]
    %v1174 = vld [vmem:[#allocation8 + $0x310] sm:$0xff]
    %v1175 = vld [vmem:[#allocation8 + $0x318] sm:$0xff]
    %v1176 = vld [vmem:[#allocation8 + $0x320] sm:$0xff]
    %v1177 = vld [vmem:[#allocation8 + $0x328] sm:$0xff]
    %v1178 = vld [vmem:[#allocation8 + $0x330] sm:$0xff]
    %v1179 = vld [vmem:[#allocation8 + $0x338] sm:$0xff]
    %v1180 = vld [vmem:[#allocation8 + $0x340] sm:$0xff]
    %v1181 = vld [vmem:[#allocation8 + $0x348] sm:$0xff]
    %v1182 = vld [vmem:[#allocation8 + $0x350] sm:$0xff]
    %v1183 = vld [vmem:[#allocation8 + $0x358] sm:$0xff]
    %v1184 = vld [vmem:[#allocation8 + $0x360] sm:$0xff]
    %v1185 = vld [vmem:[#allocation8 + $0x368] sm:$0xff]
    %v1186 = vld [vmem:[#allocation8 + $0x370] sm:$0xff]
    %v1187 = vld [vmem:[#allocation8 + $0x378] sm:$0xff]
    %v1188 = vld [vmem:[#allocation8 + $0x380] sm:$0xff]
    %v1189 = vld [vmem:[#allocation8 + $0x388] sm:$0xff]
    %v1190 = vld [vmem:[#allocation8 + $0x390] sm:$0xff]
    %v1191 = vld [vmem:[#allocation8 + $0x398] sm:$0xff]
    %v1192 = vld [vmem:[#allocation8 + $0x3a0] sm:$0xff]
    %v1193 = vld [vmem:[#allocation8 + $0x3a8] sm:$0xff]
    %v1194 = vld [vmem:[#allocation8 + $0x3b0] sm:$0xff]
    %v1195 = vld [vmem:[#allocation8 + $0x3b8] sm:$0xff]
    %v1196 = vld [vmem:[#allocation8 + $0x3c0] sm:$0xff]
    %v1197 = vld [vmem:[#allocation8 + $0x3c8] sm:$0xff]
    %v1198 = vld [vmem:[#allocation8 + $0x3d0] sm:$0xff]
    %v1199 = vld [vmem:[#allocation8 + $0x3d8] sm:$0xff]
    %v1200 = vld [vmem:[#allocation8 + $0x3e0] sm:$0xff]
    %v1201 = vld [vmem:[#allocation8 + $0x3e8] sm:$0xff]
    %v1202 = vld [vmem:[#allocation8 + $0x3f0] sm:$0xff]
    %v1203 = vld [vmem:[#allocation8 + $0x3f8] sm:$0xff]
    %v1204 = vld [vmem:[#allocation8 + $0x400] sm:$0xff]
    %v1205 = vld [vmem:[#allocation8 + $0x408] sm:$0xff]
    %v1206 = vld [vmem:[#allocation8 + $0x410] sm:$0xff]
    %v1207 = vld [vmem:[#allocation8 + $0x418] sm:$0xff]
    %v1208 = vld [vmem:[#allocation8 + $0x420] sm:$0xff]
    %v1209 = vld [vmem:[#allocation8 + $0x428] sm:$0xff]
    %v1210 = vld [vmem:[#allocation8 + $0x430] sm:$0xff]
    %v1211 = vld [vmem:[#allocation8 + $0x438] sm:$0xff]
    %v1212 = vld [vmem:[#allocation8 + $0x440] sm:$0xff]
    %v1213 = vld [vmem:[#allocation8 + $0x448] sm:$0xff]
    %v1214 = vld [vmem:[#allocation8 + $0x450] sm:$0xff]
    %v1215 = vld [vmem:[#allocation8 + $0x458] sm:$0xff]
    %v1216 = vld [vmem:[#allocation8 + $0x460] sm:$0xff]
    %v1217 = vld [vmem:[#allocation8 + $0x468] sm:$0xff]
    %v1218 = vld [vmem:[#allocation8 + $0x470] sm:$0xff]
    %v1219 = vld [vmem:[#allocation8 + $0x478] sm:$0xff]
    %v1220 = vld [vmem:[#allocation8 + $0x480] sm:$0xff]
    %v1221 = vld [vmem:[#allocation8 + $0x488] sm:$0xff]
    %v1222 = vld [vmem:[#allocation8 + $0x490] sm:$0xff]
    %v1223 = vld [vmem:[#allocation8 + $0x498] sm:$0xff]
    %v1224 = vld [vmem:[#allocation8 + $0x4a0] sm:$0xff]
    %v1225 = vld [vmem:[#allocation8 + $0x4a8] sm:$0xff]
    %v1226 = vld [vmem:[#allocation8 + $0x4b0] sm:$0xff]
    %v1227 = vld [vmem:[#allocation8 + $0x4b8] sm:$0xff]
    %v1228 = vld [vmem:[#allocation8 + $0x4c0] sm:$0xff]
    %v1229 = vld [vmem:[#allocation8 + $0x4c8] sm:$0xff]
    %v1230 = vld [vmem:[#allocation8 + $0x4d0] sm:$0xff]
    %v1231 = vld [vmem:[#allocation8 + $0x4d8] sm:$0xff]
    %v1232 = vld [vmem:[#allocation8 + $0x4e0] sm:$0xff]
    %v1233 = vld [vmem:[#allocation8 + $0x4e8] sm:$0xff]
    %v1234 = vld [vmem:[#allocation8 + $0x4f0] sm:$0xff]
    %v1235 = vld [vmem:[#allocation8 + $0x4f8] sm:$0xff]
    %v1236 = vld [vmem:[#allocation8 + $0x500] sm:$0xff]
    %v1237 = vld [vmem:[#allocation8 + $0x508] sm:$0xff]
    %v1238 = vld [vmem:[#allocation8 + $0x510] sm:$0xff]
    %v1239 = vld [vmem:[#allocation8 + $0x518] sm:$0xff]
    %v1240 = vld [vmem:[#allocation8 + $0x520] sm:$0xff]
    %v1241 = vld [vmem:[#allocation8 + $0x528] sm:$0xff]
    %v1242 = vld [vmem:[#allocation8 + $0x530] sm:$0xff]
    %v1243 = vld [vmem:[#allocation8 + $0x538] sm:$0xff]
    %v1244 = vld [vmem:[#allocation8 + $0x540] sm:$0xff]
    %v1245 = vld [vmem:[#allocation8 + $0x548] sm:$0xff]
    %v1246 = vld [vmem:[#allocation8 + $0x550] sm:$0xff]
    %v1247 = vld [vmem:[#allocation8 + $0x558] sm:$0xff]
    %v1248 = vld [vmem:[#allocation8 + $0x560] sm:$0xff]
    %v1249 = vld [vmem:[#allocation8 + $0x568] sm:$0xff]
    %v1250 = vld [vmem:[#allocation8 + $0x570] sm:$0xff]
    %v1251 = vld [vmem:[#allocation8 + $0x578] sm:$0xff]
    %v1252 = vld [vmem:[#allocation8 + $0x580] sm:$0xff]
    %v1253 = vld [vmem:[#allocation8 + $0x588] sm:$0xff]
    %v1254 = vld [vmem:[#allocation8 + $0x590] sm:$0xff]
    %v1255 = vld [vmem:[#allocation8 + $0x598] sm:$0xff]
    %v1256 = vld [vmem:[#allocation8 + $0x5a0] sm:$0xff]
    %v1257 = vld [vmem:[#allocation8 + $0x5a8] sm:$0xff]
    %v1258 = vld [vmem:[#allocation8 + $0x5b0] sm:$0xff]
    %v1259 = vld [vmem:[#allocation8 + $0x5b8] sm:$0xff]
    %v1260 = vld [vmem:[#allocation8 + $0x5c0] sm:$0xff]
    %v1261 = vld [vmem:[#allocation8 + $0x5c8] sm:$0xff]
    %v1262 = vld [vmem:[#allocation8 + $0x5d0] sm:$0xff]
    %v1263 = vld [vmem:[#allocation8 + $0x5d8] sm:$0xff]
    %v1264 = vld [vmem:[#allocation8 + $0x5e0] sm:$0xff]
    %v1265 = vld [vmem:[#allocation8 + $0x5e8] sm:$0xff]
    %v1266 = vld [vmem:[#allocation8 + $0x5f0] sm:$0xff]
    %v1267 = vld [vmem:[#allocation8 + $0x5f8] sm:$0xff]
    %v1268 = vld [vmem:[#allocation8 + $0x600] sm:$0xff]
    %v1269 = vld [vmem:[#allocation8 + $0x608] sm:$0xff]
    %v1270 = vld [vmem:[#allocation8 + $0x610] sm:$0xff]
    %v1271 = vld [vmem:[#allocation8 + $0x618] sm:$0xff]
    %v1272 = vld [vmem:[#allocation8 + $0x620] sm:$0xff]
    %v1273 = vld [vmem:[#allocation8 + $0x628] sm:$0xff]
    %v1274 = vld [vmem:[#allocation8 + $0x630] sm:$0xff]
    %v1275 = vld [vmem:[#allocation8 + $0x638] sm:$0xff]
    %v1276 = vld [vmem:[#allocation8 + $0x640] sm:$0xff]
    %v1277 = vld [vmem:[#allocation8 + $0x648] sm:$0xff]
    %v1278 = vld [vmem:[#allocation8 + $0x650] sm:$0xff]
    %v1279 = vld [vmem:[#allocation8 + $0x658] sm:$0xff]
    %v1280 = vld [vmem:[#allocation8 + $0x660] sm:$0xff]
    %v1281 = vld [vmem:[#allocation8 + $0x668] sm:$0xff]
    %v1282 = vld [vmem:[#allocation8 + $0x670] sm:$0xff]
    %v1283 = vld [vmem:[#allocation8 + $0x678] sm:$0xff]
    %v1284 = vld [vmem:[#allocation8 + $0x680] sm:$0xff]
    %v1285 = vld [vmem:[#allocation8 + $0x688] sm:$0xff]
    %v1286 = vld [vmem:[#allocation8 + $0x690] sm:$0xff]
    %v1287 = vld [vmem:[#allocation8 + $0x698] sm:$0xff]
    %v1288 = vld [vmem:[#allocation8 + $0x6a0] sm:$0xff]
    %v1289 = vld [vmem:[#allocation8 + $0x6a8] sm:$0xff]
    %v1290 = vld [vmem:[#allocation8 + $0x6b0] sm:$0xff]
    %v1291 = vld [vmem:[#allocation8 + $0x6b8] sm:$0xff]
    %v1292 = vld [vmem:[#allocation8 + $0x6c0] sm:$0xff]
    %v1293 = vld [vmem:[#allocation8 + $0x6c8] sm:$0xff]
    %v1294 = vld [vmem:[#allocation8 + $0x6d0] sm:$0xff]
    %v1295 = vld [vmem:[#allocation8 + $0x6d8] sm:$0xff]
    %v1296 = vld [vmem:[#allocation8 + $0x6e0] sm:$0xff]
    %v1297 = vld [vmem:[#allocation8 + $0x6e8] sm:$0xff]
    %v1298 = vld [vmem:[#allocation8 + $0x6f0] sm:$0xff]
    %v1299 = vld [vmem:[#allocation8 + $0x6f8] sm:$0xff]
    %v1300 = vld [vmem:[#allocation8 + $0x700] sm:$0xff]
    %v1301 = vld [vmem:[#allocation8 + $0x708] sm:$0xff]
    %v1302 = vld [vmem:[#allocation8 + $0x710] sm:$0xff]
    %v1303 = vld [vmem:[#allocation8 + $0x718] sm:$0xff]
    %v1304 = vld [vmem:[#allocation8 + $0x720] sm:$0xff]
    %v1305 = vld [vmem:[#allocation8 + $0x728] sm:$0xff]
    %v1306 = vld [vmem:[#allocation8 + $0x730] sm:$0xff]
    %v1307 = vld [vmem:[#allocation8 + $0x738] sm:$0xff]
    %v1308 = vld [vmem:[#allocation8 + $0x740] sm:$0xff]
    %v1309 = vld [vmem:[#allocation8 + $0x748] sm:$0xff]
    %v1310 = vld [vmem:[#allocation8 + $0x750] sm:$0xff]
    %v1311 = vld [vmem:[#allocation8 + $0x758] sm:$0xff]
    %v1312 = vld [vmem:[#allocation8 + $0x760] sm:$0xff]
    %v1313 = vld [vmem:[#allocation8 + $0x768] sm:$0xff]
    %v1314 = vld [vmem:[#allocation8 + $0x770] sm:$0xff]
    %v1315 = vld [vmem:[#allocation8 + $0x778] sm:$0xff]
    %v1316 = vld [vmem:[#allocation8 + $0x780] sm:$0xff]
    %v1317 = vld [vmem:[#allocation8 + $0x788] sm:$0xff]
    %v1318 = vld [vmem:[#allocation8 + $0x790] sm:$0xff]
    %v1319 = vld [vmem:[#allocation8 + $0x798] sm:$0xff]
    %v1320 = vld [vmem:[#allocation8 + $0x7a0] sm:$0xff]
    %v1321 = vld [vmem:[#allocation8 + $0x7a8] sm:$0xff]
    %v1322 = vld [vmem:[#allocation8 + $0x7b0] sm:$0xff]
    %v1323 = vld [vmem:[#allocation8 + $0x7b8] sm:$0xff]
    %v1324 = vld [vmem:[#allocation8 + $0x7c0] sm:$0xff]
    %v1325 = vld [vmem:[#allocation8 + $0x7c8] sm:$0xff]
    %v1326 = vld [vmem:[#allocation8 + $0x7d0] sm:$0xff]
    %v1327 = vld [vmem:[#allocation8 + $0x7d8] sm:$0xff]
    %v1328 = vld [vmem:[#allocation8 + $0x7e0] sm:$0xff]
    %v1329 = vld [vmem:[#allocation8 + $0x7e8] sm:$0xff]
    %v1330 = vld [vmem:[#allocation8 + $0x7f0] sm:$0xff]
    %v1331 = vld [vmem:[#allocation8 + $0x7f8] sm:$0xff]
    %v1332 = vld [vmem:[#allocation8 + $0x800] sm:$0xff]
    %v1333 = vld [vmem:[#allocation8 + $0x808] sm:$0xff]
    %v1334 = vld [vmem:[#allocation8 + $0x810] sm:$0xff]
    %v1335 = vld [vmem:[#allocation8 + $0x818] sm:$0xff]
    %v1336 = vld [vmem:[#allocation8 + $0x820] sm:$0xff]
    %v1337 = vld [vmem:[#allocation8 + $0x828] sm:$0xff]
    %v1338 = vld [vmem:[#allocation8 + $0x830] sm:$0xff]
    %v1339 = vld [vmem:[#allocation8 + $0x838] sm:$0xff]
    %v1340 = vld [vmem:[#allocation8 + $0x840] sm:$0xff]
    %v1341 = vld [vmem:[#allocation8 + $0x848] sm:$0xff]
    %v1342 = vld [vmem:[#allocation8 + $0x850] sm:$0xff]
    %v1343 = vld [vmem:[#allocation8 + $0x858] sm:$0xff]
    %v1344 = vld [vmem:[#allocation8 + $0x860] sm:$0xff]
    %v1345 = vld [vmem:[#allocation8 + $0x868] sm:$0xff]
    %v1346 = vld [vmem:[#allocation8 + $0x870] sm:$0xff]
    %v1347 = vld [vmem:[#allocation8 + $0x878] sm:$0xff]
    %v1348 = vld [vmem:[#allocation8 + $0x880] sm:$0xff]
    %v1349 = vld [vmem:[#allocation8 + $0x888] sm:$0xff]
    %v1350 = vld [vmem:[#allocation8 + $0x890] sm:$0xff]
    %v1351 = vld [vmem:[#allocation8 + $0x898] sm:$0xff]
    %v1352 = vld [vmem:[#allocation8 + $0x8a0] sm:$0xff]
    %v1353 = vld [vmem:[#allocation8 + $0x8a8] sm:$0xff]
    %v1354 = vld [vmem:[#allocation8 + $0x8b0] sm:$0xff]
    %v1355 = vld [vmem:[#allocation8 + $0x8b8] sm:$0xff]
    %v1356 = vld [vmem:[#allocation8 + $0x8c0] sm:$0xff]
    %v1357 = vld [vmem:[#allocation8 + $0x8c8] sm:$0xff]
    %v1358 = vld [vmem:[#allocation8 + $0x8d0] sm:$0xff]
    %v1359 = vld [vmem:[#allocation8 + $0x8d8] sm:$0xff]
    %v1360 = vld [vmem:[#allocation8 + $0x8e0] sm:$0xff]
    %v1361 = vld [vmem:[#allocation8 + $0x8e8] sm:$0xff]
    %v1362 = vld [vmem:[#allocation8 + $0x8f0] sm:$0xff]
    %v1363 = vld [vmem:[#allocation8 + $0x8f8] sm:$0xff]
    %v1364 = vld [vmem:[#allocation10] sm:$0x3f]
    %v1366 = vlaneseq
    %v1367 = vshrl.u32 %v1366, 7
    %v1368 = vsub.s32 0, %v1367
    %v1369 = vrot.slane %v1364, %v1368
    %v1370 = vlaneseq
    %v1371 = vshrl.u32 %v1370, 7
    %v1372 = vsub.s32 1, %v1371
    %v1373 = vrot.slane %v1364, %v1372
    %v1374 = vlaneseq
    %v1375 = vshrl.u32 %v1374, 7
    %v1376 = vsub.s32 2, %v1375
    %v1377 = vrot.slane %v1364, %v1376
    %v1378 = vlaneseq
    %v1379 = vshrl.u32 %v1378, 7
    %v1380 = vsub.s32 3, %v1379
    %v1381 = vrot.slane %v1364, %v1380
    %v1382 = vlaneseq
    %v1383 = vshrl.u32 %v1382, 7
    %v1384 = vsub.s32 4, %v1383
    %v1385 = vrot.slane %v1364, %v1384
    %v1386 = vlaneseq
    %v1387 = vshrl.u32 %v1386, 7
    %v1388 = vsub.s32 5, %v1387
    %v1389 = vrot.slane %v1364, %v1388
    %v1684 = vunpack.c.l.b16 %v1076
    %v1685 = vunpack.c.h.b16 %v1076
    %v1686 = vunpack.c.l.b16 %v1077
    %v1687 = vunpack.c.h.b16 %v1077
    %v1688 = vunpack.c.l.b16 %v1078
    %v1689 = vunpack.c.h.b16 %v1078
    %v1690 = vunpack.c.l.b16 %v1079
    %v1691 = vunpack.c.h.b16 %v1079
    %v1692 = vunpack.c.l.b16 %v1080
    %v1693 = vunpack.c.h.b16 %v1080
    %v1694 = vunpack.c.l.b16 %v1081
    %v1695 = vunpack.c.h.b16 %v1081
    %v1696 = vunpack.c.l.b16 %v1082
    %v1697 = vunpack.c.h.b16 %v1082
    %v1698 = vunpack.c.l.b16 %v1083
    %v1699 = vunpack.c.h.b16 %v1083
    %v1700 = vunpack.c.l.b16 %v1084
    %v1701 = vunpack.c.h.b16 %v1084
    %v1702 = vunpack.c.l.b16 %v1085
    %v1703 = vunpack.c.h.b16 %v1085
    %v1704 = vunpack.c.l.b16 %v1086
    %v1705 = vunpack.c.h.b16 %v1086
    %v1706 = vunpack.c.l.b16 %v1087
    %v1707 = vunpack.c.h.b16 %v1087
    %v1708 = vunpack.c.l.b16 %v1088
    %v1709 = vunpack.c.h.b16 %v1088
    %v1710 = vunpack.c.l.b16 %v1089
    %v1711 = vunpack.c.h.b16 %v1089
    %v1712 = vunpack.c.l.b16 %v1090
    %v1713 = vunpack.c.h.b16 %v1090
    %v1714 = vunpack.c.l.b16 %v1091
    %v1715 = vunpack.c.h.b16 %v1091
    %v1716 = vunpack.c.l.b16 %v1092
    %v1717 = vunpack.c.h.b16 %v1092
    %v1718 = vunpack.c.l.b16 %v1093
    %v1719 = vunpack.c.h.b16 %v1093
    %v1720 = vunpack.c.l.b16 %v1094
    %v1721 = vunpack.c.h.b16 %v1094
    %v1722 = vunpack.c.l.b16 %v1095
    %v1723 = vunpack.c.h.b16 %v1095
    %v1724 = vunpack.c.l.b16 %v1096
    %v1725 = vunpack.c.h.b16 %v1096
    %v1726 = vunpack.c.l.b16 %v1097
    %v1727 = vunpack.c.h.b16 %v1097
    %v1728 = vunpack.c.l.b16 %v1098
    %v1729 = vunpack.c.h.b16 %v1098
    %v1730 = vunpack.c.l.b16 %v1099
    %v1731 = vunpack.c.h.b16 %v1099
    %v1732 = vunpack.c.l.b16 %v1100
    %v1733 = vunpack.c.h.b16 %v1100
    %v1734 = vunpack.c.l.b16 %v1101
    %v1735 = vunpack.c.h.b16 %v1101
    %v1736 = vunpack.c.l.b16 %v1102
    %v1737 = vunpack.c.h.b16 %v1102
    %v1738 = vunpack.c.l.b16 %v1103
    %v1739 = vunpack.c.h.b16 %v1103
    %v1740 = vunpack.c.l.b16 %v1104
    %v1741 = vunpack.c.h.b16 %v1104
    %v1742 = vunpack.c.l.b16 %v1105
    %v1743 = vunpack.c.h.b16 %v1105
    %v1744 = vunpack.c.l.b16 %v1106
    %v1745 = vunpack.c.h.b16 %v1106
    %v1746 = vunpack.c.l.b16 %v1107
    %v1747 = vunpack.c.h.b16 %v1107
    %v1748 = vunpack.c.l.b16 %v1108
    %v1749 = vunpack.c.h.b16 %v1108
    %v1750 = vunpack.c.l.b16 %v1109
    %v1751 = vunpack.c.h.b16 %v1109
    %v1752 = vunpack.c.l.b16 %v1110
    %v1753 = vunpack.c.h.b16 %v1110
    %v1754 = vunpack.c.l.b16 %v1111
    %v1755 = vunpack.c.h.b16 %v1111
    %v1756 = vunpack.c.l.b16 %v1112
    %v1757 = vunpack.c.h.b16 %v1112
    %v1758 = vunpack.c.l.b16 %v1113
    %v1759 = vunpack.c.h.b16 %v1113
    %v1760 = vunpack.c.l.b16 %v1114
    %v1761 = vunpack.c.h.b16 %v1114
    %v1762 = vunpack.c.l.b16 %v1115
    %v1763 = vunpack.c.h.b16 %v1115
    %v1764 = vunpack.c.l.b16 %v1116
    %v1765 = vunpack.c.h.b16 %v1116
    %v1766 = vunpack.c.l.b16 %v1117
    %v1767 = vunpack.c.h.b16 %v1117
    %v1768 = vunpack.c.l.b16 %v1118
    %v1769 = vunpack.c.h.b16 %v1118
    %v1770 = vunpack.c.l.b16 %v1119
    %v1771 = vunpack.c.h.b16 %v1119
    %v1772 = vunpack.c.l.b16 %v1120
    %v1773 = vunpack.c.h.b16 %v1120
    %v1774 = vunpack.c.l.b16 %v1121
    %v1775 = vunpack.c.h.b16 %v1121
    %v1776 = vunpack.c.l.b16 %v1122
    %v1777 = vunpack.c.h.b16 %v1122
    %v1778 = vunpack.c.l.b16 %v1123
    %v1779 = vunpack.c.h.b16 %v1123
    %v1780 = vunpack.c.l.b16 %v1124
    %v1781 = vunpack.c.h.b16 %v1124
    %v1782 = vunpack.c.l.b16 %v1125
    %v1783 = vunpack.c.h.b16 %v1125
    %v1784 = vunpack.c.l.b16 %v1126
    %v1785 = vunpack.c.h.b16 %v1126
    %v1786 = vunpack.c.l.b16 %v1127
    %v1787 = vunpack.c.h.b16 %v1127
    %v1788 = vunpack.c.l.b16 %v1128
    %v1789 = vunpack.c.h.b16 %v1128
    %v1790 = vunpack.c.l.b16 %v1129
    %v1791 = vunpack.c.h.b16 %v1129
    %v1792 = vunpack.c.l.b16 %v1130
    %v1793 = vunpack.c.h.b16 %v1130
    %v1794 = vunpack.c.l.b16 %v1131
    %v1795 = vunpack.c.h.b16 %v1131
    %v1796 = vunpack.c.l.b16 %v1132
    %v1797 = vunpack.c.h.b16 %v1132
    %v1798 = vunpack.c.l.b16 %v1133
    %v1799 = vunpack.c.h.b16 %v1133
    %v1800 = vunpack.c.l.b16 %v1134
    %v1801 = vunpack.c.h.b16 %v1134
    %v1802 = vunpack.c.l.b16 %v1135
    %v1803 = vunpack.c.h.b16 %v1135
    %v1804 = vunpack.c.l.b16 %v1136
    %v1805 = vunpack.c.h.b16 %v1136
    %v1806 = vunpack.c.l.b16 %v1137
    %v1807 = vunpack.c.h.b16 %v1137
    %v1808 = vunpack.c.l.b16 %v1138
    %v1809 = vunpack.c.h.b16 %v1138
    %v1810 = vunpack.c.l.b16 %v1139
    %v1811 = vunpack.c.h.b16 %v1139
    %v1812 = vunpack.c.l.b16 %v1140
    %v1813 = vunpack.c.h.b16 %v1140
    %v1814 = vunpack.c.l.b16 %v1141
    %v1815 = vunpack.c.h.b16 %v1141
    %v1816 = vunpack.c.l.b16 %v1142
    %v1817 = vunpack.c.h.b16 %v1142
    %v1818 = vunpack.c.l.b16 %v1143
    %v1819 = vunpack.c.h.b16 %v1143
    %v1820 = vunpack.c.l.b16 %v1144
    %v1821 = vunpack.c.h.b16 %v1144
    %v1822 = vunpack.c.l.b16 %v1145
    %v1823 = vunpack.c.h.b16 %v1145
    %v1824 = vunpack.c.l.b16 %v1146
    %v1825 = vunpack.c.h.b16 %v1146
    %v1826 = vunpack.c.l.b16 %v1147
    %v1827 = vunpack.c.h.b16 %v1147
    %v1828 = vunpack.c.l.b16 %v1148
    %v1829 = vunpack.c.h.b16 %v1148
    %v1830 = vunpack.c.l.b16 %v1149
    %v1831 = vunpack.c.h.b16 %v1149
    %v1832 = vunpack.c.l.b16 %v1150
    %v1833 = vunpack.c.h.b16 %v1150
    %v1834 = vunpack.c.l.b16 %v1151
    %v1835 = vunpack.c.h.b16 %v1151
    %v1836 = vunpack.c.l.b16 %v1152
    %v1837 = vunpack.c.h.b16 %v1152
    %v1838 = vunpack.c.l.b16 %v1153
    %v1839 = vunpack.c.h.b16 %v1153
    %v1840 = vunpack.c.l.b16 %v1154
    %v1841 = vunpack.c.h.b16 %v1154
    %v1842 = vunpack.c.l.b16 %v1155
    %v1843 = vunpack.c.h.b16 %v1155
    %v1844 = vunpack.c.l.b16 %v1156
    %v1845 = vunpack.c.h.b16 %v1156
    %v1846 = vunpack.c.l.b16 %v1157
    %v1847 = vunpack.c.h.b16 %v1157
    %v1848 = vunpack.c.l.b16 %v1158
    %v1849 = vunpack.c.h.b16 %v1158
    %v1850 = vunpack.c.l.b16 %v1159
    %v1851 = vunpack.c.h.b16 %v1159
    %v1852 = vunpack.c.l.b16 %v1160
    %v1853 = vunpack.c.h.b16 %v1160
    %v1854 = vunpack.c.l.b16 %v1161
    %v1855 = vunpack.c.h.b16 %v1161
    %v1856 = vunpack.c.l.b16 %v1162
    %v1857 = vunpack.c.h.b16 %v1162
    %v1858 = vunpack.c.l.b16 %v1163
    %v1859 = vunpack.c.h.b16 %v1163
    %v1860 = vunpack.c.l.b16 %v1164
    %v1861 = vunpack.c.h.b16 %v1164
    %v1862 = vunpack.c.l.b16 %v1165
    %v1863 = vunpack.c.h.b16 %v1165
    %v1864 = vunpack.c.l.b16 %v1166
    %v1865 = vunpack.c.h.b16 %v1166
    %v1866 = vunpack.c.l.b16 %v1167
    %v1867 = vunpack.c.h.b16 %v1167
    %v1868 = vunpack.c.l.b16 %v1168
    %v1869 = vunpack.c.h.b16 %v1168
    %v1870 = vunpack.c.l.b16 %v1169
    %v1871 = vunpack.c.h.b16 %v1169
    %v1872 = vunpack.c.l.b16 %v1170
    %v1873 = vunpack.c.h.b16 %v1170
    %v1874 = vunpack.c.l.b16 %v1171
    %v1875 = vunpack.c.h.b16 %v1171
    %v1876 = vunpack.c.l.b16 %v1172
    %v1877 = vunpack.c.h.b16 %v1172
    %v1878 = vunpack.c.l.b16 %v1173
    %v1879 = vunpack.c.h.b16 %v1173
    %v1880 = vunpack.c.l.b16 %v1174
    %v1881 = vunpack.c.h.b16 %v1174
    %v1882 = vunpack.c.l.b16 %v1175
    %v1883 = vunpack.c.h.b16 %v1175
    %v1884 = vunpack.c.l.b16 %v1176
    %v1885 = vunpack.c.h.b16 %v1176
    %v1886 = vunpack.c.l.b16 %v1177
    %v1887 = vunpack.c.h.b16 %v1177
    %v1888 = vunpack.c.l.b16 %v1178
    %v1889 = vunpack.c.h.b16 %v1178
    %v1890 = vunpack.c.l.b16 %v1179
    %v1891 = vunpack.c.h.b16 %v1179
    %v1892 = vunpack.c.l.b16 %v1180
    %v1893 = vunpack.c.h.b16 %v1180
    %v1894 = vunpack.c.l.b16 %v1181
    %v1895 = vunpack.c.h.b16 %v1181
    %v1896 = vunpack.c.l.b16 %v1182
    %v1897 = vunpack.c.h.b16 %v1182
    %v1898 = vunpack.c.l.b16 %v1183
    %v1899 = vunpack.c.h.b16 %v1183
    %v1900 = vunpack.c.l.b16 %v1184
    %v1901 = vunpack.c.h.b16 %v1184
    %v1902 = vunpack.c.l.b16 %v1185
    %v1903 = vunpack.c.h.b16 %v1185
    %v1904 = vunpack.c.l.b16 %v1186
    %v1905 = vunpack.c.h.b16 %v1186
    %v1906 = vunpack.c.l.b16 %v1187
    %v1907 = vunpack.c.h.b16 %v1187
    %v1908 = vunpack.c.l.b16 %v1188
    %v1909 = vunpack.c.h.b16 %v1188
    %v1910 = vunpack.c.l.b16 %v1189
    %v1911 = vunpack.c.h.b16 %v1189
    %v1912 = vunpack.c.l.b16 %v1190
    %v1913 = vunpack.c.h.b16 %v1190
    %v1914 = vunpack.c.l.b16 %v1191
    %v1915 = vunpack.c.h.b16 %v1191
    %v1916 = vunpack.c.l.b16 %v1192
    %v1917 = vunpack.c.h.b16 %v1192
    %v1918 = vunpack.c.l.b16 %v1193
    %v1919 = vunpack.c.h.b16 %v1193
    %v1920 = vunpack.c.l.b16 %v1194
    %v1921 = vunpack.c.h.b16 %v1194
    %v1922 = vunpack.c.l.b16 %v1195
    %v1923 = vunpack.c.h.b16 %v1195
    %v1924 = vunpack.c.l.b16 %v1196
    %v1925 = vunpack.c.h.b16 %v1196
    %v1926 = vunpack.c.l.b16 %v1197
    %v1927 = vunpack.c.h.b16 %v1197
    %v1928 = vunpack.c.l.b16 %v1198
    %v1929 = vunpack.c.h.b16 %v1198
    %v1930 = vunpack.c.l.b16 %v1199
    %v1931 = vunpack.c.h.b16 %v1199
    %v1932 = vunpack.c.l.b16 %v1200
    %v1933 = vunpack.c.h.b16 %v1200
    %v1934 = vunpack.c.l.b16 %v1201
    %v1935 = vunpack.c.h.b16 %v1201
    %v1936 = vunpack.c.l.b16 %v1202
    %v1937 = vunpack.c.h.b16 %v1202
    %v1938 = vunpack.c.l.b16 %v1203
    %v1939 = vunpack.c.h.b16 %v1203
    %v1940 = vunpack.c.l.b16 %v1204
    %v1941 = vunpack.c.h.b16 %v1204
    %v1942 = vunpack.c.l.b16 %v1205
    %v1943 = vunpack.c.h.b16 %v1205
    %v1944 = vunpack.c.l.b16 %v1206
    %v1945 = vunpack.c.h.b16 %v1206
    %v1946 = vunpack.c.l.b16 %v1207
    %v1947 = vunpack.c.h.b16 %v1207
    %v1948 = vunpack.c.l.b16 %v1208
    %v1949 = vunpack.c.h.b16 %v1208
    %v1950 = vunpack.c.l.b16 %v1209
    %v1951 = vunpack.c.h.b16 %v1209
    %v1952 = vunpack.c.l.b16 %v1210
    %v1953 = vunpack.c.h.b16 %v1210
    %v1954 = vunpack.c.l.b16 %v1211
    %v1955 = vunpack.c.h.b16 %v1211
    %v1956 = vunpack.c.l.b16 %v1212
    %v1957 = vunpack.c.h.b16 %v1212
    %v1958 = vunpack.c.l.b16 %v1213
    %v1959 = vunpack.c.h.b16 %v1213
    %v1960 = vunpack.c.l.b16 %v1214
    %v1961 = vunpack.c.h.b16 %v1214
    %v1962 = vunpack.c.l.b16 %v1215
    %v1963 = vunpack.c.h.b16 %v1215
    %v1964 = vunpack.c.l.b16 %v1216
    %v1965 = vunpack.c.h.b16 %v1216
    %v1966 = vunpack.c.l.b16 %v1217
    %v1967 = vunpack.c.h.b16 %v1217
    %v1968 = vunpack.c.l.b16 %v1218
    %v1969 = vunpack.c.h.b16 %v1218
    %v1970 = vunpack.c.l.b16 %v1219
    %v1971 = vunpack.c.h.b16 %v1219
    %v1972 = vunpack.c.l.b16 %v1220
    %v1973 = vunpack.c.h.b16 %v1220
    %v1974 = vunpack.c.l.b16 %v1221
    %v1975 = vunpack.c.h.b16 %v1221
    %v1976 = vunpack.c.l.b16 %v1222
    %v1977 = vunpack.c.h.b16 %v1222
    %v1978 = vunpack.c.l.b16 %v1223
    %v1979 = vunpack.c.h.b16 %v1223
    %v1980 = vunpack.c.l.b16 %v1224
    %v1981 = vunpack.c.h.b16 %v1224
    %v1982 = vunpack.c.l.b16 %v1225
    %v1983 = vunpack.c.h.b16 %v1225
    %v1984 = vunpack.c.l.b16 %v1226
    %v1985 = vunpack.c.h.b16 %v1226
    %v1986 = vunpack.c.l.b16 %v1227
    %v1987 = vunpack.c.h.b16 %v1227
    %v1988 = vunpack.c.l.b16 %v1228
    %v1989 = vunpack.c.h.b16 %v1228
    %v1990 = vunpack.c.l.b16 %v1229
    %v1991 = vunpack.c.h.b16 %v1229
    %v1992 = vunpack.c.l.b16 %v1230
    %v1993 = vunpack.c.h.b16 %v1230
    %v1994 = vunpack.c.l.b16 %v1231
    %v1995 = vunpack.c.h.b16 %v1231
    %v1996 = vunpack.c.l.b16 %v1232
    %v1997 = vunpack.c.h.b16 %v1232
    %v1998 = vunpack.c.l.b16 %v1233
    %v1999 = vunpack.c.h.b16 %v1233
    %v2000 = vunpack.c.l.b16 %v1234
    %v2001 = vunpack.c.h.b16 %v1234
    %v2002 = vunpack.c.l.b16 %v1235
    %v2003 = vunpack.c.h.b16 %v1235
    %v2004 = vunpack.c.l.b16 %v1236
    %v2005 = vunpack.c.h.b16 %v1236
    %v2006 = vunpack.c.l.b16 %v1237
    %v2007 = vunpack.c.h.b16 %v1237
    %v2008 = vunpack.c.l.b16 %v1238
    %v2009 = vunpack.c.h.b16 %v1238
    %v2010 = vunpack.c.l.b16 %v1239
    %v2011 = vunpack.c.h.b16 %v1239
    %v2012 = vunpack.c.l.b16 %v1240
    %v2013 = vunpack.c.h.b16 %v1240
    %v2014 = vunpack.c.l.b16 %v1241
    %v2015 = vunpack.c.h.b16 %v1241
    %v2016 = vunpack.c.l.b16 %v1242
    %v2017 = vunpack.c.h.b16 %v1242
    %v2018 = vunpack.c.l.b16 %v1243
    %v2019 = vunpack.c.h.b16 %v1243
    %v2020 = vunpack.c.l.b16 %v1244
    %v2021 = vunpack.c.h.b16 %v1244
    %v2022 = vunpack.c.l.b16 %v1245
    %v2023 = vunpack.c.h.b16 %v1245
    %v2024 = vunpack.c.l.b16 %v1246
    %v2025 = vunpack.c.h.b16 %v1246
    %v2026 = vunpack.c.l.b16 %v1247
    %v2027 = vunpack.c.h.b16 %v1247
    %v2028 = vunpack.c.l.b16 %v1248
    %v2029 = vunpack.c.h.b16 %v1248
    %v2030 = vunpack.c.l.b16 %v1249
    %v2031 = vunpack.c.h.b16 %v1249
    %v2032 = vunpack.c.l.b16 %v1250
    %v2033 = vunpack.c.h.b16 %v1250
    %v2034 = vunpack.c.l.b16 %v1251
    %v2035 = vunpack.c.h.b16 %v1251
    %v2036 = vunpack.c.l.b16 %v1252
    %v2037 = vunpack.c.h.b16 %v1252
    %v2038 = vunpack.c.l.b16 %v1253
    %v2039 = vunpack.c.h.b16 %v1253
    %v2040 = vunpack.c.l.b16 %v1254
    %v2041 = vunpack.c.h.b16 %v1254
    %v2042 = vunpack.c.l.b16 %v1255
    %v2043 = vunpack.c.h.b16 %v1255
    %v2044 = vunpack.c.l.b16 %v1256
    %v2045 = vunpack.c.h.b16 %v1256
    %v2046 = vunpack.c.l.b16 %v1257
    %v2047 = vunpack.c.h.b16 %v1257
    %v2048 = vunpack.c.l.b16 %v1258
    %v2049 = vunpack.c.h.b16 %v1258
    %v2050 = vunpack.c.l.b16 %v1259
    %v2051 = vunpack.c.h.b16 %v1259
    %v2052 = vunpack.c.l.b16 %v1260
    %v2053 = vunpack.c.h.b16 %v1260
    %v2054 = vunpack.c.l.b16 %v1261
    %v2055 = vunpack.c.h.b16 %v1261
    %v2056 = vunpack.c.l.b16 %v1262
    %v2057 = vunpack.c.h.b16 %v1262
    %v2058 = vunpack.c.l.b16 %v1263
    %v2059 = vunpack.c.h.b16 %v1263
    %v2060 = vunpack.c.l.b16 %v1264
    %v2061 = vunpack.c.h.b16 %v1264
    %v2062 = vunpack.c.l.b16 %v1265
    %v2063 = vunpack.c.h.b16 %v1265
    %v2064 = vunpack.c.l.b16 %v1266
    %v2065 = vunpack.c.h.b16 %v1266
    %v2066 = vunpack.c.l.b16 %v1267
    %v2067 = vunpack.c.h.b16 %v1267
    %v2068 = vunpack.c.l.b16 %v1268
    %v2069 = vunpack.c.h.b16 %v1268
    %v2070 = vunpack.c.l.b16 %v1269
    %v2071 = vunpack.c.h.b16 %v1269
    %v2072 = vunpack.c.l.b16 %v1270
    %v2073 = vunpack.c.h.b16 %v1270
    %v2074 = vunpack.c.l.b16 %v1271
    %v2075 = vunpack.c.h.b16 %v1271
    %v2076 = vunpack.c.l.b16 %v1272
    %v2077 = vunpack.c.h.b16 %v1272
    %v2078 = vunpack.c.l.b16 %v1273
    %v2079 = vunpack.c.h.b16 %v1273
    %v2080 = vunpack.c.l.b16 %v1274
    %v2081 = vunpack.c.h.b16 %v1274
    %v2082 = vunpack.c.l.b16 %v1275
    %v2083 = vunpack.c.h.b16 %v1275
    %v2084 = vunpack.c.l.b16 %v1276
    %v2085 = vunpack.c.h.b16 %v1276
    %v2086 = vunpack.c.l.b16 %v1277
    %v2087 = vunpack.c.h.b16 %v1277
    %v2088 = vunpack.c.l.b16 %v1278
    %v2089 = vunpack.c.h.b16 %v1278
    %v2090 = vunpack.c.l.b16 %v1279
    %v2091 = vunpack.c.h.b16 %v1279
    %v2092 = vunpack.c.l.b16 %v1280
    %v2093 = vunpack.c.h.b16 %v1280
    %v2094 = vunpack.c.l.b16 %v1281
    %v2095 = vunpack.c.h.b16 %v1281
    %v2096 = vunpack.c.l.b16 %v1282
    %v2097 = vunpack.c.h.b16 %v1282
    %v2098 = vunpack.c.l.b16 %v1283
    %v2099 = vunpack.c.h.b16 %v1283
    %v2100 = vunpack.c.l.b16 %v1284
    %v2101 = vunpack.c.h.b16 %v1284
    %v2102 = vunpack.c.l.b16 %v1285
    %v2103 = vunpack.c.h.b16 %v1285
    %v2104 = vunpack.c.l.b16 %v1286
    %v2105 = vunpack.c.h.b16 %v1286
    %v2106 = vunpack.c.l.b16 %v1287
    %v2107 = vunpack.c.h.b16 %v1287
    %v2108 = vunpack.c.l.b16 %v1288
    %v2109 = vunpack.c.h.b16 %v1288
    %v2110 = vunpack.c.l.b16 %v1289
    %v2111 = vunpack.c.h.b16 %v1289
    %v2112 = vunpack.c.l.b16 %v1290
    %v2113 = vunpack.c.h.b16 %v1290
    %v2114 = vunpack.c.l.b16 %v1291
    %v2115 = vunpack.c.h.b16 %v1291
    %v2116 = vunpack.c.l.b16 %v1292
    %v2117 = vunpack.c.h.b16 %v1292
    %v2118 = vunpack.c.l.b16 %v1293
    %v2119 = vunpack.c.h.b16 %v1293
    %v2120 = vunpack.c.l.b16 %v1294
    %v2121 = vunpack.c.h.b16 %v1294
    %v2122 = vunpack.c.l.b16 %v1295
    %v2123 = vunpack.c.h.b16 %v1295
    %v2124 = vunpack.c.l.b16 %v1296
    %v2125 = vunpack.c.h.b16 %v1296
    %v2126 = vunpack.c.l.b16 %v1297
    %v2127 = vunpack.c.h.b16 %v1297
    %v2128 = vunpack.c.l.b16 %v1298
    %v2129 = vunpack.c.h.b16 %v1298
    %v2130 = vunpack.c.l.b16 %v1299
    %v2131 = vunpack.c.h.b16 %v1299
    %v2132 = vunpack.c.l.b16 %v1300
    %v2133 = vunpack.c.h.b16 %v1300
    %v2134 = vunpack.c.l.b16 %v1301
    %v2135 = vunpack.c.h.b16 %v1301
    %v2136 = vunpack.c.l.b16 %v1302
    %v2137 = vunpack.c.h.b16 %v1302
    %v2138 = vunpack.c.l.b16 %v1303
    %v2139 = vunpack.c.h.b16 %v1303
    %v2140 = vunpack.c.l.b16 %v1304
    %v2141 = vunpack.c.h.b16 %v1304
    %v2142 = vunpack.c.l.b16 %v1305
    %v2143 = vunpack.c.h.b16 %v1305
    %v2144 = vunpack.c.l.b16 %v1306
    %v2145 = vunpack.c.h.b16 %v1306
    %v2146 = vunpack.c.l.b16 %v1307
    %v2147 = vunpack.c.h.b16 %v1307
    %v2148 = vunpack.c.l.b16 %v1308
    %v2149 = vunpack.c.h.b16 %v1308
    %v2150 = vunpack.c.l.b16 %v1309
    %v2151 = vunpack.c.h.b16 %v1309
    %v2152 = vunpack.c.l.b16 %v1310
    %v2153 = vunpack.c.h.b16 %v1310
    %v2154 = vunpack.c.l.b16 %v1311
    %v2155 = vunpack.c.h.b16 %v1311
    %v2156 = vunpack.c.l.b16 %v1312
    %v2157 = vunpack.c.h.b16 %v1312
    %v2158 = vunpack.c.l.b16 %v1313
    %v2159 = vunpack.c.h.b16 %v1313
    %v2160 = vunpack.c.l.b16 %v1314
    %v2161 = vunpack.c.h.b16 %v1314
    %v2162 = vunpack.c.l.b16 %v1315
    %v2163 = vunpack.c.h.b16 %v1315
    %v2164 = vunpack.c.l.b16 %v1316
    %v2165 = vunpack.c.h.b16 %v1316
    %v2166 = vunpack.c.l.b16 %v1317
    %v2167 = vunpack.c.h.b16 %v1317
    %v2168 = vunpack.c.l.b16 %v1318
    %v2169 = vunpack.c.h.b16 %v1318
    %v2170 = vunpack.c.l.b16 %v1319
    %v2171 = vunpack.c.h.b16 %v1319
    %v2172 = vunpack.c.l.b16 %v1320
    %v2173 = vunpack.c.h.b16 %v1320
    %v2174 = vunpack.c.l.b16 %v1321
    %v2175 = vunpack.c.h.b16 %v1321
    %v2176 = vunpack.c.l.b16 %v1322
    %v2177 = vunpack.c.h.b16 %v1322
    %v2178 = vunpack.c.l.b16 %v1323
    %v2179 = vunpack.c.h.b16 %v1323
    %v2180 = vunpack.c.l.b16 %v1324
    %v2181 = vunpack.c.h.b16 %v1324
    %v2182 = vunpack.c.l.b16 %v1325
    %v2183 = vunpack.c.h.b16 %v1325
    %v2184 = vunpack.c.l.b16 %v1326
    %v2185 = vunpack.c.h.b16 %v1326
    %v2186 = vunpack.c.l.b16 %v1327
    %v2187 = vunpack.c.h.b16 %v1327
    %v2188 = vunpack.c.l.b16 %v1328
    %v2189 = vunpack.c.h.b16 %v1328
    %v2190 = vunpack.c.l.b16 %v1329
    %v2191 = vunpack.c.h.b16 %v1329
    %v2192 = vunpack.c.l.b16 %v1330
    %v2193 = vunpack.c.h.b16 %v1330
    %v2194 = vunpack.c.l.b16 %v1331
    %v2195 = vunpack.c.h.b16 %v1331
    %v2196 = vunpack.c.l.b16 %v1332
    %v2197 = vunpack.c.h.b16 %v1332
    %v2198 = vunpack.c.l.b16 %v1333
    %v2199 = vunpack.c.h.b16 %v1333
    %v2200 = vunpack.c.l.b16 %v1334
    %v2201 = vunpack.c.h.b16 %v1334
    %v2202 = vunpack.c.l.b16 %v1335
    %v2203 = vunpack.c.h.b16 %v1335
    %v2204 = vunpack.c.l.b16 %v1336
    %v2205 = vunpack.c.h.b16 %v1336
    %v2206 = vunpack.c.l.b16 %v1337
    %v2207 = vunpack.c.h.b16 %v1337
    %v2208 = vunpack.c.l.b16 %v1338
    %v2209 = vunpack.c.h.b16 %v1338
    %v2210 = vunpack.c.l.b16 %v1339
    %v2211 = vunpack.c.h.b16 %v1339
    %v2212 = vunpack.c.l.b16 %v1340
    %v2213 = vunpack.c.h.b16 %v1340
    %v2214 = vunpack.c.l.b16 %v1341
    %v2215 = vunpack.c.h.b16 %v1341
    %v2216 = vunpack.c.l.b16 %v1342
    %v2217 = vunpack.c.h.b16 %v1342
    %v2218 = vunpack.c.l.b16 %v1343
    %v2219 = vunpack.c.h.b16 %v1343
    %v2220 = vunpack.c.l.b16 %v1344
    %v2221 = vunpack.c.h.b16 %v1344
    %v2222 = vunpack.c.l.b16 %v1345
    %v2223 = vunpack.c.h.b16 %v1345
    %v2224 = vunpack.c.l.b16 %v1346
    %v2225 = vunpack.c.h.b16 %v1346
    %v2226 = vunpack.c.l.b16 %v1347
    %v2227 = vunpack.c.h.b16 %v1347
    %v2228 = vunpack.c.l.b16 %v1348
    %v2229 = vunpack.c.h.b16 %v1348
    %v2230 = vunpack.c.l.b16 %v1349
    %v2231 = vunpack.c.h.b16 %v1349
    %v2232 = vunpack.c.l.b16 %v1350
    %v2233 = vunpack.c.h.b16 %v1350
    %v2234 = vunpack.c.l.b16 %v1351
    %v2235 = vunpack.c.h.b16 %v1351
    %v2236 = vunpack.c.l.b16 %v1352
    %v2237 = vunpack.c.h.b16 %v1352
    %v2238 = vunpack.c.l.b16 %v1353
    %v2239 = vunpack.c.h.b16 %v1353
    %v2240 = vunpack.c.l.b16 %v1354
    %v2241 = vunpack.c.h.b16 %v1354
    %v2242 = vunpack.c.l.b16 %v1355
    %v2243 = vunpack.c.h.b16 %v1355
    %v2244 = vunpack.c.l.b16 %v1356
    %v2245 = vunpack.c.h.b16 %v1356
    %v2246 = vunpack.c.l.b16 %v1357
    %v2247 = vunpack.c.h.b16 %v1357
    %v2248 = vunpack.c.l.b16 %v1358
    %v2249 = vunpack.c.h.b16 %v1358
    %v2250 = vunpack.c.l.b16 %v1359
    %v2251 = vunpack.c.h.b16 %v1359
    %v2252 = vunpack.c.l.b16 %v1360
    %v2253 = vunpack.c.h.b16 %v1360
    %v2254 = vunpack.c.l.b16 %v1361
    %v2255 = vunpack.c.h.b16 %v1361
    %v2256 = vunpack.c.l.b16 %v1362
    %v2257 = vunpack.c.h.b16 %v1362
    %v2258 = vunpack.c.l.b16 %v1363
    %v2259 = vunpack.c.h.b16 %v1363
    %v2260 = vpack.c.b16 %v1690, %v1684
    %v2261 = vpack.c.b16 %v1691, %v1685
    %v2262 = vpack.c.b16 %v1692, %v1686
    %v2263 = vpack.c.b16 %v1693, %v1687
    %v2264 = vpack.c.b16 %v1694, %v1688
    %v2265 = vpack.c.b16 %v1695, %v1689
    %v2266 = vpack.c.b16 %v1702, %v1696
    %v2267 = vpack.c.b16 %v1703, %v1697
    %v2268 = vpack.c.b16 %v1704, %v1698
    %v2269 = vpack.c.b16 %v1705, %v1699
    %v2270 = vpack.c.b16 %v1706, %v1700
    %v2271 = vpack.c.b16 %v1707, %v1701
    %v2272 = vpack.c.b16 %v1714, %v1708
    %v2273 = vpack.c.b16 %v1715, %v1709
    %v2274 = vpack.c.b16 %v1716, %v1710
    %v2275 = vpack.c.b16 %v1717, %v1711
    %v2276 = vpack.c.b16 %v1718, %v1712
    %v2277 = vpack.c.b16 %v1719, %v1713
    %v2278 = vpack.c.b16 %v1726, %v1720
    %v2279 = vpack.c.b16 %v1727, %v1721
    %v2280 = vpack.c.b16 %v1728, %v1722
    %v2281 = vpack.c.b16 %v1729, %v1723
    %v2282 = vpack.c.b16 %v1730, %v1724
    %v2283 = vpack.c.b16 %v1731, %v1725
    %v2284 = vpack.c.b16 %v1738, %v1732
    %v2285 = vpack.c.b16 %v1739, %v1733
    %v2286 = vpack.c.b16 %v1740, %v1734
    %v2287 = vpack.c.b16 %v1741, %v1735
    %v2288 = vpack.c.b16 %v1742, %v1736
    %v2289 = vpack.c.b16 %v1743, %v1737
    %v2290 = vpack.c.b16 %v1750, %v1744
    %v2291 = vpack.c.b16 %v1751, %v1745
    %v2292 = vpack.c.b16 %v1752, %v1746
    %v2293 = vpack.c.b16 %v1753, %v1747
    %v2294 = vpack.c.b16 %v1754, %v1748
    %v2295 = vpack.c.b16 %v1755, %v1749
    %v2296 = vpack.c.b16 %v1762, %v1756
    %v2297 = vpack.c.b16 %v1763, %v1757
    %v2298 = vpack.c.b16 %v1764, %v1758
    %v2299 = vpack.c.b16 %v1765, %v1759
    %v2300 = vpack.c.b16 %v1766, %v1760
    %v2301 = vpack.c.b16 %v1767, %v1761
    %v2302 = vpack.c.b16 %v1774, %v1768
    %v2303 = vpack.c.b16 %v1775, %v1769
    %v2304 = vpack.c.b16 %v1776, %v1770
    %v2305 = vpack.c.b16 %v1777, %v1771
    %v2306 = vpack.c.b16 %v1778, %v1772
    %v2307 = vpack.c.b16 %v1779, %v1773
    %v2308 = vpack.c.b16 %v1786, %v1780
    %v2309 = vpack.c.b16 %v1787, %v1781
    %v2310 = vpack.c.b16 %v1788, %v1782
    %v2311 = vpack.c.b16 %v1789, %v1783
    %v2312 = vpack.c.b16 %v1790, %v1784
    %v2313 = vpack.c.b16 %v1791, %v1785
    %v2314 = vpack.c.b16 %v1798, %v1792
    %v2315 = vpack.c.b16 %v1799, %v1793
    %v2316 = vpack.c.b16 %v1800, %v1794
    %v2317 = vpack.c.b16 %v1801, %v1795
    %v2318 = vpack.c.b16 %v1802, %v1796
    %v2319 = vpack.c.b16 %v1803, %v1797
    %v2320 = vpack.c.b16 %v1810, %v1804
    %v2321 = vpack.c.b16 %v1811, %v1805
    %v2322 = vpack.c.b16 %v1812, %v1806
    %v2323 = vpack.c.b16 %v1813, %v1807
    %v2324 = vpack.c.b16 %v1814, %v1808
    %v2325 = vpack.c.b16 %v1815, %v1809
    %v2326 = vpack.c.b16 %v1822, %v1816
    %v2327 = vpack.c.b16 %v1823, %v1817
    %v2328 = vpack.c.b16 %v1824, %v1818
    %v2329 = vpack.c.b16 %v1825, %v1819
    %v2330 = vpack.c.b16 %v1826, %v1820
    %v2331 = vpack.c.b16 %v1827, %v1821
    %v2332 = vpack.c.b16 %v1834, %v1828
    %v2333 = vpack.c.b16 %v1835, %v1829
    %v2334 = vpack.c.b16 %v1836, %v1830
    %v2335 = vpack.c.b16 %v1837, %v1831
    %v2336 = vpack.c.b16 %v1838, %v1832
    %v2337 = vpack.c.b16 %v1839, %v1833
    %v2338 = vpack.c.b16 %v1846, %v1840
    %v2339 = vpack.c.b16 %v1847, %v1841
    %v2340 = vpack.c.b16 %v1848, %v1842
    %v2341 = vpack.c.b16 %v1849, %v1843
    %v2342 = vpack.c.b16 %v1850, %v1844
    %v2343 = vpack.c.b16 %v1851, %v1845
    %v2344 = vpack.c.b16 %v1858, %v1852
    %v2345 = vpack.c.b16 %v1859, %v1853
    %v2346 = vpack.c.b16 %v1860, %v1854
    %v2347 = vpack.c.b16 %v1861, %v1855
    %v2348 = vpack.c.b16 %v1862, %v1856
    %v2349 = vpack.c.b16 %v1863, %v1857
    %v2350 = vpack.c.b16 %v1870, %v1864
    %v2351 = vpack.c.b16 %v1871, %v1865
    %v2352 = vpack.c.b16 %v1872, %v1866
    %v2353 = vpack.c.b16 %v1873, %v1867
    %v2354 = vpack.c.b16 %v1874, %v1868
    %v2355 = vpack.c.b16 %v1875, %v1869
    %v2356 = vpack.c.b16 %v1882, %v1876
    %v2357 = vpack.c.b16 %v1883, %v1877
    %v2358 = vpack.c.b16 %v1884, %v1878
    %v2359 = vpack.c.b16 %v1885, %v1879
    %v2360 = vpack.c.b16 %v1886, %v1880
    %v2361 = vpack.c.b16 %v1887, %v1881
    %v2362 = vpack.c.b16 %v1894, %v1888
    %v2363 = vpack.c.b16 %v1895, %v1889
    %v2364 = vpack.c.b16 %v1896, %v1890
    %v2365 = vpack.c.b16 %v1897, %v1891
    %v2366 = vpack.c.b16 %v1898, %v1892
    %v2367 = vpack.c.b16 %v1899, %v1893
    %v2368 = vpack.c.b16 %v1906, %v1900
    %v2369 = vpack.c.b16 %v1907, %v1901
    %v2370 = vpack.c.b16 %v1908, %v1902
    %v2371 = vpack.c.b16 %v1909, %v1903
    %v2372 = vpack.c.b16 %v1910, %v1904
    %v2373 = vpack.c.b16 %v1911, %v1905
    %v2374 = vpack.c.b16 %v1918, %v1912
    %v2375 = vpack.c.b16 %v1919, %v1913
    %v2376 = vpack.c.b16 %v1920, %v1914
    %v2377 = vpack.c.b16 %v1921, %v1915
    %v2378 = vpack.c.b16 %v1922, %v1916
    %v2379 = vpack.c.b16 %v1923, %v1917
    %v2380 = vpack.c.b16 %v1930, %v1924
    %v2381 = vpack.c.b16 %v1931, %v1925
    %v2382 = vpack.c.b16 %v1932, %v1926
    %v2383 = vpack.c.b16 %v1933, %v1927
    %v2384 = vpack.c.b16 %v1934, %v1928
    %v2385 = vpack.c.b16 %v1935, %v1929
    %v2386 = vpack.c.b16 %v1942, %v1936
    %v2387 = vpack.c.b16 %v1943, %v1937
    %v2388 = vpack.c.b16 %v1944, %v1938
    %v2389 = vpack.c.b16 %v1945, %v1939
    %v2390 = vpack.c.b16 %v1946, %v1940
    %v2391 = vpack.c.b16 %v1947, %v1941
    %v2392 = vpack.c.b16 %v1954, %v1948
    %v2393 = vpack.c.b16 %v1955, %v1949
    %v2394 = vpack.c.b16 %v1956, %v1950
    %v2395 = vpack.c.b16 %v1957, %v1951
    %v2396 = vpack.c.b16 %v1958, %v1952
    %v2397 = vpack.c.b16 %v1959, %v1953
    %v2398 = vpack.c.b16 %v1966, %v1960
    %v2399 = vpack.c.b16 %v1967, %v1961
    %v2400 = vpack.c.b16 %v1968, %v1962
    %v2401 = vpack.c.b16 %v1969, %v1963
    %v2402 = vpack.c.b16 %v1970, %v1964
    %v2403 = vpack.c.b16 %v1971, %v1965
    %v2404 = vpack.c.b16 %v1978, %v1972
    %v2405 = vpack.c.b16 %v1979, %v1973
    %v2406 = vpack.c.b16 %v1980, %v1974
    %v2407 = vpack.c.b16 %v1981, %v1975
    %v2408 = vpack.c.b16 %v1982, %v1976
    %v2409 = vpack.c.b16 %v1983, %v1977
    %v2410 = vpack.c.b16 %v1990, %v1984
    %v2411 = vpack.c.b16 %v1991, %v1985
    %v2412 = vpack.c.b16 %v1992, %v1986
    %v2413 = vpack.c.b16 %v1993, %v1987
    %v2414 = vpack.c.b16 %v1994, %v1988
    %v2415 = vpack.c.b16 %v1995, %v1989
    %v2416 = vpack.c.b16 %v2002, %v1996
    %v2417 = vpack.c.b16 %v2003, %v1997
    %v2418 = vpack.c.b16 %v2004, %v1998
    %v2419 = vpack.c.b16 %v2005, %v1999
    %v2420 = vpack.c.b16 %v2006, %v2000
    %v2421 = vpack.c.b16 %v2007, %v2001
    %v2422 = vpack.c.b16 %v2014, %v2008
    %v2423 = vpack.c.b16 %v2015, %v2009
    %v2424 = vpack.c.b16 %v2016, %v2010
    %v2425 = vpack.c.b16 %v2017, %v2011
    %v2426 = vpack.c.b16 %v2018, %v2012
    %v2427 = vpack.c.b16 %v2019, %v2013
    %v2428 = vpack.c.b16 %v2026, %v2020
    %v2429 = vpack.c.b16 %v2027, %v2021
    %v2430 = vpack.c.b16 %v2028, %v2022
    %v2431 = vpack.c.b16 %v2029, %v2023
    %v2432 = vpack.c.b16 %v2030, %v2024
    %v2433 = vpack.c.b16 %v2031, %v2025
    %v2434 = vpack.c.b16 %v2038, %v2032
    %v2435 = vpack.c.b16 %v2039, %v2033
    %v2436 = vpack.c.b16 %v2040, %v2034
    %v2437 = vpack.c.b16 %v2041, %v2035
    %v2438 = vpack.c.b16 %v2042, %v2036
    %v2439 = vpack.c.b16 %v2043, %v2037
    %v2440 = vpack.c.b16 %v2050, %v2044
    %v2441 = vpack.c.b16 %v2051, %v2045
    %v2442 = vpack.c.b16 %v2052, %v2046
    %v2443 = vpack.c.b16 %v2053, %v2047
    %v2444 = vpack.c.b16 %v2054, %v2048
    %v2445 = vpack.c.b16 %v2055, %v2049
    %v2446 = vpack.c.b16 %v2062, %v2056
    %v2447 = vpack.c.b16 %v2063, %v2057
    %v2448 = vpack.c.b16 %v2064, %v2058
    %v2449 = vpack.c.b16 %v2065, %v2059
    %v2450 = vpack.c.b16 %v2066, %v2060
    %v2451 = vpack.c.b16 %v2067, %v2061
    %v2452 = vpack.c.b16 %v2074, %v2068
    %v2453 = vpack.c.b16 %v2075, %v2069
    %v2454 = vpack.c.b16 %v2076, %v2070
    %v2455 = vpack.c.b16 %v2077, %v2071
    %v2456 = vpack.c.b16 %v2078, %v2072
    %v2457 = vpack.c.b16 %v2079, %v2073
    %v2458 = vpack.c.b16 %v2086, %v2080
    %v2459 = vpack.c.b16 %v2087, %v2081
    %v2460 = vpack.c.b16 %v2088, %v2082
    %v2461 = vpack.c.b16 %v2089, %v2083
    %v2462 = vpack.c.b16 %v2090, %v2084
    %v2463 = vpack.c.b16 %v2091, %v2085
    %v2464 = vpack.c.b16 %v2098, %v2092
    %v2465 = vpack.c.b16 %v2099, %v2093
    %v2466 = vpack.c.b16 %v2100, %v2094
    %v2467 = vpack.c.b16 %v2101, %v2095
    %v2468 = vpack.c.b16 %v2102, %v2096
    %v2469 = vpack.c.b16 %v2103, %v2097
    %v2470 = vpack.c.b16 %v2110, %v2104
    %v2471 = vpack.c.b16 %v2111, %v2105
    %v2472 = vpack.c.b16 %v2112, %v2106
    %v2473 = vpack.c.b16 %v2113, %v2107
    %v2474 = vpack.c.b16 %v2114, %v2108
    %v2475 = vpack.c.b16 %v2115, %v2109
    %v2476 = vpack.c.b16 %v2122, %v2116
    %v2477 = vpack.c.b16 %v2123, %v2117
    %v2478 = vpack.c.b16 %v2124, %v2118
    %v2479 = vpack.c.b16 %v2125, %v2119
    %v2480 = vpack.c.b16 %v2126, %v2120
    %v2481 = vpack.c.b16 %v2127, %v2121
    %v2482 = vpack.c.b16 %v2134, %v2128
    %v2483 = vpack.c.b16 %v2135, %v2129
    %v2484 = vpack.c.b16 %v2136, %v2130
    %v2485 = vpack.c.b16 %v2137, %v2131
    %v2486 = vpack.c.b16 %v2138, %v2132
    %v2487 = vpack.c.b16 %v2139, %v2133
    %v2488 = vpack.c.b16 %v2146, %v2140
    %v2489 = vpack.c.b16 %v2147, %v2141
    %v2490 = vpack.c.b16 %v2148, %v2142
    %v2491 = vpack.c.b16 %v2149, %v2143
    %v2492 = vpack.c.b16 %v2150, %v2144
    %v2493 = vpack.c.b16 %v2151, %v2145
    %v2494 = vpack.c.b16 %v2158, %v2152
    %v2495 = vpack.c.b16 %v2159, %v2153
    %v2496 = vpack.c.b16 %v2160, %v2154
    %v2497 = vpack.c.b16 %v2161, %v2155
    %v2498 = vpack.c.b16 %v2162, %v2156
    %v2499 = vpack.c.b16 %v2163, %v2157
    %v2500 = vpack.c.b16 %v2170, %v2164
    %v2501 = vpack.c.b16 %v2171, %v2165
    %v2502 = vpack.c.b16 %v2172, %v2166
    %v2503 = vpack.c.b16 %v2173, %v2167
    %v2504 = vpack.c.b16 %v2174, %v2168
    %v2505 = vpack.c.b16 %v2175, %v2169
    %v2506 = vpack.c.b16 %v2182, %v2176
    %v2507 = vpack.c.b16 %v2183, %v2177
    %v2508 = vpack.c.b16 %v2184, %v2178
    %v2509 = vpack.c.b16 %v2185, %v2179
    %v2510 = vpack.c.b16 %v2186, %v2180
    %v2511 = vpack.c.b16 %v2187, %v2181
    %v2512 = vpack.c.b16 %v2194, %v2188
    %v2513 = vpack.c.b16 %v2195, %v2189
    %v2514 = vpack.c.b16 %v2196, %v2190
    %v2515 = vpack.c.b16 %v2197, %v2191
    %v2516 = vpack.c.b16 %v2198, %v2192
    %v2517 = vpack.c.b16 %v2199, %v2193
    %v2518 = vpack.c.b16 %v2206, %v2200
    %v2519 = vpack.c.b16 %v2207, %v2201
    %v2520 = vpack.c.b16 %v2208, %v2202
    %v2521 = vpack.c.b16 %v2209, %v2203
    %v2522 = vpack.c.b16 %v2210, %v2204
    %v2523 = vpack.c.b16 %v2211, %v2205
    %v2524 = vpack.c.b16 %v2218, %v2212
    %v2525 = vpack.c.b16 %v2219, %v2213
    %v2526 = vpack.c.b16 %v2220, %v2214
    %v2527 = vpack.c.b16 %v2221, %v2215
    %v2528 = vpack.c.b16 %v2222, %v2216
    %v2529 = vpack.c.b16 %v2223, %v2217
    %v2530 = vpack.c.b16 %v2230, %v2224
    %v2531 = vpack.c.b16 %v2231, %v2225
    %v2532 = vpack.c.b16 %v2232, %v2226
    %v2533 = vpack.c.b16 %v2233, %v2227
    %v2534 = vpack.c.b16 %v2234, %v2228
    %v2535 = vpack.c.b16 %v2235, %v2229
    %v2536 = vpack.c.b16 %v2242, %v2236
    %v2537 = vpack.c.b16 %v2243, %v2237
    %v2538 = vpack.c.b16 %v2244, %v2238
    %v2539 = vpack.c.b16 %v2245, %v2239
    %v2540 = vpack.c.b16 %v2246, %v2240
    %v2541 = vpack.c.b16 %v2247, %v2241
    %v2542 = vpack.c.b16 %v2254, %v2248
    %v2543 = vpack.c.b16 %v2255, %v2249
    %v2544 = vpack.c.b16 %v2256, %v2250
    %v2545 = vpack.c.b16 %v2257, %v2251
    %v2546 = vpack.c.b16 %v2258, %v2252
    %v2547 = vpack.c.b16 %v2259, %v2253
    %2836 = vmatprep.subr.bf16.mxu0 %v2303
    %2837 = vmatpush1.bf16.msra.mxu0 %v2302
    %2838 = vmatprep.subr.bf16.mxu0 %v2297
    %2839 = vmatpush1.bf16.msra.mxu0 %v2296
    %2840 = vmatprep.subr.bf16.mxu0 %v2291
    %2841 = vmatpush1.bf16.msra.mxu0 %v2290
    %2842 = vmatprep.subr.bf16.mxu0 %v2285
    %2843 = vmatpush1.bf16.msra.mxu0 %v2284
    %2844 = vmatprep.subr.bf16.mxu0 %v2279
    %2845 = vmatpush1.bf16.msra.mxu0 %v2278
    %2846 = vmatprep.subr.bf16.mxu0 %v2273
    %2847 = vmatpush1.bf16.msra.mxu0 %v2272
    %2848 = vmatprep.subr.bf16.mxu0 %v2267
    %2849 = vmatpush1.bf16.msra.mxu0 %v2266
    %2850 = vmatprep.subr.bf16.mxu0 %v2261
    %2851 = vmatpush1.bf16.msra.mxu0 %v2260
    %2852 = vmatprep.subr.bf16.mxu0 %v2351
    %2853 = vmatpush2.bf16.msra.mxu0 %v2350
    %2854 = vmatprep.subr.bf16.mxu0 %v2345
    %2855 = vmatpush2.bf16.msra.mxu0 %v2344
    %2856 = vmatprep.subr.bf16.mxu0 %v2339
    %2857 = vmatpush2.bf16.msra.mxu0 %v2338
    %2858 = vmatprep.subr.bf16.mxu0 %v2333
    %2859 = vmatpush2.bf16.msra.mxu0 %v2332
    %2860 = vmatprep.subr.bf16.mxu0 %v2327
    %2861 = vmatpush2.bf16.msra.mxu0 %v2326
    %2862 = vmatprep.subr.bf16.mxu0 %v2321
    %2863 = vmatpush2.bf16.msra.mxu0 %v2320
    %2864 = vmatprep.subr.bf16.mxu0 %v2315
    %2865 = vmatpush2.bf16.msra.mxu0 %v2314
    %2866 = vmatprep.subr.bf16.mxu0 %v2309
    %2867 = vmatpush2.bf16.msra.mxu0 %v2308
    %2868 = vmatprep.mubr.bf16.mxu0 %v1071
    %2869 = vmatmul.mubr.bf16.gmra.mxu0 %v1070
    %v2870 = vpop.f32.mrf.mxu0
    %v2871 = vadd.f32 %v1369, %v2870
    %v2872 = vpop.f32.mrf.mxu0
    %v2873 = vadd.f32 %v1373, %v2872
    %v2874 = vpop.f32.mrf.mxu0
    %v2875 = vpop.f32.mrf.mxu0
    %2876 = vdwg.mxu0
    %2877 = vmatprep.subr.bf16.mxu0 %v2399
    %2878 = vmatpush1.bf16.msra.mxu0 %v2398
    %2879 = vmatprep.subr.bf16.mxu0 %v2393
    %2880 = vmatpush1.bf16.msra.mxu0 %v2392
    %2881 = vmatprep.subr.bf16.mxu0 %v2387
    %2882 = vmatpush1.bf16.msra.mxu0 %v2386
    %2883 = vmatprep.subr.bf16.mxu0 %v2381
    %2884 = vmatpush1.bf16.msra.mxu0 %v2380
    %2885 = vmatprep.subr.bf16.mxu0 %v2375
    %2886 = vmatpush1.bf16.msra.mxu0 %v2374
    %2887 = vmatprep.subr.bf16.mxu0 %v2369
    %2888 = vmatpush1.bf16.msra.mxu0 %v2368
    %2889 = vmatprep.subr.bf16.mxu0 %v2363
    %2890 = vmatpush1.bf16.msra.mxu0 %v2362
    %2891 = vmatprep.subr.bf16.mxu0 %v2357
    %2892 = vmatpush1.bf16.msra.mxu0 %v2356
    %2893 = vmatprep.subr.bf16.mxu0 %v2447
    %2894 = vmatpush2.bf16.msra.mxu0 %v2446
    %2895 = vmatprep.subr.bf16.mxu0 %v2441
    %2896 = vmatpush2.bf16.msra.mxu0 %v2440
    %2897 = vmatprep.subr.bf16.mxu0 %v2435
    %2898 = vmatpush2.bf16.msra.mxu0 %v2434
    %2899 = vmatprep.subr.bf16.mxu0 %v2429
    %2900 = vmatpush2.bf16.msra.mxu0 %v2428
    %2901 = vmatprep.subr.bf16.mxu0 %v2423
    %2902 = vmatpush2.bf16.msra.mxu0 %v2422
    %2903 = vmatprep.subr.bf16.mxu0 %v2417
    %2904 = vmatpush2.bf16.msra.mxu0 %v2416
    %2905 = vmatprep.subr.bf16.mxu0 %v2411
    %2906 = vmatpush2.bf16.msra.mxu0 %v2410
    %2907 = vmatprep.subr.bf16.mxu0 %v2405
    %2908 = vmatpush2.bf16.msra.mxu0 %v2404
    %2909 = vmatprep.mubr.bf16.mxu0 %v1073
    %2910 = vmatmul.mubr.bf16.gmra.mxu0 %v1072
    %v2911 = vpop.f32.mrf.mxu0
    %v2912 = vadd.f32 %v2871, %v2911
    %v2913 = vpop.f32.mrf.mxu0
    %v2914 = vadd.f32 %v2873, %v2913
    %v2915 = vpop.f32.mrf.mxu0
    %v2916 = vpop.f32.mrf.mxu0
    %2917 = vdwg.mxu0
    %2918 = vmatprep.subr.bf16.mxu0 %v2495
    %2919 = vmatpush1.bf16.msra.mxu0 %v2494
    %2920 = vmatprep.subr.bf16.mxu0 %v2489
    %2921 = vmatpush1.bf16.msra.mxu0 %v2488
    %2922 = vmatprep.subr.bf16.mxu0 %v2483
    %2923 = vmatpush1.bf16.msra.mxu0 %v2482
    %2924 = vmatprep.subr.bf16.mxu0 %v2477
    %2925 = vmatpush1.bf16.msra.mxu0 %v2476
    %2926 = vmatprep.subr.bf16.mxu0 %v2471
    %2927 = vmatpush1.bf16.msra.mxu0 %v2470
    %2928 = vmatprep.subr.bf16.mxu0 %v2465
    %2929 = vmatpush1.bf16.msra.mxu0 %v2464
    %2930 = vmatprep.subr.bf16.mxu0 %v2459
    %2931 = vmatpush1.bf16.msra.mxu0 %v2458
    %2932 = vmatprep.subr.bf16.mxu0 %v2453
    %2933 = vmatpush1.bf16.msra.mxu0 %v2452
    %2934 = vmatprep.subr.bf16.mxu0 %v2543
    %2935 = vmatpush2.bf16.msra.mxu0 %v2542
    %2936 = vmatprep.subr.bf16.mxu0 %v2537
    %2937 = vmatpush2.bf16.msra.mxu0 %v2536
    %2938 = vmatprep.subr.bf16.mxu0 %v2531
    %2939 = vmatpush2.bf16.msra.mxu0 %v2530
    %2940 = vmatprep.subr.bf16.mxu0 %v2525
    %2941 = vmatpush2.bf16.msra.mxu0 %v2524
    %2942 = vmatprep.subr.bf16.mxu0 %v2519
    %2943 = vmatpush2.bf16.msra.mxu0 %v2518
    %2944 = vmatprep.subr.bf16.mxu0 %v2513
    %2945 = vmatpush2.bf16.msra.mxu0 %v2512
    %2946 = vmatprep.subr.bf16.mxu0 %v2507
    %2947 = vmatpush2.bf16.msra.mxu0 %v2506
    %2948 = vmatprep.subr.bf16.mxu0 %v2501
    %2949 = vmatpush2.bf16.msra.mxu0 %v2500
    %2950 = vmatprep.mubr.bf16.mxu0 %v1075
    %2951 = vmatmul.mubr.bf16.gmra.mxu0 %v1074
    %v2952 = vpop.f32.mrf.mxu0
    %v2953 = vadd.f32 %v2912, %v2952
    %v2954 = vpop.f32.mrf.mxu0
    %v2955 = vadd.f32 %v2914, %v2954
    %v2956 = vpop.f32.mrf.mxu0
    %v2957 = vpop.f32.mrf.mxu0
    %2958 = vdwg.mxu0
    %2959 = vmatprep.subr.bf16.mxu0 %v2305
    %2960 = vmatpush1.bf16.msra.mxu0 %v2304
    %2961 = vmatprep.subr.bf16.mxu0 %v2299
    %2962 = vmatpush1.bf16.msra.mxu0 %v2298
    %2963 = vmatprep.subr.bf16.mxu0 %v2293
    %2964 = vmatpush1.bf16.msra.mxu0 %v2292
    %2965 = vmatprep.subr.bf16.mxu0 %v2287
    %2966 = vmatpush1.bf16.msra.mxu0 %v2286
    %2967 = vmatprep.subr.bf16.mxu0 %v2281
    %2968 = vmatpush1.bf16.msra.mxu0 %v2280
    %2969 = vmatprep.subr.bf16.mxu0 %v2275
    %2970 = vmatpush1.bf16.msra.mxu0 %v2274
    %2971 = vmatprep.subr.bf16.mxu0 %v2269
    %2972 = vmatpush1.bf16.msra.mxu0 %v2268
    %2973 = vmatprep.subr.bf16.mxu0 %v2263
    %2974 = vmatpush1.bf16.msra.mxu0 %v2262
    %2975 = vmatprep.subr.bf16.mxu0 %v2353
    %2976 = vmatpush2.bf16.msra.mxu0 %v2352
    %2977 = vmatprep.subr.bf16.mxu0 %v2347
    %2978 = vmatpush2.bf16.msra.mxu0 %v2346
    %2979 = vmatprep.subr.bf16.mxu0 %v2341
    %2980 = vmatpush2.bf16.msra.mxu0 %v2340
    %2981 = vmatprep.subr.bf16.mxu0 %v2335
    %2982 = vmatpush2.bf16.msra.mxu0 %v2334
    %2983 = vmatprep.subr.bf16.mxu0 %v2329
    %2984 = vmatpush2.bf16.msra.mxu0 %v2328
    %2985 = vmatprep.subr.bf16.mxu0 %v2323
    %2986 = vmatpush2.bf16.msra.mxu0 %v2322
    %2987 = vmatprep.subr.bf16.mxu0 %v2317
    %2988 = vmatpush2.bf16.msra.mxu0 %v2316
    %2989 = vmatprep.subr.bf16.mxu0 %v2311
    %2990 = vmatpush2.bf16.msra.mxu0 %v2310
    %2991 = vmatprep.mubr.bf16.mxu0 %v1071
    %2992 = vmatmul.mubr.bf16.gmra.mxu0 %v1070
    %v2993 = vpop.f32.mrf.mxu0
    %v2994 = vadd.f32 %v1377, %v2993
    %v2995 = vpop.f32.mrf.mxu0
    %v2996 = vadd.f32 %v1381, %v2995
    %v2997 = vpop.f32.mrf.mxu0
    %v2998 = vpop.f32.mrf.mxu0
    %2999 = vdwg.mxu0
    %3000 = vmatprep.subr.bf16.mxu0 %v2401
    %3001 = vmatpush1.bf16.msra.mxu0 %v2400
    %3002 = vmatprep.subr.bf16.mxu0 %v2395
    %3003 = vmatpush1.bf16.msra.mxu0 %v2394
    %3004 = vmatprep.subr.bf16.mxu0 %v2389
    %3005 = vmatpush1.bf16.msra.mxu0 %v2388
    %3006 = vmatprep.subr.bf16.mxu0 %v2383
    %3007 = vmatpush1.bf16.msra.mxu0 %v2382
    %3008 = vmatprep.subr.bf16.mxu0 %v2377
    %3009 = vmatpush1.bf16.msra.mxu0 %v2376
    %3010 = vmatprep.subr.bf16.mxu0 %v2371
    %3011 = vmatpush1.bf16.msra.mxu0 %v2370
    %3012 = vmatprep.subr.bf16.mxu0 %v2365
    %3013 = vmatpush1.bf16.msra.mxu0 %v2364
    %3014 = vmatprep.subr.bf16.mxu0 %v2359
    %3015 = vmatpush1.bf16.msra.mxu0 %v2358
    %3016 = vmatprep.subr.bf16.mxu0 %v2449
    %3017 = vmatpush2.bf16.msra.mxu0 %v2448
    %3018 = vmatprep.subr.bf16.mxu0 %v2443
    %3019 = vmatpush2.bf16.msra.mxu0 %v2442
    %3020 = vmatprep.subr.bf16.mxu0 %v2437
    %3021 = vmatpush2.bf16.msra.mxu0 %v2436
    %3022 = vmatprep.subr.bf16.mxu0 %v2431
    %3023 = vmatpush2.bf16.msra.mxu0 %v2430
    %3024 = vmatprep.subr.bf16.mxu0 %v2425
    %3025 = vmatpush2.bf16.msra.mxu0 %v2424
    %3026 = vmatprep.subr.bf16.mxu0 %v2419
    %3027 = vmatpush2.bf16.msra.mxu0 %v2418
    %3028 = vmatprep.subr.bf16.mxu0 %v2413
    %3029 = vmatpush2.bf16.msra.mxu0 %v2412
    %3030 = vmatprep.subr.bf16.mxu0 %v2407
    %3031 = vmatpush2.bf16.msra.mxu0 %v2406
    %3032 = vmatprep.mubr.bf16.mxu0 %v1073
    %3033 = vmatmul.mubr.bf16.gmra.mxu0 %v1072
    %v3034 = vpop.f32.mrf.mxu0
    %v3035 = vadd.f32 %v2994, %v3034
    %v3036 = vpop.f32.mrf.mxu0
    %v3037 = vadd.f32 %v2996, %v3036
    %v3038 = vpop.f32.mrf.mxu0
    %v3039 = vpop.f32.mrf.mxu0
    %3040 = vdwg.mxu0
    %3041 = vmatprep.subr.bf16.mxu0 %v2497
    %3042 = vmatpush1.bf16.msra.mxu0 %v2496
    %3043 = vmatprep.subr.bf16.mxu0 %v2491
    %3044 = vmatpush1.bf16.msra.mxu0 %v2490
    %3045 = vmatprep.subr.bf16.mxu0 %v2485
    %3046 = vmatpush1.bf16.msra.mxu0 %v2484
    %3047 = vmatprep.subr.bf16.mxu0 %v2479
    %3048 = vmatpush1.bf16.msra.mxu0 %v2478
    %3049 = vmatprep.subr.bf16.mxu0 %v2473
    %3050 = vmatpush1.bf16.msra.mxu0 %v2472
    %3051 = vmatprep.subr.bf16.mxu0 %v2467
    %3052 = vmatpush1.bf16.msra.mxu0 %v2466
    %3053 = vmatprep.subr.bf16.mxu0 %v2461
    %3054 = vmatpush1.bf16.msra.mxu0 %v2460
    %3055 = vmatprep.subr.bf16.mxu0 %v2455
    %3056 = vmatpush1.bf16.msra.mxu0 %v2454
    %3057 = vmatprep.subr.bf16.mxu0 %v2545
    %3058 = vmatpush2.bf16.msra.mxu0 %v2544
    %3059 = vmatprep.subr.bf16.mxu0 %v2539
    %3060 = vmatpush2.bf16.msra.mxu0 %v2538
    %3061 = vmatprep.subr.bf16.mxu0 %v2533
    %3062 = vmatpush2.bf16.msra.mxu0 %v2532
    %3063 = vmatprep.subr.bf16.mxu0 %v2527
    %3064 = vmatpush2.bf16.msra.mxu0 %v2526
    %3065 = vmatprep.subr.bf16.mxu0 %v2521
    %3066 = vmatpush2.bf16.msra.mxu0 %v2520
    %3067 = vmatprep.subr.bf16.mxu0 %v2515
    %3068 = vmatpush2.bf16.msra.mxu0 %v2514
    %3069 = vmatprep.subr.bf16.mxu0 %v2509
    %3070 = vmatpush2.bf16.msra.mxu0 %v2508
    %3071 = vmatprep.subr.bf16.mxu0 %v2503
    %3072 = vmatpush2.bf16.msra.mxu0 %v2502
    %3073 = vmatprep.mubr.bf16.mxu0 %v1075
    %3074 = vmatmul.mubr.bf16.gmra.mxu0 %v1074
    %v3075 = vpop.f32.mrf.mxu0
    %v3076 = vadd.f32 %v3035, %v3075
    %v3077 = vpop.f32.mrf.mxu0
    %v3078 = vadd.f32 %v3037, %v3077
    %v3079 = vpop.f32.mrf.mxu0
    %v3080 = vpop.f32.mrf.mxu0
    %3081 = vdwg.mxu0
    %3082 = vmatprep.subr.bf16.mxu0 %v2307
    %3083 = vmatpush1.bf16.msra.mxu0 %v2306
    %3084 = vmatprep.subr.bf16.mxu0 %v2301
    %3085 = vmatpush1.bf16.msra.mxu0 %v2300
    %3086 = vmatprep.subr.bf16.mxu0 %v2295
    %3087 = vmatpush1.bf16.msra.mxu0 %v2294
    %3088 = vmatprep.subr.bf16.mxu0 %v2289
    %3089 = vmatpush1.bf16.msra.mxu0 %v2288
    %3090 = vmatprep.subr.bf16.mxu0 %v2283
    %3091 = vmatpush1.bf16.msra.mxu0 %v2282
    %3092 = vmatprep.subr.bf16.mxu0 %v2277
    %3093 = vmatpush1.bf16.msra.mxu0 %v2276
    %3094 = vmatprep.subr.bf16.mxu0 %v2271
    %3095 = vmatpush1.bf16.msra.mxu0 %v2270
    %3096 = vmatprep.subr.bf16.mxu0 %v2265
    %3097 = vmatpush1.bf16.msra.mxu0 %v2264
    %3098 = vmatprep.subr.bf16.mxu0 %v2355
    %3099 = vmatpush2.bf16.msra.mxu0 %v2354
    %3100 = vmatprep.subr.bf16.mxu0 %v2349
    %3101 = vmatpush2.bf16.msra.mxu0 %v2348
    %3102 = vmatprep.subr.bf16.mxu0 %v2343
    %3103 = vmatpush2.bf16.msra.mxu0 %v2342
    %3104 = vmatprep.subr.bf16.mxu0 %v2337
    %3105 = vmatpush2.bf16.msra.mxu0 %v2336
    %3106 = vmatprep.subr.bf16.mxu0 %v2331
    %3107 = vmatpush2.bf16.msra.mxu0 %v2330
    %3108 = vmatprep.subr.bf16.mxu0 %v2325
    %3109 = vmatpush2.bf16.msra.mxu0 %v2324
    %3110 = vmatprep.subr.bf16.mxu0 %v2319
    %3111 = vmatpush2.bf16.msra.mxu0 %v2318
    %3112 = vmatprep.subr.bf16.mxu0 %v2313
    %3113 = vmatpush2.bf16.msra.mxu0 %v2312
    %3114 = vmatprep.mubr.bf16.mxu0 %v1071
    %3115 = vmatmul.mubr.bf16.gmra.mxu0 %v1070
    %v3116 = vpop.f32.mrf.mxu0
    %v3117 = vadd.f32 %v1385, %v3116
    %v3118 = vpop.f32.mrf.mxu0
    %v3119 = vadd.f32 %v1389, %v3118
    %v3120 = vpop.f32.mrf.mxu0
    %v3121 = vpop.f32.mrf.mxu0
    %3122 = vdwg.mxu0
    %3123 = vmatprep.subr.bf16.mxu0 %v2403
    %3124 = vmatpush1.bf16.msra.mxu0 %v2402
    %3125 = vmatprep.subr.bf16.mxu0 %v2397
    %3126 = vmatpush1.bf16.msra.mxu0 %v2396
    %3127 = vmatprep.subr.bf16.mxu0 %v2391
    %3128 = vmatpush1.bf16.msra.mxu0 %v2390
    %3129 = vmatprep.subr.bf16.mxu0 %v2385
    %3130 = vmatpush1.bf16.msra.mxu0 %v2384
    %3131 = vmatprep.subr.bf16.mxu0 %v2379
    %3132 = vmatpush1.bf16.msra.mxu0 %v2378
    %3133 = vmatprep.subr.bf16.mxu0 %v2373
    %3134 = vmatpush1.bf16.msra.mxu0 %v2372
    %3135 = vmatprep.subr.bf16.mxu0 %v2367
    %3136 = vmatpush1.bf16.msra.mxu0 %v2366
    %3137 = vmatprep.subr.bf16.mxu0 %v2361
    %3138 = vmatpush1.bf16.msra.mxu0 %v2360
    %3139 = vmatprep.subr.bf16.mxu0 %v2451
    %3140 = vmatpush2.bf16.msra.mxu0 %v2450
    %3141 = vmatprep.subr.bf16.mxu0 %v2445
    %3142 = vmatpush2.bf16.msra.mxu0 %v2444
    %3143 = vmatprep.subr.bf16.mxu0 %v2439
    %3144 = vmatpush2.bf16.msra.mxu0 %v2438
    %3145 = vmatprep.subr.bf16.mxu0 %v2433
    %3146 = vmatpush2.bf16.msra.mxu0 %v2432
    %3147 = vmatprep.subr.bf16.mxu0 %v2427
    %3148 = vmatpush2.bf16.msra.mxu0 %v2426
    %3149 = vmatprep.subr.bf16.mxu0 %v2421
    %3150 = vmatpush2.bf16.msra.mxu0 %v2420
    %3151 = vmatprep.subr.bf16.mxu0 %v2415
    %3152 = vmatpush2.bf16.msra.mxu0 %v2414
    %3153 = vmatprep.subr.bf16.mxu0 %v2409
    %3154 = vmatpush2.bf16.msra.mxu0 %v2408
    %3155 = vmatprep.mubr.bf16.mxu0 %v1073
    %3156 = vmatmul.mubr.bf16.gmra.mxu0 %v1072
    %v3157 = vpop.f32.mrf.mxu0
    %v3158 = vadd.f32 %v3117, %v3157
    %v3159 = vpop.f32.mrf.mxu0
    %v3160 = vadd.f32 %v3119, %v3159
    %v3161 = vpop.f32.mrf.mxu0
    %v3162 = vpop.f32.mrf.mxu0
    %3163 = vdwg.mxu0
    %3164 = vmatprep.subr.bf16.mxu0 %v2499
    %3165 = vmatpush1.bf16.msra.mxu0 %v2498
    %3166 = vmatprep.subr.bf16.mxu0 %v2493
    %3167 = vmatpush1.bf16.msra.mxu0 %v2492
    %3168 = vmatprep.subr.bf16.mxu0 %v2487
    %3169 = vmatpush1.bf16.msra.mxu0 %v2486
    %3170 = vmatprep.subr.bf16.mxu0 %v2481
    %3171 = vmatpush1.bf16.msra.mxu0 %v2480
    %3172 = vmatprep.subr.bf16.mxu0 %v2475
    %3173 = vmatpush1.bf16.msra.mxu0 %v2474
    %3174 = vmatprep.subr.bf16.mxu0 %v2469
    %3175 = vmatpush1.bf16.msra.mxu0 %v2468
    %3176 = vmatprep.subr.bf16.mxu0 %v2463
    %3177 = vmatpush1.bf16.msra.mxu0 %v2462
    %3178 = vmatprep.subr.bf16.mxu0 %v2457
    %3179 = vmatpush1.bf16.msra.mxu0 %v2456
    %3180 = vmatprep.subr.bf16.mxu0 %v2547
    %3181 = vmatpush2.bf16.msra.mxu0 %v2546
    %3182 = vmatprep.subr.bf16.mxu0 %v2541
    %3183 = vmatpush2.bf16.msra.mxu0 %v2540
    %3184 = vmatprep.subr.bf16.mxu0 %v2535
    %3185 = vmatpush2.bf16.msra.mxu0 %v2534
    %3186 = vmatprep.subr.bf16.mxu0 %v2529
    %3187 = vmatpush2.bf16.msra.mxu0 %v2528
    %3188 = vmatprep.subr.bf16.mxu0 %v2523
    %3189 = vmatpush2.bf16.msra.mxu0 %v2522
    %3190 = vmatprep.subr.bf16.mxu0 %v2517
    %3191 = vmatpush2.bf16.msra.mxu0 %v2516
    %3192 = vmatprep.subr.bf16.mxu0 %v2511
    %3193 = vmatpush2.bf16.msra.mxu0 %v2510
    %3194 = vmatprep.subr.bf16.mxu0 %v2505
    %3195 = vmatpush2.bf16.msra.mxu0 %v2504
    %3196 = vmatprep.mubr.bf16.mxu0 %v1075
    %3197 = vmatmul.mubr.bf16.gmra.mxu0 %v1074
    %v3198 = vpop.f32.mrf.mxu0
    %v3199 = vadd.f32 %v3158, %v3198
    %v3200 = vpop.f32.mrf.mxu0
    %v3201 = vadd.f32 %v3160, %v3200
    %v3202 = vpop.f32.mrf.mxu0
    %v3203 = vpop.f32.mrf.mxu0
    %3204 = vdwg.mxu0
    %v3205 = vmax.f32 %v2953, 0.0
    %v3206 = vmax.f32 %v2955, 0.0
    %v3207 = vmax.f32 %v3076, 0.0
    %v3208 = vmax.f32 %v3078, 0.0
    %v3209 = vmax.f32 %v3199, 0.0
    %v3210 = vmax.f32 %v3201, 0.0
    %v3211 = vpack.c.bf16 %v3205, %v3205
    %v3212 = vpack.c.bf16 %v3206, %v3206
    %v3213 = vpack.c.bf16 %v3207, %v3207
    %v3214 = vpack.c.bf16 %v3208, %v3208
    %v3215 = vpack.c.bf16 %v3209, %v3209
    %v3216 = vpack.c.bf16 %v3210, %v3210
    %v3217 = vld [vmem:[#allocation11] sm:$0xf]
    %v3218 = vld [vmem:[#allocation11 + $0x4] sm:$0xf]
    %v3219 = vld [vmem:[#allocation11 + $0x8] sm:$0xf]
    %v3220 = vld [vmem:[#allocation11 + $0xc] sm:$0xf]
    %v3221 = vld [vmem:[#allocation11 + $0x10] sm:$0xf]
    %v3222 = vld [vmem:[#allocation11 + $0x14] sm:$0xf]
    %v3223 = vld [vmem:[#allocation11 + $0x18] sm:$0xf]
    %v3224 = vld [vmem:[#allocation11 + $0x1c] sm:$0xf]
    %v3225 = vld [vmem:[#allocation11 + $0x20] sm:$0xf]
    %v3226 = vld [vmem:[#allocation11 + $0x24] sm:$0xf]
    %v3227 = vld [vmem:[#allocation11 + $0x28] sm:$0xf]
    %v3228 = vld [vmem:[#allocation11 + $0x2c] sm:$0xf]
    %v3229 = vld [vmem:[#allocation11 + $0x30] sm:$0xf]
    %v3230 = vld [vmem:[#allocation11 + $0x34] sm:$0xf]
    %v3231 = vld [vmem:[#allocation11 + $0x38] sm:$0xf]
    %v3232 = vld [vmem:[#allocation11 + $0x3c] sm:$0xf]
    %v3233 = vld [vmem:[#allocation11 + $0x40] sm:$0xf]
    %v3234 = vld [vmem:[#allocation11 + $0x44] sm:$0xf]
    %v3235 = vld [vmem:[#allocation11 + $0x48] sm:$0xf]
    %v3236 = vld [vmem:[#allocation11 + $0x4c] sm:$0xf]
    %v3237 = vld [vmem:[#allocation11 + $0x50] sm:$0xf]
    %v3238 = vld [vmem:[#allocation11 + $0x54] sm:$0xf]
    %v3239 = vld [vmem:[#allocation11 + $0x58] sm:$0xf]
    %v3240 = vld [vmem:[#allocation11 + $0x5c] sm:$0xf]
    %v3241 = vld [vmem:[#allocation11 + $0x60] sm:$0xf]
    %v3242 = vld [vmem:[#allocation11 + $0x64] sm:$0xf]
    %v3243 = vld [vmem:[#allocation11 + $0x68] sm:$0xf]
    %v3244 = vld [vmem:[#allocation11 + $0x6c] sm:$0xf]
    %v3245 = vld [vmem:[#allocation11 + $0x70] sm:$0xf]
    %v3246 = vld [vmem:[#allocation11 + $0x74] sm:$0xf]
    %v3247 = vld [vmem:[#allocation11 + $0x78] sm:$0xf]
    %v3248 = vld [vmem:[#allocation11 + $0x7c] sm:$0xf]
    %v3249 = vld [vmem:[#allocation11 + $0x80] sm:$0xf]
    %v3250 = vld [vmem:[#allocation11 + $0x84] sm:$0xf]
    %v3251 = vld [vmem:[#allocation11 + $0x88] sm:$0xf]
    %v3252 = vld [vmem:[#allocation11 + $0x8c] sm:$0xf]
    %v3253 = vld [vmem:[#allocation11 + $0x90] sm:$0xf]
    %v3254 = vld [vmem:[#allocation11 + $0x94] sm:$0xf]
    %v3255 = vld [vmem:[#allocation11 + $0x98] sm:$0xf]
    %v3256 = vld [vmem:[#allocation11 + $0x9c] sm:$0xf]
    %v3257 = vld [vmem:[#allocation11 + $0xa0] sm:$0xf]
    %v3258 = vld [vmem:[#allocation11 + $0xa4] sm:$0xf]
    %v3259 = vld [vmem:[#allocation11 + $0xa8] sm:$0xf]
    %v3260 = vld [vmem:[#allocation11 + $0xac] sm:$0xf]
    %v3261 = vld [vmem:[#allocation11 + $0xb0] sm:$0xf]
    %v3262 = vld [vmem:[#allocation11 + $0xb4] sm:$0xf]
    %v3263 = vld [vmem:[#allocation11 + $0xb8] sm:$0xf]
    %v3264 = vld [vmem:[#allocation11 + $0xbc] sm:$0xf]
    %v3265 = vld [vmem:[#allocation11 + $0xc0] sm:$0xf]
    %v3266 = vld [vmem:[#allocation11 + $0xc4] sm:$0xf]
    %v3267 = vld [vmem:[#allocation11 + $0xc8] sm:$0xf]
    %v3268 = vld [vmem:[#allocation11 + $0xcc] sm:$0xf]
    %v3269 = vld [vmem:[#allocation11 + $0xd0] sm:$0xf]
    %v3270 = vld [vmem:[#allocation11 + $0xd4] sm:$0xf]
    %v3271 = vld [vmem:[#allocation11 + $0xd8] sm:$0xf]
    %v3272 = vld [vmem:[#allocation11 + $0xdc] sm:$0xf]
    %v3273 = vld [vmem:[#allocation11 + $0xe0] sm:$0xf]
    %v3274 = vld [vmem:[#allocation11 + $0xe4] sm:$0xf]
    %v3275 = vld [vmem:[#allocation11 + $0xe8] sm:$0xf]
    %v3276 = vld [vmem:[#allocation11 + $0xec] sm:$0xf]
    %v3277 = vld [vmem:[#allocation11 + $0xf0] sm:$0xf]
    %v3278 = vld [vmem:[#allocation11 + $0xf4] sm:$0xf]
    %v3279 = vld [vmem:[#allocation11 + $0xf8] sm:$0xf]
    %v3280 = vld [vmem:[#allocation11 + $0xfc] sm:$0xf]
    %v3281 = vld [vmem:[#allocation11 + $0x100] sm:$0xf]
    %v3282 = vld [vmem:[#allocation11 + $0x104] sm:$0xf]
    %v3283 = vld [vmem:[#allocation11 + $0x108] sm:$0xf]
    %v3284 = vld [vmem:[#allocation11 + $0x10c] sm:$0xf]
    %v3285 = vld [vmem:[#allocation11 + $0x110] sm:$0xf]
    %v3286 = vld [vmem:[#allocation11 + $0x114] sm:$0xf]
    %v3287 = vld [vmem:[#allocation11 + $0x118] sm:$0xf]
    %v3288 = vld [vmem:[#allocation11 + $0x11c] sm:$0xf]
    %v3289 = vld [vmem:[#allocation11 + $0x120] sm:$0xf]
    %v3290 = vld [vmem:[#allocation11 + $0x124] sm:$0xf]
    %v3291 = vld [vmem:[#allocation11 + $0x128] sm:$0xf]
    %v3292 = vld [vmem:[#allocation11 + $0x12c] sm:$0xf]
    %v3293 = vld [vmem:[#allocation11 + $0x130] sm:$0xf]
    %v3294 = vld [vmem:[#allocation11 + $0x134] sm:$0xf]
    %v3295 = vld [vmem:[#allocation11 + $0x138] sm:$0xf]
    %v3296 = vld [vmem:[#allocation11 + $0x13c] sm:$0xf]
    %v3297 = vld [vmem:[#allocation11 + $0x140] sm:$0xf]
    %v3298 = vld [vmem:[#allocation11 + $0x144] sm:$0xf]
    %v3299 = vld [vmem:[#allocation11 + $0x148] sm:$0xf]
    %v3300 = vld [vmem:[#allocation11 + $0x14c] sm:$0xf]
    %v3301 = vld [vmem:[#allocation11 + $0x150] sm:$0xf]
    %v3302 = vld [vmem:[#allocation11 + $0x154] sm:$0xf]
    %v3303 = vld [vmem:[#allocation11 + $0x158] sm:$0xf]
    %v3304 = vld [vmem:[#allocation11 + $0x15c] sm:$0xf]
    %v3305 = vld [vmem:[#allocation11 + $0x160] sm:$0xf]
    %v3306 = vld [vmem:[#allocation11 + $0x164] sm:$0xf]
    %v3307 = vld [vmem:[#allocation11 + $0x168] sm:$0xf]
    %v3308 = vld [vmem:[#allocation11 + $0x16c] sm:$0xf]
    %v3309 = vld [vmem:[#allocation11 + $0x170] sm:$0xf]
    %v3310 = vld [vmem:[#allocation11 + $0x174] sm:$0xf]
    %v3311 = vld [vmem:[#allocation11 + $0x178] sm:$0xf]
    %v3312 = vld [vmem:[#allocation11 + $0x17c] sm:$0xf]
    %v3313 = vld [vmem:[#allocation13] sm:$0x1]
    %v3315 = vlaneseq
    %v3316 = vshrl.u32 %v3315, 7
    %v3317 = vsub.s32 0, %v3316
    %v3318 = vrot.slane %v3313, %v3317
    %v3416 = vunpack.c.l.b16 %v3217
    %v3417 = vunpack.c.l.b16 %v3218
    %v3418 = vunpack.c.l.b16 %v3219
    %v3419 = vunpack.c.l.b16 %v3220
    %v3420 = vunpack.c.l.b16 %v3221
    %v3421 = vunpack.c.l.b16 %v3222
    %v3422 = vunpack.c.l.b16 %v3223
    %v3423 = vunpack.c.l.b16 %v3224
    %v3424 = vunpack.c.l.b16 %v3225
    %v3425 = vunpack.c.l.b16 %v3226
    %v3426 = vunpack.c.l.b16 %v3227
    %v3427 = vunpack.c.l.b16 %v3228
    %v3428 = vunpack.c.l.b16 %v3229
    %v3429 = vunpack.c.l.b16 %v3230
    %v3430 = vunpack.c.l.b16 %v3231
    %v3431 = vunpack.c.l.b16 %v3232
    %v3432 = vunpack.c.l.b16 %v3233
    %v3433 = vunpack.c.l.b16 %v3234
    %v3434 = vunpack.c.l.b16 %v3235
    %v3435 = vunpack.c.l.b16 %v3236
    %v3436 = vunpack.c.l.b16 %v3237
    %v3437 = vunpack.c.l.b16 %v3238
    %v3438 = vunpack.c.l.b16 %v3239
    %v3439 = vunpack.c.l.b16 %v3240
    %v3440 = vunpack.c.l.b16 %v3241
    %v3441 = vunpack.c.l.b16 %v3242
    %v3442 = vunpack.c.l.b16 %v3243
    %v3443 = vunpack.c.l.b16 %v3244
    %v3444 = vunpack.c.l.b16 %v3245
    %v3445 = vunpack.c.l.b16 %v3246
    %v3446 = vunpack.c.l.b16 %v3247
    %v3447 = vunpack.c.l.b16 %v3248
    %v3448 = vunpack.c.l.b16 %v3249
    %v3449 = vunpack.c.l.b16 %v3250
    %v3450 = vunpack.c.l.b16 %v3251
    %v3451 = vunpack.c.l.b16 %v3252
    %v3452 = vunpack.c.l.b16 %v3253
    %v3453 = vunpack.c.l.b16 %v3254
    %v3454 = vunpack.c.l.b16 %v3255
    %v3455 = vunpack.c.l.b16 %v3256
    %v3456 = vunpack.c.l.b16 %v3257
    %v3457 = vunpack.c.l.b16 %v3258
    %v3458 = vunpack.c.l.b16 %v3259
    %v3459 = vunpack.c.l.b16 %v3260
    %v3460 = vunpack.c.l.b16 %v3261
    %v3461 = vunpack.c.l.b16 %v3262
    %v3462 = vunpack.c.l.b16 %v3263
    %v3463 = vunpack.c.l.b16 %v3264
    %v3464 = vunpack.c.l.b16 %v3265
    %v3465 = vunpack.c.l.b16 %v3266
    %v3466 = vunpack.c.l.b16 %v3267
    %v3467 = vunpack.c.l.b16 %v3268
    %v3468 = vunpack.c.l.b16 %v3269
    %v3469 = vunpack.c.l.b16 %v3270
    %v3470 = vunpack.c.l.b16 %v3271
    %v3471 = vunpack.c.l.b16 %v3272
    %v3472 = vunpack.c.l.b16 %v3273
    %v3473 = vunpack.c.l.b16 %v3274
    %v3474 = vunpack.c.l.b16 %v3275
    %v3475 = vunpack.c.l.b16 %v3276
    %v3476 = vunpack.c.l.b16 %v3277
    %v3477 = vunpack.c.l.b16 %v3278
    %v3478 = vunpack.c.l.b16 %v3279
    %v3479 = vunpack.c.l.b16 %v3280
    %v3480 = vunpack.c.l.b16 %v3281
    %v3481 = vunpack.c.l.b16 %v3282
    %v3482 = vunpack.c.l.b16 %v3283
    %v3483 = vunpack.c.l.b16 %v3284
    %v3484 = vunpack.c.l.b16 %v3285
    %v3485 = vunpack.c.l.b16 %v3286
    %v3486 = vunpack.c.l.b16 %v3287
    %v3487 = vunpack.c.l.b16 %v3288
    %v3488 = vunpack.c.l.b16 %v3289
    %v3489 = vunpack.c.l.b16 %v3290
    %v3490 = vunpack.c.l.b16 %v3291
    %v3491 = vunpack.c.l.b16 %v3292
    %v3492 = vunpack.c.l.b16 %v3293
    %v3493 = vunpack.c.l.b16 %v3294
    %v3494 = vunpack.c.l.b16 %v3295
    %v3495 = vunpack.c.l.b16 %v3296
    %v3496 = vunpack.c.l.b16 %v3297
    %v3497 = vunpack.c.l.b16 %v3298
    %v3498 = vunpack.c.l.b16 %v3299
    %v3499 = vunpack.c.l.b16 %v3300
    %v3500 = vunpack.c.l.b16 %v3301
    %v3501 = vunpack.c.l.b16 %v3302
    %v3502 = vunpack.c.l.b16 %v3303
    %v3503 = vunpack.c.l.b16 %v3304
    %v3504 = vunpack.c.l.b16 %v3305
    %v3505 = vunpack.c.l.b16 %v3306
    %v3506 = vunpack.c.l.b16 %v3307
    %v3507 = vunpack.c.l.b16 %v3308
    %v3508 = vunpack.c.l.b16 %v3309
    %v3509 = vunpack.c.l.b16 %v3310
    %v3510 = vunpack.c.l.b16 %v3311
    %v3511 = vunpack.c.l.b16 %v3312
    %v3512 = vpack.c.b16 %v3417, %v3416
    %v3513 = vpack.c.b16 %v3419, %v3418
    %v3514 = vpack.c.b16 %v3421, %v3420
    %v3515 = vpack.c.b16 %v3423, %v3422
    %v3516 = vpack.c.b16 %v3425, %v3424
    %v3517 = vpack.c.b16 %v3427, %v3426
    %v3518 = vpack.c.b16 %v3429, %v3428
    %v3519 = vpack.c.b16 %v3431, %v3430
    %v3520 = vpack.c.b16 %v3433, %v3432
    %v3521 = vpack.c.b16 %v3435, %v3434
    %v3522 = vpack.c.b16 %v3437, %v3436
    %v3523 = vpack.c.b16 %v3439, %v3438
    %v3524 = vpack.c.b16 %v3441, %v3440
    %v3525 = vpack.c.b16 %v3443, %v3442
    %v3526 = vpack.c.b16 %v3445, %v3444
    %v3527 = vpack.c.b16 %v3447, %v3446
    %v3528 = vpack.c.b16 %v3449, %v3448
    %v3529 = vpack.c.b16 %v3451, %v3450
    %v3530 = vpack.c.b16 %v3453, %v3452
    %v3531 = vpack.c.b16 %v3455, %v3454
    %v3532 = vpack.c.b16 %v3457, %v3456
    %v3533 = vpack.c.b16 %v3459, %v3458
    %v3534 = vpack.c.b16 %v3461, %v3460
    %v3535 = vpack.c.b16 %v3463, %v3462
    %v3536 = vpack.c.b16 %v3465, %v3464
    %v3537 = vpack.c.b16 %v3467, %v3466
    %v3538 = vpack.c.b16 %v3469, %v3468
    %v3539 = vpack.c.b16 %v3471, %v3470
    %v3540 = vpack.c.b16 %v3473, %v3472
    %v3541 = vpack.c.b16 %v3475, %v3474
    %v3542 = vpack.c.b16 %v3477, %v3476
    %v3543 = vpack.c.b16 %v3479, %v3478
    %v3544 = vpack.c.b16 %v3481, %v3480
    %v3545 = vpack.c.b16 %v3483, %v3482
    %v3546 = vpack.c.b16 %v3485, %v3484
    %v3547 = vpack.c.b16 %v3487, %v3486
    %v3548 = vpack.c.b16 %v3489, %v3488
    %v3549 = vpack.c.b16 %v3491, %v3490
    %v3550 = vpack.c.b16 %v3493, %v3492
    %v3551 = vpack.c.b16 %v3495, %v3494
    %v3552 = vpack.c.b16 %v3497, %v3496
    %v3553 = vpack.c.b16 %v3499, %v3498
    %v3554 = vpack.c.b16 %v3501, %v3500
    %v3555 = vpack.c.b16 %v3503, %v3502
    %v3556 = vpack.c.b16 %v3505, %v3504
    %v3557 = vpack.c.b16 %v3507, %v3506
    %v3558 = vpack.c.b16 %v3509, %v3508
    %v3559 = vpack.c.b16 %v3511, %v3510
    %3608 = vmatprep.subr.bf16.mxu0 0
    %3609 = vmatpush1.bf16.msra.mxu0 %v3519
    %3610 = vmatprep.subr.bf16.mxu0 0
    %3611 = vmatpush1.bf16.msra.mxu0 %v3518
    %3612 = vmatprep.subr.bf16.mxu0 0
    %3613 = vmatpush1.bf16.msra.mxu0 %v3517
    %3614 = vmatprep.subr.bf16.mxu0 0
    %3615 = vmatpush1.bf16.msra.mxu0 %v3516
    %3616 = vmatprep.subr.bf16.mxu0 0
    %3617 = vmatpush1.bf16.msra.mxu0 %v3515
    %3618 = vmatprep.subr.bf16.mxu0 0
    %3619 = vmatpush1.bf16.msra.mxu0 %v3514
    %3620 = vmatprep.subr.bf16.mxu0 0
    %3621 = vmatpush1.bf16.msra.mxu0 %v3513
    %3622 = vmatprep.subr.bf16.mxu0 0
    %3623 = vmatpush1.bf16.msra.mxu0 %v3512
    %3624 = vmatprep.subr.bf16.mxu0 0
    %3625 = vmatpush2.bf16.msra.mxu0 %v3527
    %3626 = vmatprep.subr.bf16.mxu0 0
    %3627 = vmatpush2.bf16.msra.mxu0 %v3526
    %3628 = vmatprep.subr.bf16.mxu0 0
    %3629 = vmatpush2.bf16.msra.mxu0 %v3525
    %3630 = vmatprep.subr.bf16.mxu0 0
    %3631 = vmatpush2.bf16.msra.mxu0 %v3524
    %3632 = vmatprep.subr.bf16.mxu0 0
    %3633 = vmatpush2.bf16.msra.mxu0 %v3523
    %3634 = vmatprep.subr.bf16.mxu0 0
    %3635 = vmatpush2.bf16.msra.mxu0 %v3522
    %3636 = vmatprep.subr.bf16.mxu0 0
    %3637 = vmatpush2.bf16.msra.mxu0 %v3521
    %3638 = vmatprep.subr.bf16.mxu0 0
    %3639 = vmatpush2.bf16.msra.mxu0 %v3520
    %3640 = vmatprep.mubr.bf16.mxu0 %v3212
    %3641 = vmatmul.mubr.bf16.gmra.mxu0 %v3211
    %v3642 = vpop.f32.mrf.mxu0
    %v3643 = vadd.f32 %v3318, %v3642
    %v3644 = vpop.f32.mrf.mxu0
    %v3645 = vpop.f32.mrf.mxu0
    %v3646 = vpop.f32.mrf.mxu0
    %3647 = vdwg.mxu0
    %3648 = vmatprep.subr.bf16.mxu0 0
    %3649 = vmatpush1.bf16.msra.mxu0 %v3535
    %3650 = vmatprep.subr.bf16.mxu0 0
    %3651 = vmatpush1.bf16.msra.mxu0 %v3534
    %3652 = vmatprep.subr.bf16.mxu0 0
    %3653 = vmatpush1.bf16.msra.mxu0 %v3533
    %3654 = vmatprep.subr.bf16.mxu0 0
    %3655 = vmatpush1.bf16.msra.mxu0 %v3532
    %3656 = vmatprep.subr.bf16.mxu0 0
    %3657 = vmatpush1.bf16.msra.mxu0 %v3531
    %3658 = vmatprep.subr.bf16.mxu0 0
    %3659 = vmatpush1.bf16.msra.mxu0 %v3530
    %3660 = vmatprep.subr.bf16.mxu0 0
    %3661 = vmatpush1.bf16.msra.mxu0 %v3529
    %3662 = vmatprep.subr.bf16.mxu0 0
    %3663 = vmatpush1.bf16.msra.mxu0 %v3528
    %3664 = vmatprep.subr.bf16.mxu0 0
    %3665 = vmatpush2.bf16.msra.mxu0 %v3543
    %3666 = vmatprep.subr.bf16.mxu0 0
    %3667 = vmatpush2.bf16.msra.mxu0 %v3542
    %3668 = vmatprep.subr.bf16.mxu0 0
    %3669 = vmatpush2.bf16.msra.mxu0 %v3541
    %3670 = vmatprep.subr.bf16.mxu0 0
    %3671 = vmatpush2.bf16.msra.mxu0 %v3540
    %3672 = vmatprep.subr.bf16.mxu0 0
    %3673 = vmatpush2.bf16.msra.mxu0 %v3539
    %3674 = vmatprep.subr.bf16.mxu0 0
    %3675 = vmatpush2.bf16.msra.mxu0 %v3538
    %3676 = vmatprep.subr.bf16.mxu0 0
    %3677 = vmatpush2.bf16.msra.mxu0 %v3537
    %3678 = vmatprep.subr.bf16.mxu0 0
    %3679 = vmatpush2.bf16.msra.mxu0 %v3536
    %3680 = vmatprep.mubr.bf16.mxu0 %v3214
    %3681 = vmatmul.mubr.bf16.gmra.mxu0 %v3213
    %v3682 = vpop.f32.mrf.mxu0
    %v3683 = vadd.f32 %v3643, %v3682
    %v3684 = vpop.f32.mrf.mxu0
    %v3685 = vpop.f32.mrf.mxu0
    %v3686 = vpop.f32.mrf.mxu0
    %3687 = vdwg.mxu0
    %3688 = vmatprep.subr.bf16.mxu0 0
    %3689 = vmatpush1.bf16.msra.mxu0 %v3551
    %3690 = vmatprep.subr.bf16.mxu0 0
    %3691 = vmatpush1.bf16.msra.mxu0 %v3550
    %3692 = vmatprep.subr.bf16.mxu0 0
    %3693 = vmatpush1.bf16.msra.mxu0 %v3549
    %3694 = vmatprep.subr.bf16.mxu0 0
    %3695 = vmatpush1.bf16.msra.mxu0 %v3548
    %3696 = vmatprep.subr.bf16.mxu0 0
    %3697 = vmatpush1.bf16.msra.mxu0 %v3547
    %3698 = vmatprep.subr.bf16.mxu0 0
    %3699 = vmatpush1.bf16.msra.mxu0 %v3546
    %3700 = vmatprep.subr.bf16.mxu0 0
    %3701 = vmatpush1.bf16.msra.mxu0 %v3545
    %3702 = vmatprep.subr.bf16.mxu0 0
    %3703 = vmatpush1.bf16.msra.mxu0 %v3544
    %3704 = vmatprep.subr.bf16.mxu0 0
    %3705 = vmatpush2.bf16.msra.mxu0 %v3559
    %3706 = vmatprep.subr.bf16.mxu0 0
    %3707 = vmatpush2.bf16.msra.mxu0 %v3558
    %3708 = vmatprep.subr.bf16.mxu0 0
    %3709 = vmatpush2.bf16.msra.mxu0 %v3557
    %3710 = vmatprep.subr.bf16.mxu0 0
    %3711 = vmatpush2.bf16.msra.mxu0 %v3556
    %3712 = vmatprep.subr.bf16.mxu0 0
    %3713 = vmatpush2.bf16.msra.mxu0 %v3555
    %3714 = vmatprep.subr.bf16.mxu0 0
    %3715 = vmatpush2.bf16.msra.mxu0 %v3554
    %3716 = vmatprep.subr.bf16.mxu0 0
    %3717 = vmatpush2.bf16.msra.mxu0 %v3553
    %3718 = vmatprep.subr.bf16.mxu0 0
    %3719 = vmatpush2.bf16.msra.mxu0 %v3552
    %3720 = vmatprep.mubr.bf16.mxu0 %v3216
    %3721 = vmatmul.mubr.bf16.gmra.mxu0 %v3215
    %v3722 = vpop.f32.mrf.mxu0
    %v3723 = vadd.f32 %v3683, %v3722
    %v3724 = vpop.f32.mrf.mxu0
    %v3725 = vpop.f32.mrf.mxu0
    %v3726 = vpop.f32.mrf.mxu0
    %3727 = vdwg.mxu0
    %3728 = vst [vmem:[#allocation14] sm:$0xff] %v3723
    // Predicated region
    $region58: #{tpu_custom_call.1} parent=1 // pred_check
      _
    $region59: #{tpu_custom_call.1} parent=1 // pred_check_branch
      %3730 = sbr.rel (0) target = $region61
    $region60: #{tpu_custom_call.1} parent=1 // pred_region
      %s3732 = ssub.s32 128, 128
      %3733 = vsyncadd [#allocation4], %s3732
      %s3735 = sshll.u32 [#allocation14], 4
      %s3736 = int_to_ptr.vmem [resolvable:$true] %s3735
      %3738 = dma.vmem_to_hbm [thread:$0]  %s3736, 128, %s7, [#allocation4]
    $region61: #{tpu_custom_call.1} parent=1 // pred_fallthru
      _
    // Predicated region
    $region62: #{tpu_custom_call.1} parent=1 // pred_check
      _
    $region63: #{tpu_custom_call.1} parent=1 // pred_check_branch
      %3740 = sbr.rel (0) target = $region65
    $region64: #{tpu_custom_call.1} parent=1 // pred_region
      %3741 = dma.done [#allocation4], 128
    $region65: #{tpu_custom_call.1} parent=1 // pred_fallthru
      _
    %3742 = vsyncpa [#allocation3], 1
    %3743 = vsyncpa [#allocation6], 1
    %3744 = vsyncpa [#allocation9], 1
    %3745 = vsyncpa [#allocation12], 1
    %3746 = vsyncpa [#allocation4], 1

</llo_original>
